<compile_context>
chip_gen: v6e
topology: v6e:2x2x1
jax: 0.10.0
libtpu: 0.0.40
codegen_flags: <defaults>
</compile_context>

<pallas_src>
import functools
import math

import numpy as np

import jax
import jax.numpy as jnp
from jax.experimental import pallas as pl
from jax.experimental.pallas import tpu as pltpu


# (kernel, stride, pad, out_channels) -- mirrors the PyTorch module.
_CONV_SPECS = [
    (8, 4, 2, 32),
    (4, 2, 1, 64),
    (3, 1, 1, 64),
]


# ---------------------------------------------------------------------------
# Fused kernel: conv1 (patch matmul) -> conv2 -> conv3 -> FC, all in VMEM.
# ---------------------------------------------------------------------------
def _fused_cnn_kernel(p1_ref, w1_ref, b1_ref, g2_ref, w2_ref, b2_ref,
                      g3_ref, w3_ref, b3_ref, wf_ref, bf_ref, o_ref):
    f32 = jnp.float32

    # --- conv1: one fused matmul + bias + ReLU on pre-extracted patches ----
    h = jnp.dot(p1_ref[0], w1_ref[...], preferred_element_type=f32)     # (S1, C1)
    h = jnp.maximum(h + b1_ref[...], 0.0).astype(jnp.bfloat16)

    # --- conv2: gather-matmul im2col (handles stride+pad) + weight matmuls --
    j2, c2 = w2_ref.shape[0], w2_ref.shape[2]
    s2 = g2_ref.shape[0] // j2
    # Exact row-gather: one 0/1 matmul builds all (kh,kw)-shifted copies at once.
    t = jnp.dot(g2_ref[...], h, preferred_element_type=f32).astype(jnp.bfloat16)
    acc = jnp.zeros((s2, c2), f32)
    for j in range(j2):                                   # static unroll (16)
        acc = acc + jnp.dot(t[j * s2:(j + 1) * s2, :], w2_ref[j],
                            preferred_element_type=f32)
    h = jnp.maximum(acc + b2_ref[...], 0.0).astype(jnp.bfloat16)        # (S2, C2)

    # --- conv3 ---------------------------------------------------------------
    j3, c3 = w3_ref.shape[0], w3_ref.shape[2]
    s3 = g3_ref.shape[0] // j3
    t = jnp.dot(g3_ref[...], h, preferred_element_type=f32).astype(jnp.bfloat16)
    acc = jnp.zeros((s3, c3), f32)
    for j in range(j3):                                   # static unroll (9)
        acc = acc + jnp.dot(t[j * s3:(j + 1) * s3, :], w3_ref[j],
                            preferred_element_type=f32)
    h = jnp.maximum(acc + b3_ref[...], 0.0).astype(jnp.bfloat16)        # (S3, C3)

    # --- FC: flatten-free -- sum of per-spatial-row (1,C3)@(C3,F) matmuls ----
    feat = wf_ref.shape[2]
    acc = jnp.zeros((1, feat), f32)
    for s in range(wf_ref.shape[0]):                      # static unroll (16)
        acc = acc + jnp.dot(h[s:s + 1, :], wf_ref[s], preferred_element_type=f32)
    o_ref[0] = jnp.maximum(acc + bf_ref[...], 0.0).astype(o_ref.dtype)  # (1, F)


def _fused_forward(params, patches):
    """patches: (N, OH1*OW1, C_in*K1*K1) bf16 -> (N, feature_dim) f32."""
    n, sp1, kdim = patches.shape
    w1, b1 = params["w1"], params["b1"]
    g2, w2, b2 = params["g2"], params["w2"], params["b2"]
    g3, w3, b3 = params["g3"], params["w3"], params["b3"]
    wf, bf = params["wf"], params["bf"]

    c1 = w1.shape[1]
    j2, c2 = w2.shape[0], w2.shape[2]
    j3, c3 = w3.shape[0], w3.shape[2]
    s2 = g2.shape[0] // j2
    s3 = g3.shape[0] // j3
    feat = wf.shape[2]

    flops = n * (2 * sp1 * kdim * c1
                 + 2 * g2.shape[0] * g2.shape[1] * c1 + 2 * j2 * s2 * c1 * c2
                 + 2 * g3.shape[0] * g3.shape[1] * c2 + 2 * j3 * s3 * c2 * c3
                 + 2 * wf.shape[0] * c3 * feat)
    bytes_accessed = (patches.size * 2
                      + (w1.size + g2.size + w2.size + g3.size + w3.size + wf.size) * 2
                      + (b1.size + b2.size + b3.size + bf.size) * 4
                      + n * feat * 4)

    out = pl.pallas_call(
        _fused_cnn_kernel,
        out_shape=jax.ShapeDtypeStruct((n, 1, feat), jnp.float32),
        grid_spec=pltpu.PrefetchScalarGridSpec(
            num_scalar_prefetch=0,
            grid=(n,),                                     # batch only
            in_specs=[
                pl.BlockSpec((1, sp1, kdim), lambda b: (b, 0, 0)),   # patches (per sample)
                pl.BlockSpec(w1.shape, lambda b: (0, 0)),            # conv1 weight
                pl.BlockSpec(b1.shape, lambda b: (0, 0)),            # conv1 bias
                pl.BlockSpec(g2.shape, lambda b: (0, 0)),            # conv2 gather mats
                pl.BlockSpec(w2.shape, lambda b: (0, 0, 0)),         # conv2 weight
                pl.BlockSpec(b2.shape, lambda b: (0, 0)),            # conv2 bias
                pl.BlockSpec(g3.shape, lambda b: (0, 0)),            # conv3 gather mats
                pl.BlockSpec(w3.shape, lambda b: (0, 0, 0)),         # conv3 weight
                pl.BlockSpec(b3.shape, lambda b: (0, 0)),            # conv3 bias
                pl.BlockSpec(wf.shape, lambda b: (0, 0, 0)),         # FC weight
                pl.BlockSpec(bf.shape, lambda b: (0, 0)),            # FC bias
            ],
            out_specs=pl.BlockSpec((1, 1, feat), lambda b: (b, 0, 0)),
        ),
        compiler_params=pltpu.CompilerParams(
            dimension_semantics=("parallel",),
            vmem_limit_bytes=32 * 1024 * 1024),
        cost_estimate=pl.CostEstimate(flops=int(flops), transcendentals=0,
                                      bytes_accessed=int(bytes_accessed)),
    )(patches, w1, b1, g2, w2, b2, g3, w3, b3, wf, bf)
    return out.reshape(n, feat)


def cnn_feature_extractor_forward(params, x_nchw: jax.Array) -> jax.Array:
    """Matches CNNFeatureExtractor.forward; input is NCHW like PyTorch."""
    meta = params["meta"]
    k, s, p, _ = meta["conv_specs"][0]
    x = jnp.transpose(x_nchw, (0, 2, 3, 1)).astype(jnp.bfloat16)        # NHWC, bf16 once
    # Patch extraction for the first conv only; feature order is (C, KH, KW),
    # matching the conv1 weight row layout.
    patches = jax.lax.conv_general_dilated_patches(
        x, filter_shape=(k, k), window_strides=(s, s),
        padding=((p, p), (p, p)),
        dimension_numbers=("NHWC", "HWIO", "NHWC"))
    n, oh, ow, kdim = patches.shape
    return _fused_forward(params, patches.reshape(n, oh * ow, kdim))


# ---------------------------------------------------------------------------
# Parameter / gather-matrix construction
# ---------------------------------------------------------------------------
def _gather_matrices(in_h, in_w, k, s, p):
    """0/1 matrix of shape (K*K*OH*OW, IH*IW): row (j, oy, ox) selects input pixel
    (oy*s+kh-p, ox*s+kw-p) with j=kh*K+kw; out-of-bounds rows stay all-zero, which
    implements zero padding for free."""
    out_h = (in_h + 2 * p - k) // s + 1
    out_w = (in_w + 2 * p - k) // s + 1
    g = np.zeros((k * k * out_h * out_w, in_h * in_w), np.float32)
    for kh in range(k):
        for kw in range(k):
            j = kh * k + kw
            for oy in range(out_h):
                for ox in range(out_w):
                    iy, ix = oy * s + kh - p, ox * s + kw - p
                    if 0 <= iy < in_h and 0 <= ix < in_w:
                        g[j * out_h * out_w + oy * out_w + ox, iy * in_w + ix] = 1.0
    return jnp.asarray(g, jnp.bfloat16), (out_h, out_w)


def init_params(key, input_channels=6, feature_dim=512, in_hw=(32, 32)):
    (k1, s1, p1, oc1), (k2, s2, p2, oc2), (k3, s3, p3, oc3) = _CONV_SPECS
    h0, w0 = in_hw

    def _uniform(key, shape, fan_in):
        bound = 1.0 / math.sqrt(fan_in)
        return jax.random.uniform(key, shape, jnp.float32, -bound, bound)

    # conv1: rows ordered (C, KH, KW) to match conv_general_dilated_patches.
    # PyTorch port: w_torch(OC,IC,KH,KW).permute(1,2,3,0).reshape(IC*KH*KW, OC)
    key, kk, kb = jax.random.split(key, 3)
    w1 = _uniform(kk, (input_channels, k1, k1, oc1), input_channels * k1 * k1)
    b1 = _uniform(kb, (oc1,), input_channels * k1 * k1)
    oh1 = (h0 + 2 * p1 - k1) // s1 + 1
    ow1 = (w0 + 2 * p1 - k1) // s1 + 1

    # conv2 / conv3: per-offset (kh,kw) matrices of shape (IC, OC).
    # PyTorch port: w_torch(OC,IC,KH,KW) -> w[kh*K+kw, ic, oc] = w_torch[oc, ic, kh, kw]
    key, kk, kb = jax.random.split(key, 3)
    w2 = _uniform(kk, (k2 * k2, oc1, oc2), oc1 * k2 * k2)
    b2 = _uniform(kb, (oc2,), oc1 * k2 * k2)
    g2, (oh2, ow2) = _gather_matrices(oh1, ow1, k2, s2, p2)

    key, kk, kb = jax.random.split(key, 3)
    w3 = _uniform(kk, (k3 * k3, oc2, oc3), oc2 * k3 * k3)
    b3 = _uniform(kb, (oc3,), oc2 * k3 * k3)
    g3, (oh3, ow3) = _gather_matrices(oh2, ow2, k3, s3, p3)

    conv_out = oc3 * oh3 * ow3
    # FC weight as (spatial, C, F): rows match the kernel's (oh*OW+ow, c) activation
    # layout.  PyTorch port: wf[s, c, f] = fc.weight[f, c*(OH3*OW3) + s]
    key, kk, kb = jax.random.split(key, 3)
    wf = _uniform(kk, (oh3 * ow3, oc3, feature_dim), conv_out)
    bf = _uniform(kb, (feature_dim,), conv_out)

    return {
        "w1": w1.reshape(input_channels * k1 * k1, oc1).astype(jnp.bfloat16),
        "b1": b1.reshape(1, oc1),
        "g2": g2, "w2": w2.astype(jnp.bfloat16), "b2": b2.reshape(1, oc2),
        "g3": g3, "w3": w3.astype(jnp.bfloat16), "b3": b3.reshape(1, oc3),
        "wf": wf.astype(jnp.bfloat16), "bf": bf.reshape(1, feature_dim),
        "meta": {"conv_specs": tuple(_CONV_SPECS), "feature_dim": feature_dim,
                 "input_channels": input_channels, "in_hw": in_hw},
    }


# ---------------------------------------------------------------------------
# Pure-JAX f32 reference (correctness check only)
# ---------------------------------------------------------------------------
def _reference_forward(params, x_nchw):
    meta = params["meta"]
    (k1, s1, p1, oc1), (k2, s2, p2, oc2), (k3, s3, p3, oc3) = meta["conv_specs"]
    ic = meta["input_channels"]
    # Same bf16 rounding of inputs/weights as the kernel path; math in f32.
    x = jnp.transpose(x_nchw, (0, 2, 3, 1)).astype(jnp.bfloat16).astype(jnp.float32)

    w1 = params["w1"].astype(jnp.float32).reshape(ic, k1, k1, oc1).transpose(1, 2, 0, 3)
    x = jax.lax.conv_general_dilated(x, w1, (s1, s1), ((p1, p1), (p1, p1)),
                                     dimension_numbers=("NHWC", "HWIO", "NHWC"))
    x = jax.nn.relu(x + params["b1"].astype(jnp.float32).reshape(1, 1, 1, oc1))

    w2 = params["w2"].astype(jnp.float32).reshape(k2, k2, oc1, oc2)
    x = jax.lax.conv_general_dilated(x, w2, (s2, s2), ((p2, p2), (p2, p2)),
                                     dimension_numbers=("NHWC", "HWIO", "NHWC"))
    x = jax.nn.relu(x + params["b2"].astype(jnp.float32).reshape(1, 1, 1, oc2))

    w3 = params["w3"].astype(jnp.float32).reshape(k3, k3, oc2, oc3)
    x = jax.lax.conv_general_dilated(x, w3, (s3, s3), ((p3, p3), (p3, p3)),
                                     dimension_numbers=("NHWC", "HWIO", "NHWC"))
    x = jax.nn.relu(x + params["b3"].astype(jnp.float32).reshape(1, 1, 1, oc3))

    wf = params["wf"].astype(jnp.float32).reshape(-1, meta["feature_dim"])
    y = x.reshape(x.shape[0], -1) @ wf + params["bf"].astype(jnp.float32)
    return jax.nn.relu(y)


if __name__ == "__main__":
    # Small shapes consistent with the module (input_channels=6, feature_dim=512).
    BATCH, IN_C, H, W = 2, 6, 32, 32
    FEATURE_DIM = 512

    root = jax.random.PRNGKey(0)
    pkey, xkey = jax.random.split(root)
    params = init_params(pkey, input_channels=IN_C, feature_dim=FEATURE_DIM,
                         in_hw=(H, W))
    x = jax.random.normal(xkey, (BATCH, IN_C, H, W), jnp.float32)

    fwd = jax.jit(functools.partial(cnn_feature_extractor_forward, params))
    out = fwd(x)
    jax.block_until_ready(out)

    assert out.shape == (BATCH, FEATURE_DIM), out.shape
    assert out.dtype == jnp.float32
    assert bool(jnp.all(out >= 0.0))  # final ReLU

    # Correctness vs pure-JAX reference (bf16 activations on the kernel path).
    ref = _reference_forward(params, x)
    err = float(jnp.max(jnp.abs(out - ref)) / (jnp.max(jnp.abs(ref)) + 1e-6))
    assert err < 0.08, f"mismatch vs reference: rel-to-max err = {err}"

    print("KERNEL_OK")
</pallas_src>

<mosaic_0001>
module attributes {stable_mosaic.version = 11 : i64} {
  func.func @_fused_cnn_kernel(%arg0: i32, %arg1: memref<1x64x384xbf16, #tpu.memory_space<vmem>>, %arg2: memref<384x32xbf16, #tpu.memory_space<vmem>>, %arg3: memref<1x32xf32, #tpu.memory_space<vmem>>, %arg4: memref<256x64xbf16, #tpu.memory_space<vmem>>, %arg5: memref<16x32x64xbf16, #tpu.memory_space<vmem>>, %arg6: memref<1x64xf32, #tpu.memory_space<vmem>>, %arg7: memref<144x16xbf16, #tpu.memory_space<vmem>>, %arg8: memref<9x64x64xbf16, #tpu.memory_space<vmem>>, %arg9: memref<1x64xf32, #tpu.memory_space<vmem>>, %arg10: memref<16x64x512xbf16, #tpu.memory_space<vmem>>, %arg11: memref<1x512xf32, #tpu.memory_space<vmem>>, %arg12: memref<1x1x512xf32, #tpu.memory_space<vmem>>) attributes {dimension_semantics = [#tpu.dimension_semantics<parallel>], iteration_bounds = array<i64: 2>, scalar_prefetch = 0 : i64, scratch_operands = 0 : i64, tpu.core_type = #tpu.core_type<tc>, window_params = [{transform_indices = @transform_0, window_bounds = array<i64: 1, 64, 384>}, {pipeline_mode = #tpu.pipeline_mode<synchronous>, transform_indices = @transform_1, window_bounds = array<i64: 384, 32>}, {pipeline_mode = #tpu.pipeline_mode<synchronous>, transform_indices = @transform_2, window_bounds = array<i64: 1, 32>}, {pipeline_mode = #tpu.pipeline_mode<synchronous>, transform_indices = @transform_3, window_bounds = array<i64: 256, 64>}, {pipeline_mode = #tpu.pipeline_mode<synchronous>, transform_indices = @transform_4, window_bounds = array<i64: 16, 32, 64>}, {pipeline_mode = #tpu.pipeline_mode<synchronous>, transform_indices = @transform_5, window_bounds = array<i64: 1, 64>}, {pipeline_mode = #tpu.pipeline_mode<synchronous>, transform_indices = @transform_6, window_bounds = array<i64: 144, 16>}, {pipeline_mode = #tpu.pipeline_mode<synchronous>, transform_indices = @transform_7, window_bounds = array<i64: 9, 64, 64>}, {pipeline_mode = #tpu.pipeline_mode<synchronous>, transform_indices = @transform_8, window_bounds = array<i64: 1, 64>}, {pipeline_mode = #tpu.pipeline_mode<synchronous>, transform_indices = @transform_9, window_bounds = array<i64: 16, 64, 512>}, {pipeline_mode = #tpu.pipeline_mode<synchronous>, transform_indices = @transform_10, window_bounds = array<i64: 1, 512>}, {transform_indices = @transform_11, window_bounds = array<i64: 1, 1, 512>}]} {
    %c0 = arith.constant 0 : index
    %c0_0 = arith.constant 0 : index
    %c0_1 = arith.constant 0 : index
    %0 = vector.load %arg1[%c0, %c0_0, %c0_1] : memref<1x64x384xbf16, #tpu.memory_space<vmem>>, vector<1x64x384xbf16>
    %1 = vector.shape_cast %0 : vector<1x64x384xbf16> to vector<64x384xbf16>
    %c0_2 = arith.constant 0 : index
    %c0_3 = arith.constant 0 : index
    %2 = vector.load %arg2[%c0_2, %c0_3] : memref<384x32xbf16, #tpu.memory_space<vmem>>, vector<384x32xbf16>
    %cst = arith.constant dense<0.000000e+00> : vector<64x32xf32>
    %3 = tpu.matmul %1, %2, %cst {dimension_numbers = #tpu.dot_dimension_numbers<[1], [0], [0], [1], [0, 0, 1, 1], [], []>} : vector<64x384xbf16>, vector<384x32xbf16>, vector<64x32xf32> -> vector<64x32xf32>
    %c0_4 = arith.constant 0 : index
    %c0_5 = arith.constant 0 : index
    %4 = vector.load %arg3[%c0_4, %c0_5] : memref<1x32xf32, #tpu.memory_space<vmem>>, vector<1x32xf32>
    %5 = vector.broadcast %4 : vector<1x32xf32> to vector<64x32xf32>
    %6 = arith.addf %3, %5 : vector<64x32xf32>
    %cst_6 = arith.constant 0.000000e+00 : f32
    %7 = vector.broadcast %cst_6 : f32 to vector<64x32xf32>
    %8 = arith.maximumf %6, %7 : vector<64x32xf32>
    %9 = arith.truncf %8 : vector<64x32xf32> to vector<64x32xbf16>
    %c0_7 = arith.constant 0 : index
    %c0_8 = arith.constant 0 : index
    %10 = vector.load %arg4[%c0_7, %c0_8] : memref<256x64xbf16, #tpu.memory_space<vmem>>, vector<256x64xbf16>
    %cst_9 = arith.constant dense<0.000000e+00> : vector<256x32xf32>
    %11 = tpu.matmul %10, %9, %cst_9 {dimension_numbers = #tpu.dot_dimension_numbers<[1], [0], [0], [1], [0, 0, 1, 1], [], []>} : vector<256x64xbf16>, vector<64x32xbf16>, vector<256x32xf32> -> vector<256x32xf32>
    %12 = arith.truncf %11 : vector<256x32xf32> to vector<256x32xbf16>
    %cst_10 = arith.constant 0.000000e+00 : f32
    %13 = vector.broadcast %cst_10 : f32 to vector<16x64xf32>
    %14 = vector.extract_strided_slice %12 {offsets = [0, 0], sizes = [16, 32], strides = [1, 1]} : vector<256x32xbf16> to vector<16x32xbf16>
    %c0_11 = arith.constant 0 : index
    %c0_12 = arith.constant 0 : index
    %c0_13 = arith.constant 0 : index
    %15 = vector.load %arg5[%c0_11, %c0_12, %c0_13] : memref<16x32x64xbf16, #tpu.memory_space<vmem>>, vector<1x32x64xbf16>
    %16 = vector.shape_cast %15 : vector<1x32x64xbf16> to vector<32x64xbf16>
    %cst_14 = arith.constant dense<0.000000e+00> : vector<16x64xf32>
    %17 = tpu.matmul %14, %16, %cst_14 {dimension_numbers = #tpu.dot_dimension_numbers<[1], [0], [0], [1], [0, 0, 1, 1], [], []>} : vector<16x32xbf16>, vector<32x64xbf16>, vector<16x64xf32> -> vector<16x64xf32>
    %18 = arith.addf %13, %17 : vector<16x64xf32>
    %19 = vector.extract_strided_slice %12 {offsets = [16, 0], sizes = [16, 32], strides = [1, 1]} : vector<256x32xbf16> to vector<16x32xbf16>
    %c1 = arith.constant 1 : index
    %c0_15 = arith.constant 0 : index
    %c0_16 = arith.constant 0 : index
    %20 = vector.load %arg5[%c1, %c0_15, %c0_16] : memref<16x32x64xbf16, #tpu.memory_space<vmem>>, vector<1x32x64xbf16>
    %21 = vector.shape_cast %20 : vector<1x32x64xbf16> to vector<32x64xbf16>
    %cst_17 = arith.constant dense<0.000000e+00> : vector<16x64xf32>
    %22 = tpu.matmul %19, %21, %cst_17 {dimension_numbers = #tpu.dot_dimension_numbers<[1], [0], [0], [1], [0, 0, 1, 1], [], []>} : vector<16x32xbf16>, vector<32x64xbf16>, vector<16x64xf32> -> vector<16x64xf32>
    %23 = arith.addf %18, %22 : vector<16x64xf32>
    %24 = vector.extract_strided_slice %12 {offsets = [32, 0], sizes = [16, 32], strides = [1, 1]} : vector<256x32xbf16> to vector<16x32xbf16>
    %c2 = arith.constant 2 : index
    %c0_18 = arith.constant 0 : index
    %c0_19 = arith.constant 0 : index
    %25 = vector.load %arg5[%c2, %c0_18, %c0_19] : memref<16x32x64xbf16, #tpu.memory_space<vmem>>, vector<1x32x64xbf16>
    %26 = vector.shape_cast %25 : vector<1x32x64xbf16> to vector<32x64xbf16>
    %cst_20 = arith.constant dense<0.000000e+00> : vector<16x64xf32>
    %27 = tpu.matmul %24, %26, %cst_20 {dimension_numbers = #tpu.dot_dimension_numbers<[1], [0], [0], [1], [0, 0, 1, 1], [], []>} : vector<16x32xbf16>, vector<32x64xbf16>, vector<16x64xf32> -> vector<16x64xf32>
    %28 = arith.addf %23, %27 : vector<16x64xf32>
    %29 = vector.extract_strided_slice %12 {offsets = [48, 0], sizes = [16, 32], strides = [1, 1]} : vector<256x32xbf16> to vector<16x32xbf16>
    %c3 = arith.constant 3 : index
    %c0_21 = arith.constant 0 : index
    %c0_22 = arith.constant 0 : index
    %30 = vector.load %arg5[%c3, %c0_21, %c0_22] : memref<16x32x64xbf16, #tpu.memory_space<vmem>>, vector<1x32x64xbf16>
    %31 = vector.shape_cast %30 : vector<1x32x64xbf16> to vector<32x64xbf16>
    %cst_23 = arith.constant dense<0.000000e+00> : vector<16x64xf32>
    %32 = tpu.matmul %29, %31, %cst_23 {dimension_numbers = #tpu.dot_dimension_numbers<[1], [0], [0], [1], [0, 0, 1, 1], [], []>} : vector<16x32xbf16>, vector<32x64xbf16>, vector<16x64xf32> -> vector<16x64xf32>
    %33 = arith.addf %28, %32 : vector<16x64xf32>
    %34 = vector.extract_strided_slice %12 {offsets = [64, 0], sizes = [16, 32], strides = [1, 1]} : vector<256x32xbf16> to vector<16x32xbf16>
    %c4 = arith.constant 4 : index
    %c0_24 = arith.constant 0 : index
    %c0_25 = arith.constant 0 : index
    %35 = vector.load %arg5[%c4, %c0_24, %c0_25] : memref<16x32x64xbf16, #tpu.memory_space<vmem>>, vector<1x32x64xbf16>
    %36 = vector.shape_cast %35 : vector<1x32x64xbf16> to vector<32x64xbf16>
    %cst_26 = arith.constant dense<0.000000e+00> : vector<16x64xf32>
    %37 = tpu.matmul %34, %36, %cst_26 {dimension_numbers = #tpu.dot_dimension_numbers<[1], [0], [0], [1], [0, 0, 1, 1], [], []>} : vector<16x32xbf16>, vector<32x64xbf16>, vector<16x64xf32> -> vector<16x64xf32>
    %38 = arith.addf %33, %37 : vector<16x64xf32>
    %39 = vector.extract_strided_slice %12 {offsets = [80, 0], sizes = [16, 32], strides = [1, 1]} : vector<256x32xbf16> to vector<16x32xbf16>
    %c5 = arith.constant 5 : index
    %c0_27 = arith.constant 0 : index
    %c0_28 = arith.constant 0 : index
    %40 = vector.load %arg5[%c5, %c0_27, %c0_28] : memref<16x32x64xbf16, #tpu.memory_space<vmem>>, vector<1x32x64xbf16>
    %41 = vector.shape_cast %40 : vector<1x32x64xbf16> to vector<32x64xbf16>
    %cst_29 = arith.constant dense<0.000000e+00> : vector<16x64xf32>
    %42 = tpu.matmul %39, %41, %cst_29 {dimension_numbers = #tpu.dot_dimension_numbers<[1], [0], [0], [1], [0, 0, 1, 1], [], []>} : vector<16x32xbf16>, vector<32x64xbf16>, vector<16x64xf32> -> vector<16x64xf32>
    %43 = arith.addf %38, %42 : vector<16x64xf32>
    %44 = vector.extract_strided_slice %12 {offsets = [96, 0], sizes = [16, 32], strides = [1, 1]} : vector<256x32xbf16> to vector<16x32xbf16>
    %c6 = arith.constant 6 : index
    %c0_30 = arith.constant 0 : index
    %c0_31 = arith.constant 0 : index
    %45 = vector.load %arg5[%c6, %c0_30, %c0_31] : memref<16x32x64xbf16, #tpu.memory_space<vmem>>, vector<1x32x64xbf16>
    %46 = vector.shape_cast %45 : vector<1x32x64xbf16> to vector<32x64xbf16>
    %cst_32 = arith.constant dense<0.000000e+00> : vector<16x64xf32>
    %47 = tpu.matmul %44, %46, %cst_32 {dimension_numbers = #tpu.dot_dimension_numbers<[1], [0], [0], [1], [0, 0, 1, 1], [], []>} : vector<16x32xbf16>, vector<32x64xbf16>, vector<16x64xf32> -> vector<16x64xf32>
    %48 = arith.addf %43, %47 : vector<16x64xf32>
    %49 = vector.extract_strided_slice %12 {offsets = [112, 0], sizes = [16, 32], strides = [1, 1]} : vector<256x32xbf16> to vector<16x32xbf16>
    %c7 = arith.constant 7 : index
    %c0_33 = arith.constant 0 : index
    %c0_34 = arith.constant 0 : index
    %50 = vector.load %arg5[%c7, %c0_33, %c0_34] : memref<16x32x64xbf16, #tpu.memory_space<vmem>>, vector<1x32x64xbf16>
    %51 = vector.shape_cast %50 : vector<1x32x64xbf16> to vector<32x64xbf16>
    %cst_35 = arith.constant dense<0.000000e+00> : vector<16x64xf32>
    %52 = tpu.matmul %49, %51, %cst_35 {dimension_numbers = #tpu.dot_dimension_numbers<[1], [0], [0], [1], [0, 0, 1, 1], [], []>} : vector<16x32xbf16>, vector<32x64xbf16>, vector<16x64xf32> -> vector<16x64xf32>
    %53 = arith.addf %48, %52 : vector<16x64xf32>
    %54 = vector.extract_strided_slice %12 {offsets = [128, 0], sizes = [16, 32], strides = [1, 1]} : vector<256x32xbf16> to vector<16x32xbf16>
    %c8 = arith.constant 8 : index
    %c0_36 = arith.constant 0 : index
    %c0_37 = arith.constant 0 : index
    %55 = vector.load %arg5[%c8, %c0_36, %c0_37] : memref<16x32x64xbf16, #tpu.memory_space<vmem>>, vector<1x32x64xbf16>
    %56 = vector.shape_cast %55 : vector<1x32x64xbf16> to vector<32x64xbf16>
    %cst_38 = arith.constant dense<0.000000e+00> : vector<16x64xf32>
    %57 = tpu.matmul %54, %56, %cst_38 {dimension_numbers = #tpu.dot_dimension_numbers<[1], [0], [0], [1], [0, 0, 1, 1], [], []>} : vector<16x32xbf16>, vector<32x64xbf16>, vector<16x64xf32> -> vector<16x64xf32>
    %58 = arith.addf %53, %57 : vector<16x64xf32>
    %59 = vector.extract_strided_slice %12 {offsets = [144, 0], sizes = [16, 32], strides = [1, 1]} : vector<256x32xbf16> to vector<16x32xbf16>
    %c9 = arith.constant 9 : index
    %c0_39 = arith.constant 0 : index
    %c0_40 = arith.constant 0 : index
    %60 = vector.load %arg5[%c9, %c0_39, %c0_40] : memref<16x32x64xbf16, #tpu.memory_space<vmem>>, vector<1x32x64xbf16>
    %61 = vector.shape_cast %60 : vector<1x32x64xbf16> to vector<32x64xbf16>
    %cst_41 = arith.constant dense<0.000000e+00> : vector<16x64xf32>
    %62 = tpu.matmul %59, %61, %cst_41 {dimension_numbers = #tpu.dot_dimension_numbers<[1], [0], [0], [1], [0, 0, 1, 1], [], []>} : vector<16x32xbf16>, vector<32x64xbf16>, vector<16x64xf32> -> vector<16x64xf32>
    %63 = arith.addf %58, %62 : vector<16x64xf32>
    %64 = vector.extract_strided_slice %12 {offsets = [160, 0], sizes = [16, 32], strides = [1, 1]} : vector<256x32xbf16> to vector<16x32xbf16>
    %c10 = arith.constant 10 : index
    %c0_42 = arith.constant 0 : index
    %c0_43 = arith.constant 0 : index
    %65 = vector.load %arg5[%c10, %c0_42, %c0_43] : memref<16x32x64xbf16, #tpu.memory_space<vmem>>, vector<1x32x64xbf16>
    %66 = vector.shape_cast %65 : vector<1x32x64xbf16> to vector<32x64xbf16>
    %cst_44 = arith.constant dense<0.000000e+00> : vector<16x64xf32>
    %67 = tpu.matmul %64, %66, %cst_44 {dimension_numbers = #tpu.dot_dimension_numbers<[1], [0], [0], [1], [0, 0, 1, 1], [], []>} : vector<16x32xbf16>, vector<32x64xbf16>, vector<16x64xf32> -> vector<16x64xf32>
    %68 = arith.addf %63, %67 : vector<16x64xf32>
    %69 = vector.extract_strided_slice %12 {offsets = [176, 0], sizes = [16, 32], strides = [1, 1]} : vector<256x32xbf16> to vector<16x32xbf16>
    %c11 = arith.constant 11 : index
    %c0_45 = arith.constant 0 : index
    %c0_46 = arith.constant 0 : index
    %70 = vector.load %arg5[%c11, %c0_45, %c0_46] : memref<16x32x64xbf16, #tpu.memory_space<vmem>>, vector<1x32x64xbf16>
    %71 = vector.shape_cast %70 : vector<1x32x64xbf16> to vector<32x64xbf16>
    %cst_47 = arith.constant dense<0.000000e+00> : vector<16x64xf32>
    %72 = tpu.matmul %69, %71, %cst_47 {dimension_numbers = #tpu.dot_dimension_numbers<[1], [0], [0], [1], [0, 0, 1, 1], [], []>} : vector<16x32xbf16>, vector<32x64xbf16>, vector<16x64xf32> -> vector<16x64xf32>
    %73 = arith.addf %68, %72 : vector<16x64xf32>
    %74 = vector.extract_strided_slice %12 {offsets = [192, 0], sizes = [16, 32], strides = [1, 1]} : vector<256x32xbf16> to vector<16x32xbf16>
    %c12 = arith.constant 12 : index
    %c0_48 = arith.constant 0 : index
    %c0_49 = arith.constant 0 : index
    %75 = vector.load %arg5[%c12, %c0_48, %c0_49] : memref<16x32x64xbf16, #tpu.memory_space<vmem>>, vector<1x32x64xbf16>
    %76 = vector.shape_cast %75 : vector<1x32x64xbf16> to vector<32x64xbf16>
    %cst_50 = arith.constant dense<0.000000e+00> : vector<16x64xf32>
    %77 = tpu.matmul %74, %76, %cst_50 {dimension_numbers = #tpu.dot_dimension_numbers<[1], [0], [0], [1], [0, 0, 1, 1], [], []>} : vector<16x32xbf16>, vector<32x64xbf16>, vector<16x64xf32> -> vector<16x64xf32>
    %78 = arith.addf %73, %77 : vector<16x64xf32>
    %79 = vector.extract_strided_slice %12 {offsets = [208, 0], sizes = [16, 32], strides = [1, 1]} : vector<256x32xbf16> to vector<16x32xbf16>
    %c13 = arith.constant 13 : index
    %c0_51 = arith.constant 0 : index
    %c0_52 = arith.constant 0 : index
    %80 = vector.load %arg5[%c13, %c0_51, %c0_52] : memref<16x32x64xbf16, #tpu.memory_space<vmem>>, vector<1x32x64xbf16>
    %81 = vector.shape_cast %80 : vector<1x32x64xbf16> to vector<32x64xbf16>
    %cst_53 = arith.constant dense<0.000000e+00> : vector<16x64xf32>
    %82 = tpu.matmul %79, %81, %cst_53 {dimension_numbers = #tpu.dot_dimension_numbers<[1], [0], [0], [1], [0, 0, 1, 1], [], []>} : vector<16x32xbf16>, vector<32x64xbf16>, vector<16x64xf32> -> vector<16x64xf32>
    %83 = arith.addf %78, %82 : vector<16x64xf32>
    %84 = vector.extract_strided_slice %12 {offsets = [224, 0], sizes = [16, 32], strides = [1, 1]} : vector<256x32xbf16> to vector<16x32xbf16>
    %c14 = arith.constant 14 : index
    %c0_54 = arith.constant 0 : index
    %c0_55 = arith.constant 0 : index
    %85 = vector.load %arg5[%c14, %c0_54, %c0_55] : memref<16x32x64xbf16, #tpu.memory_space<vmem>>, vector<1x32x64xbf16>
    %86 = vector.shape_cast %85 : vector<1x32x64xbf16> to vector<32x64xbf16>
    %cst_56 = arith.constant dense<0.000000e+00> : vector<16x64xf32>
    %87 = tpu.matmul %84, %86, %cst_56 {dimension_numbers = #tpu.dot_dimension_numbers<[1], [0], [0], [1], [0, 0, 1, 1], [], []>} : vector<16x32xbf16>, vector<32x64xbf16>, vector<16x64xf32> -> vector<16x64xf32>
    %88 = arith.addf %83, %87 : vector<16x64xf32>
    %89 = vector.extract_strided_slice %12 {offsets = [240, 0], sizes = [16, 32], strides = [1, 1]} : vector<256x32xbf16> to vector<16x32xbf16>
    %c15 = arith.constant 15 : index
    %c0_57 = arith.constant 0 : index
    %c0_58 = arith.constant 0 : index
    %90 = vector.load %arg5[%c15, %c0_57, %c0_58] : memref<16x32x64xbf16, #tpu.memory_space<vmem>>, vector<1x32x64xbf16>
    %91 = vector.shape_cast %90 : vector<1x32x64xbf16> to vector<32x64xbf16>
    %cst_59 = arith.constant dense<0.000000e+00> : vector<16x64xf32>
    %92 = tpu.matmul %89, %91, %cst_59 {dimension_numbers = #tpu.dot_dimension_numbers<[1], [0], [0], [1], [0, 0, 1, 1], [], []>} : vector<16x32xbf16>, vector<32x64xbf16>, vector<16x64xf32> -> vector<16x64xf32>
    %93 = arith.addf %88, %92 : vector<16x64xf32>
    %c0_60 = arith.constant 0 : index
    %c0_61 = arith.constant 0 : index
    %94 = vector.load %arg6[%c0_60, %c0_61] : memref<1x64xf32, #tpu.memory_space<vmem>>, vector<1x64xf32>
    %95 = vector.broadcast %94 : vector<1x64xf32> to vector<16x64xf32>
    %96 = arith.addf %93, %95 : vector<16x64xf32>
    %cst_62 = arith.constant 0.000000e+00 : f32
    %97 = vector.broadcast %cst_62 : f32 to vector<16x64xf32>
    %98 = arith.maximumf %96, %97 : vector<16x64xf32>
    %99 = arith.truncf %98 : vector<16x64xf32> to vector<16x64xbf16>
    %c0_63 = arith.constant 0 : index
    %c0_64 = arith.constant 0 : index
    %100 = vector.load %arg7[%c0_63, %c0_64] : memref<144x16xbf16, #tpu.memory_space<vmem>>, vector<144x16xbf16>
    %cst_65 = arith.constant dense<0.000000e+00> : vector<144x64xf32>
    %101 = tpu.matmul %100, %99, %cst_65 {dimension_numbers = #tpu.dot_dimension_numbers<[1], [0], [0], [1], [0, 0, 1, 1], [], []>} : vector<144x16xbf16>, vector<16x64xbf16>, vector<144x64xf32> -> vector<144x64xf32>
    %102 = arith.truncf %101 : vector<144x64xf32> to vector<144x64xbf16>
    %cst_66 = arith.constant 0.000000e+00 : f32
    %103 = vector.broadcast %cst_66 : f32 to vector<16x64xf32>
    %104 = vector.extract_strided_slice %102 {offsets = [0, 0], sizes = [16, 64], strides = [1, 1]} : vector<144x64xbf16> to vector<16x64xbf16>
    %c0_67 = arith.constant 0 : index
    %c0_68 = arith.constant 0 : index
    %c0_69 = arith.constant 0 : index
    %105 = vector.load %arg8[%c0_67, %c0_68, %c0_69] : memref<9x64x64xbf16, #tpu.memory_space<vmem>>, vector<1x64x64xbf16>
    %106 = vector.shape_cast %105 : vector<1x64x64xbf16> to vector<64x64xbf16>
    %cst_70 = arith.constant dense<0.000000e+00> : vector<16x64xf32>
    %107 = tpu.matmul %104, %106, %cst_70 {dimension_numbers = #tpu.dot_dimension_numbers<[1], [0], [0], [1], [0, 0, 1, 1], [], []>} : vector<16x64xbf16>, vector<64x64xbf16>, vector<16x64xf32> -> vector<16x64xf32>
    %108 = arith.addf %103, %107 : vector<16x64xf32>
    %109 = vector.extract_strided_slice %102 {offsets = [16, 0], sizes = [16, 64], strides = [1, 1]} : vector<144x64xbf16> to vector<16x64xbf16>
    %c1_71 = arith.constant 1 : index
    %c0_72 = arith.constant 0 : index
    %c0_73 = arith.constant 0 : index
    %110 = vector.load %arg8[%c1_71, %c0_72, %c0_73] : memref<9x64x64xbf16, #tpu.memory_space<vmem>>, vector<1x64x64xbf16>
    %111 = vector.shape_cast %110 : vector<1x64x64xbf16> to vector<64x64xbf16>
    %cst_74 = arith.constant dense<0.000000e+00> : vector<16x64xf32>
    %112 = tpu.matmul %109, %111, %cst_74 {dimension_numbers = #tpu.dot_dimension_numbers<[1], [0], [0], [1], [0, 0, 1, 1], [], []>} : vector<16x64xbf16>, vector<64x64xbf16>, vector<16x64xf32> -> vector<16x64xf32>
    %113 = arith.addf %108, %112 : vector<16x64xf32>
    %114 = vector.extract_strided_slice %102 {offsets = [32, 0], sizes = [16, 64], strides = [1, 1]} : vector<144x64xbf16> to vector<16x64xbf16>
    %c2_75 = arith.constant 2 : index
    %c0_76 = arith.constant 0 : index
    %c0_77 = arith.constant 0 : index
    %115 = vector.load %arg8[%c2_75, %c0_76, %c0_77] : memref<9x64x64xbf16, #tpu.memory_space<vmem>>, vector<1x64x64xbf16>
    %116 = vector.shape_cast %115 : vector<1x64x64xbf16> to vector<64x64xbf16>
    %cst_78 = arith.constant dense<0.000000e+00> : vector<16x64xf32>
    %117 = tpu.matmul %114, %116, %cst_78 {dimension_numbers = #tpu.dot_dimension_numbers<[1], [0], [0], [1], [0, 0, 1, 1], [], []>} : vector<16x64xbf16>, vector<64x64xbf16>, vector<16x64xf32> -> vector<16x64xf32>
    %118 = arith.addf %113, %117 : vector<16x64xf32>
    %119 = vector.extract_strided_slice %102 {offsets = [48, 0], sizes = [16, 64], strides = [1, 1]} : vector<144x64xbf16> to vector<16x64xbf16>
    %c3_79 = arith.constant 3 : index
    %c0_80 = arith.constant 0 : index
    %c0_81 = arith.constant 0 : index
    %120 = vector.load %arg8[%c3_79, %c0_80, %c0_81] : memref<9x64x64xbf16, #tpu.memory_space<vmem>>, vector<1x64x64xbf16>
    %121 = vector.shape_cast %120 : vector<1x64x64xbf16> to vector<64x64xbf16>
    %cst_82 = arith.constant dense<0.000000e+00> : vector<16x64xf32>
    %122 = tpu.matmul %119, %121, %cst_82 {dimension_numbers = #tpu.dot_dimension_numbers<[1], [0], [0], [1], [0, 0, 1, 1], [], []>} : vector<16x64xbf16>, vector<64x64xbf16>, vector<16x64xf32> -> vector<16x64xf32>
    %123 = arith.addf %118, %122 : vector<16x64xf32>
    %124 = vector.extract_strided_slice %102 {offsets = [64, 0], sizes = [16, 64], strides = [1, 1]} : vector<144x64xbf16> to vector<16x64xbf16>
    %c4_83 = arith.constant 4 : index
    %c0_84 = arith.constant 0 : index
    %c0_85 = arith.constant 0 : index
    %125 = vector.load %arg8[%c4_83, %c0_84, %c0_85] : memref<9x64x64xbf16, #tpu.memory_space<vmem>>, vector<1x64x64xbf16>
    %126 = vector.shape_cast %125 : vector<1x64x64xbf16> to vector<64x64xbf16>
    %cst_86 = arith.constant dense<0.000000e+00> : vector<16x64xf32>
    %127 = tpu.matmul %124, %126, %cst_86 {dimension_numbers = #tpu.dot_dimension_numbers<[1], [0], [0], [1], [0, 0, 1, 1], [], []>} : vector<16x64xbf16>, vector<64x64xbf16>, vector<16x64xf32> -> vector<16x64xf32>
    %128 = arith.addf %123, %127 : vector<16x64xf32>
    %129 = vector.extract_strided_slice %102 {offsets = [80, 0], sizes = [16, 64], strides = [1, 1]} : vector<144x64xbf16> to vector<16x64xbf16>
    %c5_87 = arith.constant 5 : index
    %c0_88 = arith.constant 0 : index
    %c0_89 = arith.constant 0 : index
    %130 = vector.load %arg8[%c5_87, %c0_88, %c0_89] : memref<9x64x64xbf16, #tpu.memory_space<vmem>>, vector<1x64x64xbf16>
    %131 = vector.shape_cast %130 : vector<1x64x64xbf16> to vector<64x64xbf16>
    %cst_90 = arith.constant dense<0.000000e+00> : vector<16x64xf32>
    %132 = tpu.matmul %129, %131, %cst_90 {dimension_numbers = #tpu.dot_dimension_numbers<[1], [0], [0], [1], [0, 0, 1, 1], [], []>} : vector<16x64xbf16>, vector<64x64xbf16>, vector<16x64xf32> -> vector<16x64xf32>
    %133 = arith.addf %128, %132 : vector<16x64xf32>
    %134 = vector.extract_strided_slice %102 {offsets = [96, 0], sizes = [16, 64], strides = [1, 1]} : vector<144x64xbf16> to vector<16x64xbf16>
    %c6_91 = arith.constant 6 : index
    %c0_92 = arith.constant 0 : index
    %c0_93 = arith.constant 0 : index
    %135 = vector.load %arg8[%c6_91, %c0_92, %c0_93] : memref<9x64x64xbf16, #tpu.memory_space<vmem>>, vector<1x64x64xbf16>
    %136 = vector.shape_cast %135 : vector<1x64x64xbf16> to vector<64x64xbf16>
    %cst_94 = arith.constant dense<0.000000e+00> : vector<16x64xf32>
    %137 = tpu.matmul %134, %136, %cst_94 {dimension_numbers = #tpu.dot_dimension_numbers<[1], [0], [0], [1], [0, 0, 1, 1], [], []>} : vector<16x64xbf16>, vector<64x64xbf16>, vector<16x64xf32> -> vector<16x64xf32>
    %138 = arith.addf %133, %137 : vector<16x64xf32>
    %139 = vector.extract_strided_slice %102 {offsets = [112, 0], sizes = [16, 64], strides = [1, 1]} : vector<144x64xbf16> to vector<16x64xbf16>
    %c7_95 = arith.constant 7 : index
    %c0_96 = arith.constant 0 : index
    %c0_97 = arith.constant 0 : index
    %140 = vector.load %arg8[%c7_95, %c0_96, %c0_97] : memref<9x64x64xbf16, #tpu.memory_space<vmem>>, vector<1x64x64xbf16>
    %141 = vector.shape_cast %140 : vector<1x64x64xbf16> to vector<64x64xbf16>
    %cst_98 = arith.constant dense<0.000000e+00> : vector<16x64xf32>
    %142 = tpu.matmul %139, %141, %cst_98 {dimension_numbers = #tpu.dot_dimension_numbers<[1], [0], [0], [1], [0, 0, 1, 1], [], []>} : vector<16x64xbf16>, vector<64x64xbf16>, vector<16x64xf32> -> vector<16x64xf32>
    %143 = arith.addf %138, %142 : vector<16x64xf32>
    %144 = vector.extract_strided_slice %102 {offsets = [128, 0], sizes = [16, 64], strides = [1, 1]} : vector<144x64xbf16> to vector<16x64xbf16>
    %c8_99 = arith.constant 8 : index
    %c0_100 = arith.constant 0 : index
    %c0_101 = arith.constant 0 : index
    %145 = vector.load %arg8[%c8_99, %c0_100, %c0_101] : memref<9x64x64xbf16, #tpu.memory_space<vmem>>, vector<1x64x64xbf16>
    %146 = vector.shape_cast %145 : vector<1x64x64xbf16> to vector<64x64xbf16>
    %cst_102 = arith.constant dense<0.000000e+00> : vector<16x64xf32>
    %147 = tpu.matmul %144, %146, %cst_102 {dimension_numbers = #tpu.dot_dimension_numbers<[1], [0], [0], [1], [0, 0, 1, 1], [], []>} : vector<16x64xbf16>, vector<64x64xbf16>, vector<16x64xf32> -> vector<16x64xf32>
    %148 = arith.addf %143, %147 : vector<16x64xf32>
    %c0_103 = arith.constant 0 : index
    %c0_104 = arith.constant 0 : index
    %149 = vector.load %arg9[%c0_103, %c0_104] : memref<1x64xf32, #tpu.memory_space<vmem>>, vector<1x64xf32>
    %150 = vector.broadcast %149 : vector<1x64xf32> to vector<16x64xf32>
    %151 = arith.addf %148, %150 : vector<16x64xf32>
    %cst_105 = arith.constant 0.000000e+00 : f32
    %152 = vector.broadcast %cst_105 : f32 to vector<16x64xf32>
    %153 = arith.maximumf %151, %152 : vector<16x64xf32>
    %154 = arith.truncf %153 : vector<16x64xf32> to vector<16x64xbf16>
    %cst_106 = arith.constant 0.000000e+00 : f32
    %155 = vector.broadcast %cst_106 : f32 to vector<1x512xf32>
    %156 = vector.extract_strided_slice %154 {offsets = [0, 0], sizes = [1, 64], strides = [1, 1]} : vector<16x64xbf16> to vector<1x64xbf16>
    %c0_107 = arith.constant 0 : index
    %c0_108 = arith.constant 0 : index
    %c0_109 = arith.constant 0 : index
    %157 = vector.load %arg10[%c0_107, %c0_108, %c0_109] : memref<16x64x512xbf16, #tpu.memory_space<vmem>>, vector<1x64x512xbf16>
    %158 = vector.shape_cast %157 : vector<1x64x512xbf16> to vector<64x512xbf16>
    %cst_110 = arith.constant dense<0.000000e+00> : vector<1x512xf32>
    %159 = tpu.matmul %156, %158, %cst_110 {dimension_numbers = #tpu.dot_dimension_numbers<[1], [0], [0], [1], [0, 0, 1, 1], [], []>} : vector<1x64xbf16>, vector<64x512xbf16>, vector<1x512xf32> -> vector<1x512xf32>
    %160 = arith.addf %155, %159 : vector<1x512xf32>
    %161 = vector.extract_strided_slice %154 {offsets = [1, 0], sizes = [1, 64], strides = [1, 1]} : vector<16x64xbf16> to vector<1x64xbf16>
    %c1_111 = arith.constant 1 : index
    %c0_112 = arith.constant 0 : index
    %c0_113 = arith.constant 0 : index
    %162 = vector.load %arg10[%c1_111, %c0_112, %c0_113] : memref<16x64x512xbf16, #tpu.memory_space<vmem>>, vector<1x64x512xbf16>
    %163 = vector.shape_cast %162 : vector<1x64x512xbf16> to vector<64x512xbf16>
    %cst_114 = arith.constant dense<0.000000e+00> : vector<1x512xf32>
    %164 = tpu.matmul %161, %163, %cst_114 {dimension_numbers = #tpu.dot_dimension_numbers<[1], [0], [0], [1], [0, 0, 1, 1], [], []>} : vector<1x64xbf16>, vector<64x512xbf16>, vector<1x512xf32> -> vector<1x512xf32>
    %165 = arith.addf %160, %164 : vector<1x512xf32>
    %166 = vector.extract_strided_slice %154 {offsets = [2, 0], sizes = [1, 64], strides = [1, 1]} : vector<16x64xbf16> to vector<1x64xbf16>
    %c2_115 = arith.constant 2 : index
    %c0_116 = arith.constant 0 : index
    %c0_117 = arith.constant 0 : index
    %167 = vector.load %arg10[%c2_115, %c0_116, %c0_117] : memref<16x64x512xbf16, #tpu.memory_space<vmem>>, vector<1x64x512xbf16>
    %168 = vector.shape_cast %167 : vector<1x64x512xbf16> to vector<64x512xbf16>
    %cst_118 = arith.constant dense<0.000000e+00> : vector<1x512xf32>
    %169 = tpu.matmul %166, %168, %cst_118 {dimension_numbers = #tpu.dot_dimension_numbers<[1], [0], [0], [1], [0, 0, 1, 1], [], []>} : vector<1x64xbf16>, vector<64x512xbf16>, vector<1x512xf32> -> vector<1x512xf32>
    %170 = arith.addf %165, %169 : vector<1x512xf32>
    %171 = vector.extract_strided_slice %154 {offsets = [3, 0], sizes = [1, 64], strides = [1, 1]} : vector<16x64xbf16> to vector<1x64xbf16>
    %c3_119 = arith.constant 3 : index
    %c0_120 = arith.constant 0 : index
    %c0_121 = arith.constant 0 : index
    %172 = vector.load %arg10[%c3_119, %c0_120, %c0_121] : memref<16x64x512xbf16, #tpu.memory_space<vmem>>, vector<1x64x512xbf16>
    %173 = vector.shape_cast %172 : vector<1x64x512xbf16> to vector<64x512xbf16>
    %cst_122 = arith.constant dense<0.000000e+00> : vector<1x512xf32>
    %174 = tpu.matmul %171, %173, %cst_122 {dimension_numbers = #tpu.dot_dimension_numbers<[1], [0], [0], [1], [0, 0, 1, 1], [], []>} : vector<1x64xbf16>, vector<64x512xbf16>, vector<1x512xf32> -> vector<1x512xf32>
    %175 = arith.addf %170, %174 : vector<1x512xf32>
    %176 = vector.extract_strided_slice %154 {offsets = [4, 0], sizes = [1, 64], strides = [1, 1]} : vector<16x64xbf16> to vector<1x64xbf16>
    %c4_123 = arith.constant 4 : index
    %c0_124 = arith.constant 0 : index
    %c0_125 = arith.constant 0 : index
    %177 = vector.load %arg10[%c4_123, %c0_124, %c0_125] : memref<16x64x512xbf16, #tpu.memory_space<vmem>>, vector<1x64x512xbf16>
    %178 = vector.shape_cast %177 : vector<1x64x512xbf16> to vector<64x512xbf16>
    %cst_126 = arith.constant dense<0.000000e+00> : vector<1x512xf32>
    %179 = tpu.matmul %176, %178, %cst_126 {dimension_numbers = #tpu.dot_dimension_numbers<[1], [0], [0], [1], [0, 0, 1, 1], [], []>} : vector<1x64xbf16>, vector<64x512xbf16>, vector<1x512xf32> -> vector<1x512xf32>
    %180 = arith.addf %175, %179 : vector<1x512xf32>
    %181 = vector.extract_strided_slice %154 {offsets = [5, 0], sizes = [1, 64], strides = [1, 1]} : vector<16x64xbf16> to vector<1x64xbf16>
    %c5_127 = arith.constant 5 : index
    %c0_128 = arith.constant 0 : index
    %c0_129 = arith.constant 0 : index
    %182 = vector.load %arg10[%c5_127, %c0_128, %c0_129] : memref<16x64x512xbf16, #tpu.memory_space<vmem>>, vector<1x64x512xbf16>
    %183 = vector.shape_cast %182 : vector<1x64x512xbf16> to vector<64x512xbf16>
    %cst_130 = arith.constant dense<0.000000e+00> : vector<1x512xf32>
    %184 = tpu.matmul %181, %183, %cst_130 {dimension_numbers = #tpu.dot_dimension_numbers<[1], [0], [0], [1], [0, 0, 1, 1], [], []>} : vector<1x64xbf16>, vector<64x512xbf16>, vector<1x512xf32> -> vector<1x512xf32>
    %185 = arith.addf %180, %184 : vector<1x512xf32>
    %186 = vector.extract_strided_slice %154 {offsets = [6, 0], sizes = [1, 64], strides = [1, 1]} : vector<16x64xbf16> to vector<1x64xbf16>
    %c6_131 = arith.constant 6 : index
    %c0_132 = arith.constant 0 : index
    %c0_133 = arith.constant 0 : index
    %187 = vector.load %arg10[%c6_131, %c0_132, %c0_133] : memref<16x64x512xbf16, #tpu.memory_space<vmem>>, vector<1x64x512xbf16>
    %188 = vector.shape_cast %187 : vector<1x64x512xbf16> to vector<64x512xbf16>
    %cst_134 = arith.constant dense<0.000000e+00> : vector<1x512xf32>
    %189 = tpu.matmul %186, %188, %cst_134 {dimension_numbers = #tpu.dot_dimension_numbers<[1], [0], [0], [1], [0, 0, 1, 1], [], []>} : vector<1x64xbf16>, vector<64x512xbf16>, vector<1x512xf32> -> vector<1x512xf32>
    %190 = arith.addf %185, %189 : vector<1x512xf32>
    %191 = vector.extract_strided_slice %154 {offsets = [7, 0], sizes = [1, 64], strides = [1, 1]} : vector<16x64xbf16> to vector<1x64xbf16>
    %c7_135 = arith.constant 7 : index
    %c0_136 = arith.constant 0 : index
    %c0_137 = arith.constant 0 : index
    %192 = vector.load %arg10[%c7_135, %c0_136, %c0_137] : memref<16x64x512xbf16, #tpu.memory_space<vmem>>, vector<1x64x512xbf16>
    %193 = vector.shape_cast %192 : vector<1x64x512xbf16> to vector<64x512xbf16>
    %cst_138 = arith.constant dense<0.000000e+00> : vector<1x512xf32>
    %194 = tpu.matmul %191, %193, %cst_138 {dimension_numbers = #tpu.dot_dimension_numbers<[1], [0], [0], [1], [0, 0, 1, 1], [], []>} : vector<1x64xbf16>, vector<64x512xbf16>, vector<1x512xf32> -> vector<1x512xf32>
    %195 = arith.addf %190, %194 : vector<1x512xf32>
    %196 = vector.extract_strided_slice %154 {offsets = [8, 0], sizes = [1, 64], strides = [1, 1]} : vector<16x64xbf16> to vector<1x64xbf16>
    %c8_139 = arith.constant 8 : index
    %c0_140 = arith.constant 0 : index
    %c0_141 = arith.constant 0 : index
    %197 = vector.load %arg10[%c8_139, %c0_140, %c0_141] : memref<16x64x512xbf16, #tpu.memory_space<vmem>>, vector<1x64x512xbf16>
    %198 = vector.shape_cast %197 : vector<1x64x512xbf16> to vector<64x512xbf16>
    %cst_142 = arith.constant dense<0.000000e+00> : vector<1x512xf32>
    %199 = tpu.matmul %196, %198, %cst_142 {dimension_numbers = #tpu.dot_dimension_numbers<[1], [0], [0], [1], [0, 0, 1, 1], [], []>} : vector<1x64xbf16>, vector<64x512xbf16>, vector<1x512xf32> -> vector<1x512xf32>
    %200 = arith.addf %195, %199 : vector<1x512xf32>
    %201 = vector.extract_strided_slice %154 {offsets = [9, 0], sizes = [1, 64], strides = [1, 1]} : vector<16x64xbf16> to vector<1x64xbf16>
    %c9_143 = arith.constant 9 : index
    %c0_144 = arith.constant 0 : index
    %c0_145 = arith.constant 0 : index
    %202 = vector.load %arg10[%c9_143, %c0_144, %c0_145] : memref<16x64x512xbf16, #tpu.memory_space<vmem>>, vector<1x64x512xbf16>
    %203 = vector.shape_cast %202 : vector<1x64x512xbf16> to vector<64x512xbf16>
    %cst_146 = arith.constant dense<0.000000e+00> : vector<1x512xf32>
    %204 = tpu.matmul %201, %203, %cst_146 {dimension_numbers = #tpu.dot_dimension_numbers<[1], [0], [0], [1], [0, 0, 1, 1], [], []>} : vector<1x64xbf16>, vector<64x512xbf16>, vector<1x512xf32> -> vector<1x512xf32>
    %205 = arith.addf %200, %204 : vector<1x512xf32>
    %206 = vector.extract_strided_slice %154 {offsets = [10, 0], sizes = [1, 64], strides = [1, 1]} : vector<16x64xbf16> to vector<1x64xbf16>
    %c10_147 = arith.constant 10 : index
    %c0_148 = arith.constant 0 : index
    %c0_149 = arith.constant 0 : index
    %207 = vector.load %arg10[%c10_147, %c0_148, %c0_149] : memref<16x64x512xbf16, #tpu.memory_space<vmem>>, vector<1x64x512xbf16>
    %208 = vector.shape_cast %207 : vector<1x64x512xbf16> to vector<64x512xbf16>
    %cst_150 = arith.constant dense<0.000000e+00> : vector<1x512xf32>
    %209 = tpu.matmul %206, %208, %cst_150 {dimension_numbers = #tpu.dot_dimension_numbers<[1], [0], [0], [1], [0, 0, 1, 1], [], []>} : vector<1x64xbf16>, vector<64x512xbf16>, vector<1x512xf32> -> vector<1x512xf32>
    %210 = arith.addf %205, %209 : vector<1x512xf32>
    %211 = vector.extract_strided_slice %154 {offsets = [11, 0], sizes = [1, 64], strides = [1, 1]} : vector<16x64xbf16> to vector<1x64xbf16>
    %c11_151 = arith.constant 11 : index
    %c0_152 = arith.constant 0 : index
    %c0_153 = arith.constant 0 : index
    %212 = vector.load %arg10[%c11_151, %c0_152, %c0_153] : memref<16x64x512xbf16, #tpu.memory_space<vmem>>, vector<1x64x512xbf16>
    %213 = vector.shape_cast %212 : vector<1x64x512xbf16> to vector<64x512xbf16>
    %cst_154 = arith.constant dense<0.000000e+00> : vector<1x512xf32>
    %214 = tpu.matmul %211, %213, %cst_154 {dimension_numbers = #tpu.dot_dimension_numbers<[1], [0], [0], [1], [0, 0, 1, 1], [], []>} : vector<1x64xbf16>, vector<64x512xbf16>, vector<1x512xf32> -> vector<1x512xf32>
    %215 = arith.addf %210, %214 : vector<1x512xf32>
    %216 = vector.extract_strided_slice %154 {offsets = [12, 0], sizes = [1, 64], strides = [1, 1]} : vector<16x64xbf16> to vector<1x64xbf16>
    %c12_155 = arith.constant 12 : index
    %c0_156 = arith.constant 0 : index
    %c0_157 = arith.constant 0 : index
    %217 = vector.load %arg10[%c12_155, %c0_156, %c0_157] : memref<16x64x512xbf16, #tpu.memory_space<vmem>>, vector<1x64x512xbf16>
    %218 = vector.shape_cast %217 : vector<1x64x512xbf16> to vector<64x512xbf16>
    %cst_158 = arith.constant dense<0.000000e+00> : vector<1x512xf32>
    %219 = tpu.matmul %216, %218, %cst_158 {dimension_numbers = #tpu.dot_dimension_numbers<[1], [0], [0], [1], [0, 0, 1, 1], [], []>} : vector<1x64xbf16>, vector<64x512xbf16>, vector<1x512xf32> -> vector<1x512xf32>
    %220 = arith.addf %215, %219 : vector<1x512xf32>
    %221 = vector.extract_strided_slice %154 {offsets = [13, 0], sizes = [1, 64], strides = [1, 1]} : vector<16x64xbf16> to vector<1x64xbf16>
    %c13_159 = arith.constant 13 : index
    %c0_160 = arith.constant 0 : index
    %c0_161 = arith.constant 0 : index
    %222 = vector.load %arg10[%c13_159, %c0_160, %c0_161] : memref<16x64x512xbf16, #tpu.memory_space<vmem>>, vector<1x64x512xbf16>
    %223 = vector.shape_cast %222 : vector<1x64x512xbf16> to vector<64x512xbf16>
    %cst_162 = arith.constant dense<0.000000e+00> : vector<1x512xf32>
    %224 = tpu.matmul %221, %223, %cst_162 {dimension_numbers = #tpu.dot_dimension_numbers<[1], [0], [0], [1], [0, 0, 1, 1], [], []>} : vector<1x64xbf16>, vector<64x512xbf16>, vector<1x512xf32> -> vector<1x512xf32>
    %225 = arith.addf %220, %224 : vector<1x512xf32>
    %226 = vector.extract_strided_slice %154 {offsets = [14, 0], sizes = [1, 64], strides = [1, 1]} : vector<16x64xbf16> to vector<1x64xbf16>
    %c14_163 = arith.constant 14 : index
    %c0_164 = arith.constant 0 : index
    %c0_165 = arith.constant 0 : index
    %227 = vector.load %arg10[%c14_163, %c0_164, %c0_165] : memref<16x64x512xbf16, #tpu.memory_space<vmem>>, vector<1x64x512xbf16>
    %228 = vector.shape_cast %227 : vector<1x64x512xbf16> to vector<64x512xbf16>
    %cst_166 = arith.constant dense<0.000000e+00> : vector<1x512xf32>
    %229 = tpu.matmul %226, %228, %cst_166 {dimension_numbers = #tpu.dot_dimension_numbers<[1], [0], [0], [1], [0, 0, 1, 1], [], []>} : vector<1x64xbf16>, vector<64x512xbf16>, vector<1x512xf32> -> vector<1x512xf32>
    %230 = arith.addf %225, %229 : vector<1x512xf32>
    %231 = vector.extract_strided_slice %154 {offsets = [15, 0], sizes = [1, 64], strides = [1, 1]} : vector<16x64xbf16> to vector<1x64xbf16>
    %c15_167 = arith.constant 15 : index
    %c0_168 = arith.constant 0 : index
    %c0_169 = arith.constant 0 : index
    %232 = vector.load %arg10[%c15_167, %c0_168, %c0_169] : memref<16x64x512xbf16, #tpu.memory_space<vmem>>, vector<1x64x512xbf16>
    %233 = vector.shape_cast %232 : vector<1x64x512xbf16> to vector<64x512xbf16>
    %cst_170 = arith.constant dense<0.000000e+00> : vector<1x512xf32>
    %234 = tpu.matmul %231, %233, %cst_170 {dimension_numbers = #tpu.dot_dimension_numbers<[1], [0], [0], [1], [0, 0, 1, 1], [], []>} : vector<1x64xbf16>, vector<64x512xbf16>, vector<1x512xf32> -> vector<1x512xf32>
    %235 = arith.addf %230, %234 : vector<1x512xf32>
    %c0_171 = arith.constant 0 : index
    %c0_172 = arith.constant 0 : index
    %236 = vector.load %arg11[%c0_171, %c0_172] : memref<1x512xf32, #tpu.memory_space<vmem>>, vector<1x512xf32>
    %237 = arith.addf %235, %236 : vector<1x512xf32>
    %cst_173 = arith.constant 0.000000e+00 : f32
    %238 = vector.broadcast %cst_173 : f32 to vector<1x512xf32>
    %239 = arith.maximumf %237, %238 : vector<1x512xf32>
    %c0_174 = arith.constant 0 : index
    %c0_175 = arith.constant 0 : index
    %c0_176 = arith.constant 0 : index
    %240 = vector.load %arg12[%c0_174, %c0_175, %c0_176] : memref<1x1x512xf32, #tpu.memory_space<vmem>>, vector<1x1x512xf32>
    %241 = vector.shape_cast %240 : vector<1x1x512xf32> to vector<1x512xf32>
    %242 = vector.shape_cast %239 : vector<1x512xf32> to vector<1x1x512xf32>
    tpu.vector_store %arg12[%c0_174, %c0_175, %c0_176], %242 {strides = array<i32>} : memref<1x1x512xf32, #tpu.memory_space<vmem>>, vector<1x1x512xf32>,
    return
  }
  func.func @transform_0(%arg0: i32) -> (i32, i32, i32) {
    %c0_i32 = arith.constant 0 : i32
    %c0_i32_0 = arith.constant 0 : i32
    %c0_i32_1 = arith.constant 0 : i32
    return %arg0, %c0_i32, %c0_i32_0 : i32, i32, i32
  }
  func.func @transform_1(%arg0: i32) -> (i32, i32) {
    %c0_i32 = arith.constant 0 : i32
    %c0_i32_0 = arith.constant 0 : i32
    %c0_i32_1 = arith.constant 0 : i32
    return %c0_i32, %c0_i32_0 : i32, i32
  }
  func.func @transform_2(%arg0: i32) -> (i32, i32) {
    %c0_i32 = arith.constant 0 : i32
    %c0_i32_0 = arith.constant 0 : i32
    %c0_i32_1 = arith.constant 0 : i32
    return %c0_i32, %c0_i32_0 : i32, i32
  }
  func.func @transform_3(%arg0: i32) -> (i32, i32) {
    %c0_i32 = arith.constant 0 : i32
    %c0_i32_0 = arith.constant 0 : i32
    %c0_i32_1 = arith.constant 0 : i32
    return %c0_i32, %c0_i32_0 : i32, i32
  }
  func.func @transform_4(%arg0: i32) -> (i32, i32, i32) {
    %c0_i32 = arith.constant 0 : i32
    %c0_i32_0 = arith.constant 0 : i32
    %c0_i32_1 = arith.constant 0 : i32
    %c0_i32_2 = arith.constant 0 : i32
    return %c0_i32, %c0_i32_0, %c0_i32_1 : i32, i32, i32
  }
  func.func @transform_5(%arg0: i32) -> (i32, i32) {
    %c0_i32 = arith.constant 0 : i32
    %c0_i32_0 = arith.constant 0 : i32
    %c0_i32_1 = arith.constant 0 : i32
    return %c0_i32, %c0_i32_0 : i32, i32
  }
  func.func @transform_6(%arg0: i32) -> (i32, i32) {
    %c0_i32 = arith.constant 0 : i32
    %c0_i32_0 = arith.constant 0 : i32
    %c0_i32_1 = arith.constant 0 : i32
    return %c0_i32, %c0_i32_0 : i32, i32
  }
  func.func @transform_7(%arg0: i32) -> (i32, i32, i32) {
    %c0_i32 = arith.constant 0 : i32
    %c0_i32_0 = arith.constant 0 : i32
    %c0_i32_1 = arith.constant 0 : i32
    %c0_i32_2 = arith.constant 0 : i32
    return %c0_i32, %c0_i32_0, %c0_i32_1 : i32, i32, i32
  }
  func.func @transform_8(%arg0: i32) -> (i32, i32) {
    %c0_i32 = arith.constant 0 : i32
    %c0_i32_0 = arith.constant 0 : i32
    %c0_i32_1 = arith.constant 0 : i32
    return %c0_i32, %c0_i32_0 : i32, i32
  }
  func.func @transform_9(%arg0: i32) -> (i32, i32, i32) {
    %c0_i32 = arith.constant 0 : i32
    %c0_i32_0 = arith.constant 0 : i32
    %c0_i32_1 = arith.constant 0 : i32
    %c0_i32_2 = arith.constant 0 : i32
    return %c0_i32, %c0_i32_0, %c0_i32_1 : i32, i32, i32
  }
  func.func @transform_10(%arg0: i32) -> (i32, i32) {
    %c0_i32 = arith.constant 0 : i32
    %c0_i32_0 = arith.constant 0 : i32
    %c0_i32_1 = arith.constant 0 : i32
    return %c0_i32, %c0_i32_0 : i32, i32
  }
  func.func @transform_11(%arg0: i32) -> (i32, i32, i32) {
    %c0_i32 = arith.constant 0 : i32
    %c0_i32_0 = arith.constant 0 : i32
    %c0_i32_1 = arith.constant 0 : i32
    return %arg0, %c0_i32, %c0_i32_0 : i32, i32, i32
  }
}

</mosaic_0001>

<llo_original>
// kernel: cnn_feature_extractor_forward.1
$region0: #{cnn_feature_extractor_forward.1}
  #allocation0 [shape = 'u32[]', space=smem, size = 0x4, offset = 0x4, fixed_abs, tag = 'smem constant byte address 0x4 - core index']
  #allocation1 [shape = 'u32[144,128]{1,0:T(1,128)}', space=vmem, size = 0x12000, scoped, tag = 'internal scratch']
  %s0 = inlined_call_operand.vmem [shape: bf16[2,64,384], index: 0, kind: input, shape index: {}]
  %s1 = inlined_call_operand.vmem [shape: bf16[384,32], index: 1, kind: input, shape index: {}]
  %s2 = inlined_call_operand.vmem [shape: f32[1,32], index: 2, kind: input, shape index: {}]
  %s3 = inlined_call_operand.vmem [shape: bf16[256,64], index: 3, kind: input, shape index: {}]
  %s4 = inlined_call_operand.vmem [shape: bf16[16,32,64], index: 4, kind: input, shape index: {}]
  %s5 = inlined_call_operand.vmem [shape: f32[1,64], index: 5, kind: input, shape index: {}]
  %s6 = inlined_call_operand.vmem [shape: bf16[144,16], index: 6, kind: input, shape index: {}]
  %s7 = inlined_call_operand.vmem [shape: bf16[9,64,64], index: 7, kind: input, shape index: {}]
  %s8 = inlined_call_operand.vmem [shape: f32[1,64], index: 8, kind: input, shape index: {}]
  %s9 = inlined_call_operand.vmem [shape: bf16[16,64,512], index: 9, kind: input, shape index: {}]
  %s10 = inlined_call_operand.vmem [shape: f32[1,512], index: 10, kind: input, shape index: {}]
  %s11 = inlined_call_operand.vmem [shape: f32[2,1,512], index: 11, kind: output, shape index: {}]
  %s12 = sld [smem:[#allocation0]]
  $region77: #{cnn_feature_extractor_forward.1} parent=0
    _
  %s14 = ssub.s32 1, %s12
  %s15 = scalar_select 0, %s14, %s12
  loop: start=0, step=1, limit=4
  $region2: #{cnn_feature_extractor_forward.1} parent=0 // loop_pre_header
    _
  $region3: #{cnn_feature_extractor_forward.1} parent=0 // loop_header
    %s17 = sphi 0, %s21
    %p18 = scmp.ge.s32.totalorder %s17, 4
    %s27 = sphi 0, %s29
    %s30 = sphi 0, %s27
    %s31 = sphi 0, %s30
    %s47 = sphi 0, %s31
    %s51 = sphi 0, %s51
    %s53 = sphi 0, %s51
    %s54 = sphi 0, %s53
    %s68 = sphi 0, %s54
    %s72 = sphi 0, %s72
    %s74 = sphi 0, %s72
    %s75 = sphi 0, %s74
    %s89 = sphi 0, %s75
    %s93 = sphi 0, %s93
    %s95 = sphi 0, %s93
    %s96 = sphi 0, %s95
    %s110 = sphi 0, %s96
    %s114 = sphi 0, %s114
    %s116 = sphi 0, %s114
    %s117 = sphi 0, %s116
    %s131 = sphi 0, %s117
    %s135 = sphi 0, %s135
    %s137 = sphi 0, %s135
    %s138 = sphi 0, %s137
    %s152 = sphi 0, %s138
    %s156 = sphi 0, %s156
    %s158 = sphi 0, %s156
    %s159 = sphi 0, %s158
    %s173 = sphi 0, %s159
    %s177 = sphi 0, %s177
    %s179 = sphi 0, %s177
    %s180 = sphi 0, %s179
    %s194 = sphi 0, %s180
    %s198 = sphi 0, %s198
    %s200 = sphi 0, %s198
    %s201 = sphi 0, %s200
    %s215 = sphi 0, %s201
    %s219 = sphi 0, %s219
    %s221 = sphi 0, %s219
    %s222 = sphi 0, %s221
    %s236 = sphi 0, %s222
    %s240 = sphi 0, %s240
    %s242 = sphi 0, %s240
    %s243 = sphi 0, %s242
    %s257 = sphi 0, %s243
    %s263 = sphi 0, %s265
    %s266 = sphi 0, %s263
    %s267 = sphi 0, %s266
    %s283 = sphi 0, %s267
  $region4: #{cnn_feature_extractor_forward.1} parent=0 // loop_header_branch
    %20 = sbr.rel (%p18) target = $region8
  $region5: #{cnn_feature_extractor_forward.1} parent=0 // loop_body
    %s22 = ssub.s32 %s17, 1
    %s23 = ssub.s32 %s17, 2
    %s24 = sadd.s32 %s17, 1
    %s25 = ssub.s32 %s17, %s24
    %p26 = scmp.eq.s32.totalorder %s25, 0
    %s28 = sadd.s32 %s27, 1
    %s29 = scalar_select %p26, %s27, %s28
    %p32 = pneg %p26
    %p33 = scmp.eq.s32.totalorder %s17, 1
    %p34 = por %p32, %p33
    %p35 = scmp.ne.s32.totalorder %s27, %s30
    %p36 = scmp.eq.s32.totalorder %s17, 0
    %p37 = por %p35, %p36
    %p38 = scmp.ne.s32.totalorder %s27, %s30
    %p39 = scmp.eq.s32.totalorder %s22, 1
    %p40 = por %p38, %p39
    %p41 = scmp.ne.s32.totalorder %s30, %s31
    %p42 = scmp.eq.s32.totalorder %s22, 0
    %p43 = por %p41, %p42
    %p44 = scmp.ne.s32.totalorder %s30, %s31
    %p45 = scmp.eq.s32.totalorder %s23, 1
    %p46 = por %p44, %p45
    %p48 = scmp.ne.s32.totalorder %s31, %s47
    %p49 = scmp.eq.s32.totalorder %s23, 0
    %p50 = por %p48, %p49
    %s52 = sadd.s32 %s51, 1
    %p55 = scmp.eq.s32.totalorder %s17, 1
    %p56 = scmp.ne.s32.totalorder %s51, %s53
    %p57 = scmp.eq.s32.totalorder %s17, 0
    %p58 = por %p56, %p57
    %p59 = scmp.ne.s32.totalorder %s51, %s53
    %p60 = scmp.eq.s32.totalorder %s22, 1
    %p61 = por %p59, %p60
    %p62 = scmp.ne.s32.totalorder %s53, %s54
    %p63 = scmp.eq.s32.totalorder %s22, 0
    %p64 = por %p62, %p63
    %p65 = scmp.ne.s32.totalorder %s53, %s54
    %p66 = scmp.eq.s32.totalorder %s23, 1
    %p67 = por %p65, %p66
    %p69 = scmp.ne.s32.totalorder %s54, %s68
    %p70 = scmp.eq.s32.totalorder %s23, 0
    %p71 = por %p69, %p70
    %s73 = sadd.s32 %s72, 1
    %p76 = scmp.eq.s32.totalorder %s17, 1
    %p77 = scmp.ne.s32.totalorder %s72, %s74
    %p78 = scmp.eq.s32.totalorder %s17, 0
    %p79 = por %p77, %p78
    %p80 = scmp.ne.s32.totalorder %s72, %s74
    %p81 = scmp.eq.s32.totalorder %s22, 1
    %p82 = por %p80, %p81
    %p83 = scmp.ne.s32.totalorder %s74, %s75
    %p84 = scmp.eq.s32.totalorder %s22, 0
    %p85 = por %p83, %p84
    %p86 = scmp.ne.s32.totalorder %s74, %s75
    %p87 = scmp.eq.s32.totalorder %s23, 1
    %p88 = por %p86, %p87
    %p90 = scmp.ne.s32.totalorder %s75, %s89
    %p91 = scmp.eq.s32.totalorder %s23, 0
    %p92 = por %p90, %p91
    %s94 = sadd.s32 %s93, 1
    %p97 = scmp.eq.s32.totalorder %s17, 1
    %p98 = scmp.ne.s32.totalorder %s93, %s95
    %p99 = scmp.eq.s32.totalorder %s17, 0
    %p100 = por %p98, %p99
    %p101 = scmp.ne.s32.totalorder %s93, %s95
    %p102 = scmp.eq.s32.totalorder %s22, 1
    %p103 = por %p101, %p102
    %p104 = scmp.ne.s32.totalorder %s95, %s96
    %p105 = scmp.eq.s32.totalorder %s22, 0
    %p106 = por %p104, %p105
    %p107 = scmp.ne.s32.totalorder %s95, %s96
    %p108 = scmp.eq.s32.totalorder %s23, 1
    %p109 = por %p107, %p108
    %p111 = scmp.ne.s32.totalorder %s96, %s110
    %p112 = scmp.eq.s32.totalorder %s23, 0
    %p113 = por %p111, %p112
    %s115 = sadd.s32 %s114, 1
    %p118 = scmp.eq.s32.totalorder %s17, 1
    %p119 = scmp.ne.s32.totalorder %s114, %s116
    %p120 = scmp.eq.s32.totalorder %s17, 0
    %p121 = por %p119, %p120
    %p122 = scmp.ne.s32.totalorder %s114, %s116
    %p123 = scmp.eq.s32.totalorder %s22, 1
    %p124 = por %p122, %p123
    %p125 = scmp.ne.s32.totalorder %s116, %s117
    %p126 = scmp.eq.s32.totalorder %s22, 0
    %p127 = por %p125, %p126
    %p128 = scmp.ne.s32.totalorder %s116, %s117
    %p129 = scmp.eq.s32.totalorder %s23, 1
    %p130 = por %p128, %p129
    %p132 = scmp.ne.s32.totalorder %s117, %s131
    %p133 = scmp.eq.s32.totalorder %s23, 0
    %p134 = por %p132, %p133
    %s136 = sadd.s32 %s135, 1
    %p139 = scmp.eq.s32.totalorder %s17, 1
    %p140 = scmp.ne.s32.totalorder %s135, %s137
    %p141 = scmp.eq.s32.totalorder %s17, 0
    %p142 = por %p140, %p141
    %p143 = scmp.ne.s32.totalorder %s135, %s137
    %p144 = scmp.eq.s32.totalorder %s22, 1
    %p145 = por %p143, %p144
    %p146 = scmp.ne.s32.totalorder %s137, %s138
    %p147 = scmp.eq.s32.totalorder %s22, 0
    %p148 = por %p146, %p147
    %p149 = scmp.ne.s32.totalorder %s137, %s138
    %p150 = scmp.eq.s32.totalorder %s23, 1
    %p151 = por %p149, %p150
    %p153 = scmp.ne.s32.totalorder %s138, %s152
    %p154 = scmp.eq.s32.totalorder %s23, 0
    %p155 = por %p153, %p154
    %s157 = sadd.s32 %s156, 1
    %p160 = scmp.eq.s32.totalorder %s17, 1
    %p161 = scmp.ne.s32.totalorder %s156, %s158
    %p162 = scmp.eq.s32.totalorder %s17, 0
    %p163 = por %p161, %p162
    %p164 = scmp.ne.s32.totalorder %s156, %s158
    %p165 = scmp.eq.s32.totalorder %s22, 1
    %p166 = por %p164, %p165
    %p167 = scmp.ne.s32.totalorder %s158, %s159
    %p168 = scmp.eq.s32.totalorder %s22, 0
    %p169 = por %p167, %p168
    %p170 = scmp.ne.s32.totalorder %s158, %s159
    %p171 = scmp.eq.s32.totalorder %s23, 1
    %p172 = por %p170, %p171
    %p174 = scmp.ne.s32.totalorder %s159, %s173
    %p175 = scmp.eq.s32.totalorder %s23, 0
    %p176 = por %p174, %p175
    %s178 = sadd.s32 %s177, 1
    %p181 = scmp.eq.s32.totalorder %s17, 1
    %p182 = scmp.ne.s32.totalorder %s177, %s179
    %p183 = scmp.eq.s32.totalorder %s17, 0
    %p184 = por %p182, %p183
    %p185 = scmp.ne.s32.totalorder %s177, %s179
    %p186 = scmp.eq.s32.totalorder %s22, 1
    %p187 = por %p185, %p186
    %p188 = scmp.ne.s32.totalorder %s179, %s180
    %p189 = scmp.eq.s32.totalorder %s22, 0
    %p190 = por %p188, %p189
    %p191 = scmp.ne.s32.totalorder %s179, %s180
    %p192 = scmp.eq.s32.totalorder %s23, 1
    %p193 = por %p191, %p192
    %p195 = scmp.ne.s32.totalorder %s180, %s194
    %p196 = scmp.eq.s32.totalorder %s23, 0
    %p197 = por %p195, %p196
    %s199 = sadd.s32 %s198, 1
    %p202 = scmp.eq.s32.totalorder %s17, 1
    %p203 = scmp.ne.s32.totalorder %s198, %s200
    %p204 = scmp.eq.s32.totalorder %s17, 0
    %p205 = por %p203, %p204
    %p206 = scmp.ne.s32.totalorder %s198, %s200
    %p207 = scmp.eq.s32.totalorder %s22, 1
    %p208 = por %p206, %p207
    %p209 = scmp.ne.s32.totalorder %s200, %s201
    %p210 = scmp.eq.s32.totalorder %s22, 0
    %p211 = por %p209, %p210
    %p212 = scmp.ne.s32.totalorder %s200, %s201
    %p213 = scmp.eq.s32.totalorder %s23, 1
    %p214 = por %p212, %p213
    %p216 = scmp.ne.s32.totalorder %s201, %s215
    %p217 = scmp.eq.s32.totalorder %s23, 0
    %p218 = por %p216, %p217
    %s220 = sadd.s32 %s219, 1
    %p223 = scmp.eq.s32.totalorder %s17, 1
    %p224 = scmp.ne.s32.totalorder %s219, %s221
    %p225 = scmp.eq.s32.totalorder %s17, 0
    %p226 = por %p224, %p225
    %p227 = scmp.ne.s32.totalorder %s219, %s221
    %p228 = scmp.eq.s32.totalorder %s22, 1
    %p229 = por %p227, %p228
    %p230 = scmp.ne.s32.totalorder %s221, %s222
    %p231 = scmp.eq.s32.totalorder %s22, 0
    %p232 = por %p230, %p231
    %p233 = scmp.ne.s32.totalorder %s221, %s222
    %p234 = scmp.eq.s32.totalorder %s23, 1
    %p235 = por %p233, %p234
    %p237 = scmp.ne.s32.totalorder %s222, %s236
    %p238 = scmp.eq.s32.totalorder %s23, 0
    %p239 = por %p237, %p238
    %s241 = sadd.s32 %s240, 1
    %p244 = scmp.eq.s32.totalorder %s17, 1
    %p245 = scmp.ne.s32.totalorder %s240, %s242
    %p246 = scmp.eq.s32.totalorder %s17, 0
    %p247 = por %p245, %p246
    %p248 = scmp.ne.s32.totalorder %s240, %s242
    %p249 = scmp.eq.s32.totalorder %s22, 1
    %p250 = por %p248, %p249
    %p251 = scmp.ne.s32.totalorder %s242, %s243
    %p252 = scmp.eq.s32.totalorder %s22, 0
    %p253 = por %p251, %p252
    %p254 = scmp.ne.s32.totalorder %s242, %s243
    %p255 = scmp.eq.s32.totalorder %s23, 1
    %p256 = por %p254, %p255
    %p258 = scmp.ne.s32.totalorder %s243, %s257
    %p259 = scmp.eq.s32.totalorder %s23, 0
    %p260 = por %p258, %p259
    %s261 = ssub.s32 %s17, %s24
    %p262 = scmp.eq.s32.totalorder %s261, 0
    %s264 = sadd.s32 %s263, 1
    %s265 = scalar_select %p262, %s263, %s264
    %p268 = pneg %p262
    %p269 = scmp.eq.s32.totalorder %s17, 1
    %p270 = por %p268, %p269
    %p271 = scmp.ne.s32.totalorder %s263, %s266
    %p272 = scmp.eq.s32.totalorder %s17, 0
    %p273 = por %p271, %p272
    %p274 = scmp.ne.s32.totalorder %s263, %s266
    %p275 = scmp.eq.s32.totalorder %s22, 1
    %p276 = por %p274, %p275
    %p277 = scmp.ne.s32.totalorder %s266, %s267
    %p278 = scmp.eq.s32.totalorder %s22, 0
    %p279 = por %p277, %p278
    %p280 = scmp.ne.s32.totalorder %s266, %s267
    %p281 = scmp.eq.s32.totalorder %s23, 1
    %p282 = por %p280, %p281
    %p284 = scmp.ne.s32.totalorder %s267, %s283
    %p285 = scmp.eq.s32.totalorder %s23, 0
    %p286 = por %p284, %p285
    %p287 = scmp.le.s32.totalorder 1, %s17
    %p288 = scmp.lt.s32.totalorder %s17, 3
    %p289 = pnand %p287, %p288
    %p290 = pneg %p289
    // Predicated region
    $region9: #{cnn_feature_extractor_forward.1} parent=5 // pred_check
      _
    $region10: #{cnn_feature_extractor_forward.1} parent=5 // pred_check_branch
      %292 = sbr.rel (%p289) target = $region12
    $region11: #{cnn_feature_extractor_forward.1} parent=5 // pred_region
      %s293 = ssub.s32 %s17, 1
      // Predicated region
      $region13: #{cnn_feature_extractor_forward.1} parent=11 // pred_check
        %p294 = pneg %p64
      $region14: #{cnn_feature_extractor_forward.1} parent=11 // pred_check_branch
        %296 = sbr.rel (%p294) target = $region16
      $region15: #{cnn_feature_extractor_forward.1} parent=11 // pred_region
        _
      $region16: #{cnn_feature_extractor_forward.1} parent=11 // pred_fallthru
        _
      // Predicated region
      $region17: #{cnn_feature_extractor_forward.1} parent=11 // pred_check
        %p297 = pneg %p85
      $region18: #{cnn_feature_extractor_forward.1} parent=11 // pred_check_branch
        %299 = sbr.rel (%p297) target = $region20
      $region19: #{cnn_feature_extractor_forward.1} parent=11 // pred_region
        _
      $region20: #{cnn_feature_extractor_forward.1} parent=11 // pred_fallthru
        _
      // Predicated region
      $region21: #{cnn_feature_extractor_forward.1} parent=11 // pred_check
        %p300 = pneg %p106
      $region22: #{cnn_feature_extractor_forward.1} parent=11 // pred_check_branch
        %302 = sbr.rel (%p300) target = $region24
      $region23: #{cnn_feature_extractor_forward.1} parent=11 // pred_region
        _
      $region24: #{cnn_feature_extractor_forward.1} parent=11 // pred_fallthru
        _
      // Predicated region
      $region25: #{cnn_feature_extractor_forward.1} parent=11 // pred_check
        %p303 = pneg %p127
      $region26: #{cnn_feature_extractor_forward.1} parent=11 // pred_check_branch
        %305 = sbr.rel (%p303) target = $region28
      $region27: #{cnn_feature_extractor_forward.1} parent=11 // pred_region
        _
      $region28: #{cnn_feature_extractor_forward.1} parent=11 // pred_fallthru
        _
      // Predicated region
      $region29: #{cnn_feature_extractor_forward.1} parent=11 // pred_check
        %p306 = pneg %p148
      $region30: #{cnn_feature_extractor_forward.1} parent=11 // pred_check_branch
        %308 = sbr.rel (%p306) target = $region32
      $region31: #{cnn_feature_extractor_forward.1} parent=11 // pred_region
        _
      $region32: #{cnn_feature_extractor_forward.1} parent=11 // pred_fallthru
        _
      // Predicated region
      $region33: #{cnn_feature_extractor_forward.1} parent=11 // pred_check
        %p309 = pneg %p169
      $region34: #{cnn_feature_extractor_forward.1} parent=11 // pred_check_branch
        %311 = sbr.rel (%p309) target = $region36
      $region35: #{cnn_feature_extractor_forward.1} parent=11 // pred_region
        _
      $region36: #{cnn_feature_extractor_forward.1} parent=11 // pred_fallthru
        _
      // Predicated region
      $region37: #{cnn_feature_extractor_forward.1} parent=11 // pred_check
        %p312 = pneg %p190
      $region38: #{cnn_feature_extractor_forward.1} parent=11 // pred_check_branch
        %314 = sbr.rel (%p312) target = $region40
      $region39: #{cnn_feature_extractor_forward.1} parent=11 // pred_region
        _
      $region40: #{cnn_feature_extractor_forward.1} parent=11 // pred_fallthru
        _
      // Predicated region
      $region41: #{cnn_feature_extractor_forward.1} parent=11 // pred_check
        %p315 = pneg %p211
      $region42: #{cnn_feature_extractor_forward.1} parent=11 // pred_check_branch
        %317 = sbr.rel (%p315) target = $region44
      $region43: #{cnn_feature_extractor_forward.1} parent=11 // pred_region
        _
      $region44: #{cnn_feature_extractor_forward.1} parent=11 // pred_fallthru
        _
      // Predicated region
      $region45: #{cnn_feature_extractor_forward.1} parent=11 // pred_check
        %p318 = pneg %p232
      $region46: #{cnn_feature_extractor_forward.1} parent=11 // pred_check_branch
        %320 = sbr.rel (%p318) target = $region48
      $region47: #{cnn_feature_extractor_forward.1} parent=11 // pred_region
        _
      $region48: #{cnn_feature_extractor_forward.1} parent=11 // pred_fallthru
        _
      // Predicated region
      $region49: #{cnn_feature_extractor_forward.1} parent=11 // pred_check
        %p321 = pneg %p253
      $region50: #{cnn_feature_extractor_forward.1} parent=11 // pred_check_branch
        %323 = sbr.rel (%p321) target = $region52
      $region51: #{cnn_feature_extractor_forward.1} parent=11 // pred_region
        _
      $region52: #{cnn_feature_extractor_forward.1} parent=11 // pred_fallthru
        _
    $region12: #{cnn_feature_extractor_forward.1} parent=5 // pred_fallthru
      _
    %p324 = scmp.lt.s32.totalorder %s17, 2
    // Predicated region
    $region53: #{cnn_feature_extractor_forward.1} parent=5 // pred_check
      %p325 = pneg %p324
    $region54: #{cnn_feature_extractor_forward.1} parent=5 // pred_check_branch
      %327 = sbr.rel (%p325) target = $region56
    $region55: #{cnn_feature_extractor_forward.1} parent=5 // pred_region
      // Predicated region
      $region57: #{cnn_feature_extractor_forward.1} parent=55 // pred_check
        %p328 = pneg %p37
      $region58: #{cnn_feature_extractor_forward.1} parent=55 // pred_check_branch
        %330 = sbr.rel (%p328) target = $region60
      $region59: #{cnn_feature_extractor_forward.1} parent=55 // pred_region
        %p331 = scmp.lt.s32.totalorder %s17, 1
        %s332 = scalar_select %p331, %s17, 1
        %s333 = smul.addr %s332, 24
        %s334 = smul.addr %s333, 4
        %s335 = scalar_lea.vmem %s0, %s334
      $region60: #{cnn_feature_extractor_forward.1} parent=55 // pred_fallthru
        _
    $region56: #{cnn_feature_extractor_forward.1} parent=5 // pred_fallthru
      _
    %p336 = scmp.le.s32.totalorder 1, %s17
    %p337 = scmp.lt.s32.totalorder %s17, 3
    %p338 = pnand %p336, %p337
    %p339 = pneg %p338
    // Predicated region
    $region61: #{cnn_feature_extractor_forward.1} parent=5 // pred_check
      _
    $region62: #{cnn_feature_extractor_forward.1} parent=5 // pred_check_branch
      %341 = sbr.rel (%p338) target = $region64
    $region63: #{cnn_feature_extractor_forward.1} parent=5 // pred_region
      %s342 = ssub.s32 %s17, 1
      %p343 = scmp.lt.s32.totalorder %s22, 1
      %s344 = scalar_select %p343, %s22, 1
      %s345 = smul.addr %s344, 24
      %s346 = smul.addr %s345, 4
      %s347 = scalar_lea.vmem %s0, %s346
      %p348 = pneg %p43
      %p349 = pneg %p40
      %p350 = pneg %p64
      %p351 = pneg %p61
      %p352 = pneg %p85
      %p353 = pneg %p82
      %p354 = pneg %p106
      %p355 = pneg %p103
      %p356 = pneg %p127
      %p357 = pneg %p124
      %p358 = pneg %p148
      %p359 = pneg %p145
      %p360 = pneg %p169
      %p361 = pneg %p166
      %p362 = pneg %p190
      %p363 = pneg %p187
      %p364 = pneg %p211
      %p365 = pneg %p208
      %p366 = pneg %p232
      %p367 = pneg %p229
      %p368 = pneg %p253
      %p369 = pneg %p250
      %p370 = pneg %p279
      %p371 = pneg %p276
      %p372 = scmp.lt.s32.totalorder %s22, 1
      %s373 = scalar_select %p372, %s22, 1
      %s374 = smul.addr %s373, 4
      %s375 = scalar_lea.vmem %s11, %s374
      %p376 = scmp.lt.s32.totalorder %s22, 1
      %s377 = scalar_select %p376, %s22, 1
      %s378 = smul.addr %s377, 24
      %s379 = smul.addr %s378, 4
      %s380 = scalar_lea.vmem %s0, %s379
      %p381 = scmp.lt.s32.totalorder %s22, 1
      %s382 = scalar_select %p381, %s22, 1
      %s383 = smul.addr %s382, 4
      %s384 = scalar_lea.vmem %s11, %s383
      %v386 = vld [vmem:[%s380] sm:$0xff]
      %v387 = vld [vmem:[%s380 + $0x8] sm:$0xf]
      %v388 = vld [vmem:[%s380 + $0xc] sm:$0xff]
      %v389 = vld [vmem:[%s380 + $0x14] sm:$0xf]
      %v390 = vld [vmem:[%s380 + $0x18] sm:$0xff]
      %v391 = vld [vmem:[%s380 + $0x20] sm:$0xf]
      %v392 = vld [vmem:[%s380 + $0x24] sm:$0xff]
      %v393 = vld [vmem:[%s380 + $0x2c] sm:$0xf]
      %v394 = vld [vmem:[%s380 + $0x30] sm:$0xff]
      %v395 = vld [vmem:[%s380 + $0x38] sm:$0xf]
      %v396 = vld [vmem:[%s380 + $0x3c] sm:$0xff]
      %v397 = vld [vmem:[%s380 + $0x44] sm:$0xf]
      %v398 = vld [vmem:[%s380 + $0x48] sm:$0xff]
      %v399 = vld [vmem:[%s380 + $0x50] sm:$0xf]
      %v400 = vld [vmem:[%s380 + $0x54] sm:$0xff]
      %v401 = vld [vmem:[%s380 + $0x5c] sm:$0xf]
      %v402 = vld [vmem:[%s1] sm:$0xf]
      %v403 = vld [vmem:[%s1 + $0x4] sm:$0xf]
      %v404 = vld [vmem:[%s1 + $0x8] sm:$0xf]
      %v405 = vld [vmem:[%s1 + $0xc] sm:$0xf]
      %v406 = vld [vmem:[%s1 + $0x10] sm:$0xf]
      %v407 = vld [vmem:[%s1 + $0x14] sm:$0xf]
      %v408 = vld [vmem:[%s1 + $0x18] sm:$0xf]
      %v409 = vld [vmem:[%s1 + $0x1c] sm:$0xf]
      %v410 = vld [vmem:[%s1 + $0x20] sm:$0xf]
      %v411 = vld [vmem:[%s1 + $0x24] sm:$0xf]
      %v412 = vld [vmem:[%s1 + $0x28] sm:$0xf]
      %v413 = vld [vmem:[%s1 + $0x2c] sm:$0xf]
      %v414 = vld [vmem:[%s1 + $0x30] sm:$0xf]
      %v415 = vld [vmem:[%s1 + $0x34] sm:$0xf]
      %v416 = vld [vmem:[%s1 + $0x38] sm:$0xf]
      %v417 = vld [vmem:[%s1 + $0x3c] sm:$0xf]
      %v418 = vld [vmem:[%s1 + $0x40] sm:$0xf]
      %v419 = vld [vmem:[%s1 + $0x44] sm:$0xf]
      %v420 = vld [vmem:[%s1 + $0x48] sm:$0xf]
      %v421 = vld [vmem:[%s1 + $0x4c] sm:$0xf]
      %v422 = vld [vmem:[%s1 + $0x50] sm:$0xf]
      %v423 = vld [vmem:[%s1 + $0x54] sm:$0xf]
      %v424 = vld [vmem:[%s1 + $0x58] sm:$0xf]
      %v425 = vld [vmem:[%s1 + $0x5c] sm:$0xf]
      %v426 = vld [vmem:[%s1 + $0x60] sm:$0xf]
      %v427 = vld [vmem:[%s1 + $0x64] sm:$0xf]
      %v428 = vld [vmem:[%s1 + $0x68] sm:$0xf]
      %v429 = vld [vmem:[%s1 + $0x6c] sm:$0xf]
      %v430 = vld [vmem:[%s1 + $0x70] sm:$0xf]
      %v431 = vld [vmem:[%s1 + $0x74] sm:$0xf]
      %v432 = vld [vmem:[%s1 + $0x78] sm:$0xf]
      %v433 = vld [vmem:[%s1 + $0x7c] sm:$0xf]
      %v434 = vld [vmem:[%s1 + $0x80] sm:$0xf]
      %v435 = vld [vmem:[%s1 + $0x84] sm:$0xf]
      %v436 = vld [vmem:[%s1 + $0x88] sm:$0xf]
      %v437 = vld [vmem:[%s1 + $0x8c] sm:$0xf]
      %v438 = vld [vmem:[%s1 + $0x90] sm:$0xf]
      %v439 = vld [vmem:[%s1 + $0x94] sm:$0xf]
      %v440 = vld [vmem:[%s1 + $0x98] sm:$0xf]
      %v441 = vld [vmem:[%s1 + $0x9c] sm:$0xf]
      %v442 = vld [vmem:[%s1 + $0xa0] sm:$0xf]
      %v443 = vld [vmem:[%s1 + $0xa4] sm:$0xf]
      %v444 = vld [vmem:[%s1 + $0xa8] sm:$0xf]
      %v445 = vld [vmem:[%s1 + $0xac] sm:$0xf]
      %v446 = vld [vmem:[%s1 + $0xb0] sm:$0xf]
      %v447 = vld [vmem:[%s1 + $0xb4] sm:$0xf]
      %v448 = vld [vmem:[%s1 + $0xb8] sm:$0xf]
      %v449 = vld [vmem:[%s1 + $0xbc] sm:$0xf]
      %v450 = vld [vmem:[%s2] sm:$0x1]
      %v452 = vlaneseq
      %v453 = vshrl.u32 %v452, 7
      %v454 = vsub.s32 0, %v453
      %v455 = vrot.slane %v450, %v454
      %v473 = vunpack.c.l.b16 %v386
      %v474 = vunpack.c.h.b16 %v386
      %v475 = vunpack.c.l.b16 %v387
      %v476 = vunpack.c.l.b16 %v388
      %v477 = vunpack.c.h.b16 %v388
      %v478 = vunpack.c.l.b16 %v389
      %v479 = vunpack.c.l.b16 %v390
      %v480 = vunpack.c.h.b16 %v390
      %v481 = vunpack.c.l.b16 %v391
      %v482 = vunpack.c.l.b16 %v392
      %v483 = vunpack.c.h.b16 %v392
      %v484 = vunpack.c.l.b16 %v393
      %v485 = vunpack.c.l.b16 %v394
      %v486 = vunpack.c.h.b16 %v394
      %v487 = vunpack.c.l.b16 %v395
      %v488 = vunpack.c.l.b16 %v396
      %v489 = vunpack.c.h.b16 %v396
      %v490 = vunpack.c.l.b16 %v397
      %v491 = vunpack.c.l.b16 %v398
      %v492 = vunpack.c.h.b16 %v398
      %v493 = vunpack.c.l.b16 %v399
      %v494 = vunpack.c.l.b16 %v400
      %v495 = vunpack.c.h.b16 %v400
      %v496 = vunpack.c.l.b16 %v401
      %v497 = vpack.c.b16 %v476, %v473
      %v498 = vpack.c.b16 %v477, %v474
      %v499 = vpack.c.b16 %v478, %v475
      %v500 = vpack.c.b16 %v482, %v479
      %v501 = vpack.c.b16 %v483, %v480
      %v502 = vpack.c.b16 %v484, %v481
      %v503 = vpack.c.b16 %v488, %v485
      %v504 = vpack.c.b16 %v489, %v486
      %v505 = vpack.c.b16 %v490, %v487
      %v506 = vpack.c.b16 %v494, %v491
      %v507 = vpack.c.b16 %v495, %v492
      %v508 = vpack.c.b16 %v496, %v493
      %v569 = vunpack.c.l.b16 %v402
      %v570 = vunpack.c.l.b16 %v403
      %v571 = vunpack.c.l.b16 %v404
      %v572 = vunpack.c.l.b16 %v405
      %v573 = vunpack.c.l.b16 %v406
      %v574 = vunpack.c.l.b16 %v407
      %v575 = vunpack.c.l.b16 %v408
      %v576 = vunpack.c.l.b16 %v409
      %v577 = vunpack.c.l.b16 %v410
      %v578 = vunpack.c.l.b16 %v411
      %v579 = vunpack.c.l.b16 %v412
      %v580 = vunpack.c.l.b16 %v413
      %v581 = vunpack.c.l.b16 %v414
      %v582 = vunpack.c.l.b16 %v415
      %v583 = vunpack.c.l.b16 %v416
      %v584 = vunpack.c.l.b16 %v417
      %v585 = vunpack.c.l.b16 %v418
      %v586 = vunpack.c.l.b16 %v419
      %v587 = vunpack.c.l.b16 %v420
      %v588 = vunpack.c.l.b16 %v421
      %v589 = vunpack.c.l.b16 %v422
      %v590 = vunpack.c.l.b16 %v423
      %v591 = vunpack.c.l.b16 %v424
      %v592 = vunpack.c.l.b16 %v425
      %v593 = vunpack.c.l.b16 %v426
      %v594 = vunpack.c.l.b16 %v427
      %v595 = vunpack.c.l.b16 %v428
      %v596 = vunpack.c.l.b16 %v429
      %v597 = vunpack.c.l.b16 %v430
      %v598 = vunpack.c.l.b16 %v431
      %v599 = vunpack.c.l.b16 %v432
      %v600 = vunpack.c.l.b16 %v433
      %v601 = vunpack.c.l.b16 %v434
      %v602 = vunpack.c.l.b16 %v435
      %v603 = vunpack.c.l.b16 %v436
      %v604 = vunpack.c.l.b16 %v437
      %v605 = vunpack.c.l.b16 %v438
      %v606 = vunpack.c.l.b16 %v439
      %v607 = vunpack.c.l.b16 %v440
      %v608 = vunpack.c.l.b16 %v441
      %v609 = vunpack.c.l.b16 %v442
      %v610 = vunpack.c.l.b16 %v443
      %v611 = vunpack.c.l.b16 %v444
      %v612 = vunpack.c.l.b16 %v445
      %v613 = vunpack.c.l.b16 %v446
      %v614 = vunpack.c.l.b16 %v447
      %v615 = vunpack.c.l.b16 %v448
      %v616 = vunpack.c.l.b16 %v449
      %v617 = vpack.c.b16 %v570, %v569
      %v618 = vpack.c.b16 %v572, %v571
      %v619 = vpack.c.b16 %v574, %v573
      %v620 = vpack.c.b16 %v576, %v575
      %v621 = vpack.c.b16 %v578, %v577
      %v622 = vpack.c.b16 %v580, %v579
      %v623 = vpack.c.b16 %v582, %v581
      %v624 = vpack.c.b16 %v584, %v583
      %v625 = vpack.c.b16 %v586, %v585
      %v626 = vpack.c.b16 %v588, %v587
      %v627 = vpack.c.b16 %v590, %v589
      %v628 = vpack.c.b16 %v592, %v591
      %v629 = vpack.c.b16 %v594, %v593
      %v630 = vpack.c.b16 %v596, %v595
      %v631 = vpack.c.b16 %v598, %v597
      %v632 = vpack.c.b16 %v600, %v599
      %v633 = vpack.c.b16 %v602, %v601
      %v634 = vpack.c.b16 %v604, %v603
      %v635 = vpack.c.b16 %v606, %v605
      %v636 = vpack.c.b16 %v608, %v607
      %v637 = vpack.c.b16 %v610, %v609
      %v638 = vpack.c.b16 %v612, %v611
      %v639 = vpack.c.b16 %v614, %v613
      %v640 = vpack.c.b16 %v616, %v615
      %665 = vmatprep.subr.bf16.mxu0 0
      %666 = vmatpush1.bf16.msra.mxu0 %v624
      %667 = vmatprep.subr.bf16.mxu0 0
      %668 = vmatpush1.bf16.msra.mxu0 %v623
      %669 = vmatprep.subr.bf16.mxu0 0
      %670 = vmatpush1.bf16.msra.mxu0 %v622
      %671 = vmatprep.subr.bf16.mxu0 0
      %672 = vmatpush1.bf16.msra.mxu0 %v621
      %673 = vmatprep.subr.bf16.mxu0 0
      %674 = vmatpush1.bf16.msra.mxu0 %v620
      %675 = vmatprep.subr.bf16.mxu0 0
      %676 = vmatpush1.bf16.msra.mxu0 %v619
      %677 = vmatprep.subr.bf16.mxu0 0
      %678 = vmatpush1.bf16.msra.mxu0 %v618
      %679 = vmatprep.subr.bf16.mxu0 0
      %680 = vmatpush1.bf16.msra.mxu0 %v617
      %681 = vmatprep.subr.bf16.mxu0 0
      %682 = vmatpush2.bf16.msra.mxu0 %v632
      %683 = vmatprep.subr.bf16.mxu0 0
      %684 = vmatpush2.bf16.msra.mxu0 %v631
      %685 = vmatprep.subr.bf16.mxu0 0
      %686 = vmatpush2.bf16.msra.mxu0 %v630
      %687 = vmatprep.subr.bf16.mxu0 0
      %688 = vmatpush2.bf16.msra.mxu0 %v629
      %689 = vmatprep.subr.bf16.mxu0 0
      %690 = vmatpush2.bf16.msra.mxu0 %v628
      %691 = vmatprep.subr.bf16.mxu0 0
      %692 = vmatpush2.bf16.msra.mxu0 %v627
      %693 = vmatprep.subr.bf16.mxu0 0
      %694 = vmatpush2.bf16.msra.mxu0 %v626
      %695 = vmatprep.subr.bf16.mxu0 0
      %696 = vmatpush2.bf16.msra.mxu0 %v625
      %697 = vmatprep.mubr.bf16.mxu0 %v498
      %698 = vmatmul.mubr.bf16.gmra.mxu0 %v497
      %v699 = vpop.f32.mrf.mxu0
      %v700 = vadd.f32 %v455, %v699
      %v701 = vpop.f32.mrf.mxu0
      %v702 = vpop.f32.mrf.mxu0
      %v703 = vadd.f32 %v455, %v702
      %v704 = vpop.f32.mrf.mxu0
      %705 = vmatprep.mubr.bf16.mxu0 %v501
      %706 = vmatmul.mubr.bf16.gmra.mxu0 %v500
      %v707 = vpop.f32.mrf.mxu0
      %v708 = vadd.f32 %v455, %v707
      %v709 = vpop.f32.mrf.mxu0
      %v710 = vpop.f32.mrf.mxu0
      %v711 = vadd.f32 %v455, %v710
      %v712 = vpop.f32.mrf.mxu0
      %713 = vmatprep.mubr.bf16.mxu0 %v504
      %714 = vmatmul.mubr.bf16.gmra.mxu0 %v503
      %v715 = vpop.f32.mrf.mxu0
      %v716 = vadd.f32 %v455, %v715
      %v717 = vpop.f32.mrf.mxu0
      %v718 = vpop.f32.mrf.mxu0
      %v719 = vadd.f32 %v455, %v718
      %v720 = vpop.f32.mrf.mxu0
      %721 = vmatprep.mubr.bf16.mxu0 %v507
      %722 = vmatmul.mubr.bf16.gmra.mxu0 %v506
      %v723 = vpop.f32.mrf.mxu0
      %v724 = vadd.f32 %v455, %v723
      %v725 = vpop.f32.mrf.mxu0
      %v726 = vpop.f32.mrf.mxu0
      %v727 = vadd.f32 %v455, %v726
      %v728 = vpop.f32.mrf.mxu0
      %729 = vdwg.mxu0
      %730 = vmatprep.subr.bf16.mxu0 0
      %731 = vmatpush1.bf16.msra.mxu0 %v640
      %732 = vmatprep.subr.bf16.mxu0 0
      %733 = vmatpush1.bf16.msra.mxu0 %v639
      %734 = vmatprep.subr.bf16.mxu0 0
      %735 = vmatpush1.bf16.msra.mxu0 %v638
      %736 = vmatprep.subr.bf16.mxu0 0
      %737 = vmatpush1.bf16.msra.mxu0 %v637
      %738 = vmatprep.subr.bf16.mxu0 0
      %739 = vmatpush1.bf16.msra.mxu0 %v636
      %740 = vmatprep.subr.bf16.mxu0 0
      %741 = vmatpush1.bf16.msra.mxu0 %v635
      %742 = vmatprep.subr.bf16.mxu0 0
      %743 = vmatpush1.bf16.msra.mxu0 %v634
      %744 = vmatprep.subr.bf16.mxu0 0
      %745 = vmatpush1.bf16.msra.mxu0 %v633
      %746 = vmatprep.subr.bf16.mxu0 0
      %747 = vmatpush2.bf16.msra.mxu0 0
      %748 = vmatprep.subr.bf16.mxu0 0
      %749 = vmatpush2.bf16.msra.mxu0 0
      %750 = vmatprep.subr.bf16.mxu0 0
      %751 = vmatpush2.bf16.msra.mxu0 0
      %752 = vmatprep.subr.bf16.mxu0 0
      %753 = vmatpush2.bf16.msra.mxu0 0
      %754 = vmatprep.subr.bf16.mxu0 0
      %755 = vmatpush2.bf16.msra.mxu0 0
      %756 = vmatprep.subr.bf16.mxu0 0
      %757 = vmatpush2.bf16.msra.mxu0 0
      %758 = vmatprep.subr.bf16.mxu0 0
      %759 = vmatpush2.bf16.msra.mxu0 0
      %760 = vmatprep.subr.bf16.mxu0 0
      %761 = vmatpush2.bf16.msra.mxu0 0
      %762 = vmatprep.mubr.bf16.mxu0 0
      %763 = vmatmul.mubr.bf16.gmra.mxu0 %v499
      %v764 = vpop.f32.mrf.mxu0
      %v765 = vadd.f32 %v700, %v764
      %v766 = vpop.f32.mrf.mxu0
      %v767 = vpop.f32.mrf.mxu0
      %v768 = vadd.f32 %v703, %v767
      %v769 = vpop.f32.mrf.mxu0
      %770 = vmatprep.mubr.bf16.mxu0 0
      %771 = vmatmul.mubr.bf16.gmra.mxu0 %v502
      %v772 = vpop.f32.mrf.mxu0
      %v773 = vadd.f32 %v708, %v772
      %v774 = vpop.f32.mrf.mxu0
      %v775 = vpop.f32.mrf.mxu0
      %v776 = vadd.f32 %v711, %v775
      %v777 = vpop.f32.mrf.mxu0
      %778 = vmatprep.mubr.bf16.mxu0 0
      %779 = vmatmul.mubr.bf16.gmra.mxu0 %v505
      %v780 = vpop.f32.mrf.mxu0
      %v781 = vadd.f32 %v716, %v780
      %v782 = vpop.f32.mrf.mxu0
      %v783 = vpop.f32.mrf.mxu0
      %v784 = vadd.f32 %v719, %v783
      %v785 = vpop.f32.mrf.mxu0
      %786 = vmatprep.mubr.bf16.mxu0 0
      %787 = vmatmul.mubr.bf16.gmra.mxu0 %v508
      %v788 = vpop.f32.mrf.mxu0
      %v789 = vadd.f32 %v724, %v788
      %v790 = vpop.f32.mrf.mxu0
      %v791 = vpop.f32.mrf.mxu0
      %v792 = vadd.f32 %v727, %v791
      %v793 = vpop.f32.mrf.mxu0
      %794 = vdwg.mxu0
      %v795 = vmax.f32 %v765, 0.0
      %v796 = vmax.f32 %v768, 0.0
      %v797 = vmax.f32 %v773, 0.0
      %v798 = vmax.f32 %v776, 0.0
      %v799 = vmax.f32 %v781, 0.0
      %v800 = vmax.f32 %v784, 0.0
      %v801 = vmax.f32 %v789, 0.0
      %v802 = vmax.f32 %v792, 0.0
      %v803 = vpack.c.bf16 %v796, %v795
      %v804 = vpack.c.bf16 %v798, %v797
      %v805 = vpack.c.bf16 %v800, %v799
      %v806 = vpack.c.bf16 %v802, %v801
      %v807 = vld [vmem:[%s3] sm:$0xf]
      %v808 = vld [vmem:[%s3 + $0x4] sm:$0xf]
      %v809 = vld [vmem:[%s3 + $0x8] sm:$0xf]
      %v810 = vld [vmem:[%s3 + $0xc] sm:$0xf]
      %v811 = vld [vmem:[%s3 + $0x10] sm:$0xf]
      %v812 = vld [vmem:[%s3 + $0x14] sm:$0xf]
      %v813 = vld [vmem:[%s3 + $0x18] sm:$0xf]
      %v814 = vld [vmem:[%s3 + $0x1c] sm:$0xf]
      %v815 = vld [vmem:[%s3 + $0x20] sm:$0xf]
      %v816 = vld [vmem:[%s3 + $0x24] sm:$0xf]
      %v817 = vld [vmem:[%s3 + $0x28] sm:$0xf]
      %v818 = vld [vmem:[%s3 + $0x2c] sm:$0xf]
      %v819 = vld [vmem:[%s3 + $0x30] sm:$0xf]
      %v820 = vld [vmem:[%s3 + $0x34] sm:$0xf]
      %v821 = vld [vmem:[%s3 + $0x38] sm:$0xf]
      %v822 = vld [vmem:[%s3 + $0x3c] sm:$0xf]
      %v823 = vld [vmem:[%s3 + $0x40] sm:$0xf]
      %v824 = vld [vmem:[%s3 + $0x44] sm:$0xf]
      %v825 = vld [vmem:[%s3 + $0x48] sm:$0xf]
      %v826 = vld [vmem:[%s3 + $0x4c] sm:$0xf]
      %v827 = vld [vmem:[%s3 + $0x50] sm:$0xf]
      %v828 = vld [vmem:[%s3 + $0x54] sm:$0xf]
      %v829 = vld [vmem:[%s3 + $0x58] sm:$0xf]
      %v830 = vld [vmem:[%s3 + $0x5c] sm:$0xf]
      %v831 = vld [vmem:[%s3 + $0x60] sm:$0xf]
      %v832 = vld [vmem:[%s3 + $0x64] sm:$0xf]
      %v833 = vld [vmem:[%s3 + $0x68] sm:$0xf]
      %v834 = vld [vmem:[%s3 + $0x6c] sm:$0xf]
      %v835 = vld [vmem:[%s3 + $0x70] sm:$0xf]
      %v836 = vld [vmem:[%s3 + $0x74] sm:$0xf]
      %v837 = vld [vmem:[%s3 + $0x78] sm:$0xf]
      %v838 = vld [vmem:[%s3 + $0x7c] sm:$0xf]
      %v871 = vunpack.c.l.b16 %v807
      %v872 = vunpack.c.l.b16 %v808
      %v873 = vunpack.c.l.b16 %v809
      %v874 = vunpack.c.l.b16 %v810
      %v875 = vunpack.c.l.b16 %v811
      %v876 = vunpack.c.l.b16 %v812
      %v877 = vunpack.c.l.b16 %v813
      %v878 = vunpack.c.l.b16 %v814
      %v879 = vunpack.c.l.b16 %v815
      %v880 = vunpack.c.l.b16 %v816
      %v881 = vunpack.c.l.b16 %v817
      %v882 = vunpack.c.l.b16 %v818
      %v883 = vunpack.c.l.b16 %v819
      %v884 = vunpack.c.l.b16 %v820
      %v885 = vunpack.c.l.b16 %v821
      %v886 = vunpack.c.l.b16 %v822
      %v887 = vunpack.c.l.b16 %v823
      %v888 = vunpack.c.l.b16 %v824
      %v889 = vunpack.c.l.b16 %v825
      %v890 = vunpack.c.l.b16 %v826
      %v891 = vunpack.c.l.b16 %v827
      %v892 = vunpack.c.l.b16 %v828
      %v893 = vunpack.c.l.b16 %v829
      %v894 = vunpack.c.l.b16 %v830
      %v895 = vunpack.c.l.b16 %v831
      %v896 = vunpack.c.l.b16 %v832
      %v897 = vunpack.c.l.b16 %v833
      %v898 = vunpack.c.l.b16 %v834
      %v899 = vunpack.c.l.b16 %v835
      %v900 = vunpack.c.l.b16 %v836
      %v901 = vunpack.c.l.b16 %v837
      %v902 = vunpack.c.l.b16 %v838
      %v903 = vpack.c.b16 %v872, %v871
      %v904 = vpack.c.b16 %v874, %v873
      %v905 = vpack.c.b16 %v876, %v875
      %v906 = vpack.c.b16 %v878, %v877
      %v907 = vpack.c.b16 %v880, %v879
      %v908 = vpack.c.b16 %v882, %v881
      %v909 = vpack.c.b16 %v884, %v883
      %v910 = vpack.c.b16 %v886, %v885
      %v911 = vpack.c.b16 %v888, %v887
      %v912 = vpack.c.b16 %v890, %v889
      %v913 = vpack.c.b16 %v892, %v891
      %v914 = vpack.c.b16 %v894, %v893
      %v915 = vpack.c.b16 %v896, %v895
      %v916 = vpack.c.b16 %v898, %v897
      %v917 = vpack.c.b16 %v900, %v899
      %v918 = vpack.c.b16 %v902, %v901
      %vm919 = vcmask 523264
      %v921 = vsel %vm919, %v903, 0
      %v924 = vsel %vm919, %v904, 0
      %v927 = vsel %vm919, %v905, 0
      %v930 = vsel %vm919, %v906, 0
      %v933 = vsel %vm919, %v907, 0
      %v936 = vsel %vm919, %v908, 0
      %v939 = vsel %vm919, %v909, 0
      %v942 = vsel %vm919, %v910, 0
      %v945 = vsel %vm919, %v911, 0
      %v948 = vsel %vm919, %v912, 0
      %v951 = vsel %vm919, %v913, 0
      %v954 = vsel %vm919, %v914, 0
      %v957 = vsel %vm919, %v915, 0
      %v960 = vsel %vm919, %v916, 0
      %v963 = vsel %vm919, %v917, 0
      %v966 = vsel %vm919, %v918, 0
      %968 = vmatprep.subr.bf16.mxu0 0
      %969 = vmatpush1.bf16.msra.mxu0 0
      %970 = vmatprep.subr.bf16.mxu0 0
      %971 = vmatpush1.bf16.msra.mxu0 0
      %972 = vmatprep.subr.bf16.mxu0 0
      %973 = vmatpush1.bf16.msra.mxu0 0
      %974 = vmatprep.subr.bf16.mxu0 0
      %975 = vmatpush1.bf16.msra.mxu0 0
      %976 = vmatprep.subr.bf16.mxu0 0
      %977 = vmatpush1.bf16.msra.mxu0 %v806
      %978 = vmatprep.subr.bf16.mxu0 0
      %979 = vmatpush1.bf16.msra.mxu0 %v805
      %980 = vmatprep.subr.bf16.mxu0 0
      %981 = vmatpush1.bf16.msra.mxu0 %v804
      %982 = vmatprep.subr.bf16.mxu0 0
      %983 = vmatpush1.bf16.msra.mxu0 %v803
      %984 = vmatprep.subr.bf16.mxu0 0
      %985 = vmatpush2.bf16.msra.mxu0 0
      %986 = vmatprep.subr.bf16.mxu0 0
      %987 = vmatpush2.bf16.msra.mxu0 0
      %988 = vmatprep.subr.bf16.mxu0 0
      %989 = vmatpush2.bf16.msra.mxu0 0
      %990 = vmatprep.subr.bf16.mxu0 0
      %991 = vmatpush2.bf16.msra.mxu0 0
      %992 = vmatprep.subr.bf16.mxu0 0
      %993 = vmatpush2.bf16.msra.mxu0 0
      %994 = vmatprep.subr.bf16.mxu0 0
      %995 = vmatpush2.bf16.msra.mxu0 0
      %996 = vmatprep.subr.bf16.mxu0 0
      %997 = vmatpush2.bf16.msra.mxu0 0
      %998 = vmatprep.subr.bf16.mxu0 0
      %999 = vmatpush2.bf16.msra.mxu0 0
      %1000 = vmatprep.mubr.bf16.mxu0 0
      %1001 = vmatmul.mubr.bf16.gmra.mxu0 %v921
      %v1002 = vpop.f32.mrf.mxu0
      %v1003 = vadd.f32 0.0, %v1002
      %v1004 = vpop.f32.mrf.mxu0
      %v1005 = vpop.f32.mrf.mxu0
      %v1006 = vadd.f32 0.0, %v1005
      %v1007 = vpop.f32.mrf.mxu0
      %1008 = vmatprep.mubr.bf16.mxu0 0
      %1009 = vmatmul.mubr.bf16.gmra.mxu0 %v924
      %v1010 = vpop.f32.mrf.mxu0
      %v1011 = vadd.f32 0.0, %v1010
      %v1012 = vpop.f32.mrf.mxu0
      %v1013 = vpop.f32.mrf.mxu0
      %v1014 = vadd.f32 0.0, %v1013
      %v1015 = vpop.f32.mrf.mxu0
      %1016 = vmatprep.mubr.bf16.mxu0 0
      %1017 = vmatmul.mubr.bf16.gmra.mxu0 %v927
      %v1018 = vpop.f32.mrf.mxu0
      %v1019 = vadd.f32 0.0, %v1018
      %v1020 = vpop.f32.mrf.mxu0
      %v1021 = vpop.f32.mrf.mxu0
      %v1022 = vadd.f32 0.0, %v1021
      %v1023 = vpop.f32.mrf.mxu0
      %1024 = vmatprep.mubr.bf16.mxu0 0
      %1025 = vmatmul.mubr.bf16.gmra.mxu0 %v930
      %v1026 = vpop.f32.mrf.mxu0
      %v1027 = vadd.f32 0.0, %v1026
      %v1028 = vpop.f32.mrf.mxu0
      %v1029 = vpop.f32.mrf.mxu0
      %v1030 = vadd.f32 0.0, %v1029
      %v1031 = vpop.f32.mrf.mxu0
      %1032 = vmatprep.mubr.bf16.mxu0 0
      %1033 = vmatmul.mubr.bf16.gmra.mxu0 %v933
      %v1034 = vpop.f32.mrf.mxu0
      %v1035 = vadd.f32 0.0, %v1034
      %v1036 = vpop.f32.mrf.mxu0
      %v1037 = vpop.f32.mrf.mxu0
      %v1038 = vadd.f32 0.0, %v1037
      %v1039 = vpop.f32.mrf.mxu0
      %1040 = vmatprep.mubr.bf16.mxu0 0
      %1041 = vmatmul.mubr.bf16.gmra.mxu0 %v936
      %v1042 = vpop.f32.mrf.mxu0
      %v1043 = vadd.f32 0.0, %v1042
      %v1044 = vpop.f32.mrf.mxu0
      %v1045 = vpop.f32.mrf.mxu0
      %v1046 = vadd.f32 0.0, %v1045
      %v1047 = vpop.f32.mrf.mxu0
      %1048 = vmatprep.mubr.bf16.mxu0 0
      %1049 = vmatmul.mubr.bf16.gmra.mxu0 %v939
      %v1050 = vpop.f32.mrf.mxu0
      %v1051 = vadd.f32 0.0, %v1050
      %v1052 = vpop.f32.mrf.mxu0
      %v1053 = vpop.f32.mrf.mxu0
      %v1054 = vadd.f32 0.0, %v1053
      %v1055 = vpop.f32.mrf.mxu0
      %1056 = vmatprep.mubr.bf16.mxu0 0
      %1057 = vmatmul.mubr.bf16.gmra.mxu0 %v942
      %v1058 = vpop.f32.mrf.mxu0
      %v1059 = vadd.f32 0.0, %v1058
      %v1060 = vpop.f32.mrf.mxu0
      %v1061 = vpop.f32.mrf.mxu0
      %v1062 = vadd.f32 0.0, %v1061
      %v1063 = vpop.f32.mrf.mxu0
      %1064 = vmatprep.mubr.bf16.mxu0 0
      %1065 = vmatmul.mubr.bf16.gmra.mxu0 %v945
      %v1066 = vpop.f32.mrf.mxu0
      %v1067 = vadd.f32 0.0, %v1066
      %v1068 = vpop.f32.mrf.mxu0
      %v1069 = vpop.f32.mrf.mxu0
      %v1070 = vadd.f32 0.0, %v1069
      %v1071 = vpop.f32.mrf.mxu0
      %1072 = vmatprep.mubr.bf16.mxu0 0
      %1073 = vmatmul.mubr.bf16.gmra.mxu0 %v948
      %v1074 = vpop.f32.mrf.mxu0
      %v1075 = vadd.f32 0.0, %v1074
      %v1076 = vpop.f32.mrf.mxu0
      %v1077 = vpop.f32.mrf.mxu0
      %v1078 = vadd.f32 0.0, %v1077
      %v1079 = vpop.f32.mrf.mxu0
      %1080 = vmatprep.mubr.bf16.mxu0 0
      %1081 = vmatmul.mubr.bf16.gmra.mxu0 %v951
      %v1082 = vpop.f32.mrf.mxu0
      %v1083 = vadd.f32 0.0, %v1082
      %v1084 = vpop.f32.mrf.mxu0
      %v1085 = vpop.f32.mrf.mxu0
      %v1086 = vadd.f32 0.0, %v1085
      %v1087 = vpop.f32.mrf.mxu0
      %1088 = vmatprep.mubr.bf16.mxu0 0
      %1089 = vmatmul.mubr.bf16.gmra.mxu0 %v954
      %v1090 = vpop.f32.mrf.mxu0
      %v1091 = vadd.f32 0.0, %v1090
      %v1092 = vpop.f32.mrf.mxu0
      %v1093 = vpop.f32.mrf.mxu0
      %v1094 = vadd.f32 0.0, %v1093
      %v1095 = vpop.f32.mrf.mxu0
      %1096 = vmatprep.mubr.bf16.mxu0 0
      %1097 = vmatmul.mubr.bf16.gmra.mxu0 %v957
      %v1098 = vpop.f32.mrf.mxu0
      %v1099 = vadd.f32 0.0, %v1098
      %v1100 = vpop.f32.mrf.mxu0
      %v1101 = vpop.f32.mrf.mxu0
      %v1102 = vadd.f32 0.0, %v1101
      %v1103 = vpop.f32.mrf.mxu0
      %1104 = vmatprep.mubr.bf16.mxu0 0
      %1105 = vmatmul.mubr.bf16.gmra.mxu0 %v960
      %v1106 = vpop.f32.mrf.mxu0
      %v1107 = vadd.f32 0.0, %v1106
      %v1108 = vpop.f32.mrf.mxu0
      %v1109 = vpop.f32.mrf.mxu0
      %v1110 = vadd.f32 0.0, %v1109
      %v1111 = vpop.f32.mrf.mxu0
      %1112 = vmatprep.mubr.bf16.mxu0 0
      %1113 = vmatmul.mubr.bf16.gmra.mxu0 %v963
      %v1114 = vpop.f32.mrf.mxu0
      %v1115 = vadd.f32 0.0, %v1114
      %v1116 = vpop.f32.mrf.mxu0
      %v1117 = vpop.f32.mrf.mxu0
      %v1118 = vadd.f32 0.0, %v1117
      %v1119 = vpop.f32.mrf.mxu0
      %1120 = vmatprep.mubr.bf16.mxu0 0
      %1121 = vmatmul.mubr.bf16.gmra.mxu0 %v966
      %v1122 = vpop.f32.mrf.mxu0
      %v1123 = vadd.f32 0.0, %v1122
      %v1124 = vpop.f32.mrf.mxu0
      %v1125 = vpop.f32.mrf.mxu0
      %v1126 = vadd.f32 0.0, %v1125
      %v1127 = vpop.f32.mrf.mxu0
      %1128 = vdwg.mxu0
      %v1129 = vpack.c.bf16 %v1006, %v1003
      %v1130 = vpack.c.bf16 %v1014, %v1011
      %v1131 = vpack.c.bf16 %v1022, %v1019
      %v1132 = vpack.c.bf16 %v1030, %v1027
      %v1133 = vpack.c.bf16 %v1038, %v1035
      %v1134 = vpack.c.bf16 %v1046, %v1043
      %v1135 = vpack.c.bf16 %v1054, %v1051
      %v1136 = vpack.c.bf16 %v1062, %v1059
      %v1137 = vpack.c.bf16 %v1070, %v1067
      %v1138 = vpack.c.bf16 %v1078, %v1075
      %v1139 = vpack.c.bf16 %v1086, %v1083
      %v1140 = vpack.c.bf16 %v1094, %v1091
      %v1141 = vpack.c.bf16 %v1102, %v1099
      %v1142 = vpack.c.bf16 %v1110, %v1107
      %v1143 = vpack.c.bf16 %v1118, %v1115
      %v1144 = vpack.c.bf16 %v1126, %v1123
      %v1145 = vld [vmem:[%s4] sm:$0xf]
      %v1146 = vld [vmem:[%s4 + $0x4] sm:$0xf]
      %v1147 = vld [vmem:[%s4 + $0x8] sm:$0xf]
      %v1148 = vld [vmem:[%s4 + $0xc] sm:$0xf]
      %s1149 = scalar_lea.vmem %s4, 16
      %v1150 = vld [vmem:[%s1149] sm:$0xf]
      %v1151 = vld [vmem:[%s1149 + $0x4] sm:$0xf]
      %v1152 = vld [vmem:[%s1149 + $0x8] sm:$0xf]
      %v1153 = vld [vmem:[%s1149 + $0xc] sm:$0xf]
      %v1158 = vunpack.c.l.b16 %v1150
      %v1159 = vunpack.c.l.b16 %v1151
      %v1160 = vunpack.c.l.b16 %v1152
      %v1161 = vunpack.c.l.b16 %v1153
      %v1162 = vpack.c.b16 %v1159, %v1158
      %v1163 = vpack.c.b16 %v1161, %v1160
      %vm1166 = vcmask 261120
      %v1168 = vsel %vm1166, %v1130, 0
      %1170 = vmatprep.subr.bf16.mxu0 0
      %1171 = vmatpush1.bf16.msra.mxu0 0
      %1172 = vmatprep.subr.bf16.mxu0 0
      %1173 = vmatpush1.bf16.msra.mxu0 0
      %1174 = vmatprep.subr.bf16.mxu0 0
      %1175 = vmatpush1.bf16.msra.mxu0 0
      %1176 = vmatprep.subr.bf16.mxu0 0
      %1177 = vmatpush1.bf16.msra.mxu0 0
      %1178 = vmatprep.subr.bf16.mxu0 0
      %1179 = vmatpush1.bf16.msra.mxu0 0
      %1180 = vmatprep.subr.bf16.mxu0 0
      %1181 = vmatpush1.bf16.msra.mxu0 0
      %1182 = vmatprep.subr.bf16.mxu0 0
      %1183 = vmatpush1.bf16.msra.mxu0 %v1163
      %1184 = vmatprep.subr.bf16.mxu0 0
      %1185 = vmatpush1.bf16.msra.mxu0 %v1162
      %1186 = vmatprep.subr.bf16.mxu0 0
      %1187 = vmatpush2.bf16.msra.mxu0 0
      %1188 = vmatprep.subr.bf16.mxu0 0
      %1189 = vmatpush2.bf16.msra.mxu0 0
      %1190 = vmatprep.subr.bf16.mxu0 0
      %1191 = vmatpush2.bf16.msra.mxu0 0
      %1192 = vmatprep.subr.bf16.mxu0 0
      %1193 = vmatpush2.bf16.msra.mxu0 0
      %1194 = vmatprep.subr.bf16.mxu0 0
      %1195 = vmatpush2.bf16.msra.mxu0 0
      %1196 = vmatprep.subr.bf16.mxu0 0
      %1197 = vmatpush2.bf16.msra.mxu0 0
      %1198 = vmatprep.subr.bf16.mxu0 0
      %1199 = vmatpush2.bf16.msra.mxu0 0
      %1200 = vmatprep.subr.bf16.mxu0 0
      %1201 = vmatpush2.bf16.msra.mxu0 0
      %1202 = vmatprep.mubr.bf16.mxu0 0
      %1203 = vmatmul.mubr.bf16.gmra.mxu0 %v1168
      %v1204 = vpop.f32.mrf.mxu0
      %v1205 = vadd.f32 0.0, %v1204
      %v1206 = vpop.f32.mrf.mxu0
      %v1207 = vpop.f32.mrf.mxu0
      %v1208 = vadd.f32 0.0, %v1207
      %v1209 = vpop.f32.mrf.mxu0
      %1210 = vdwg.mxu0
      %v1215 = vunpack.c.l.b16 %v1145
      %v1216 = vunpack.c.l.b16 %v1146
      %v1217 = vunpack.c.l.b16 %v1147
      %v1218 = vunpack.c.l.b16 %v1148
      %v1219 = vpack.c.b16 %v1216, %v1215
      %v1220 = vpack.c.b16 %v1218, %v1217
      %v1224 = vsel %vm1166, %v1129, 0
      %1226 = vmatprep.subr.bf16.mxu0 0
      %1227 = vmatpush1.bf16.msra.mxu0 0
      %1228 = vmatprep.subr.bf16.mxu0 0
      %1229 = vmatpush1.bf16.msra.mxu0 0
      %1230 = vmatprep.subr.bf16.mxu0 0
      %1231 = vmatpush1.bf16.msra.mxu0 0
      %1232 = vmatprep.subr.bf16.mxu0 0
      %1233 = vmatpush1.bf16.msra.mxu0 0
      %1234 = vmatprep.subr.bf16.mxu0 0
      %1235 = vmatpush1.bf16.msra.mxu0 0
      %1236 = vmatprep.subr.bf16.mxu0 0
      %1237 = vmatpush1.bf16.msra.mxu0 0
      %1238 = vmatprep.subr.bf16.mxu0 0
      %1239 = vmatpush1.bf16.msra.mxu0 %v1220
      %1240 = vmatprep.subr.bf16.mxu0 0
      %1241 = vmatpush1.bf16.msra.mxu0 %v1219
      %1242 = vmatprep.subr.bf16.mxu0 0
      %1243 = vmatpush2.bf16.msra.mxu0 0
      %1244 = vmatprep.subr.bf16.mxu0 0
      %1245 = vmatpush2.bf16.msra.mxu0 0
      %1246 = vmatprep.subr.bf16.mxu0 0
      %1247 = vmatpush2.bf16.msra.mxu0 0
      %1248 = vmatprep.subr.bf16.mxu0 0
      %1249 = vmatpush2.bf16.msra.mxu0 0
      %1250 = vmatprep.subr.bf16.mxu0 0
      %1251 = vmatpush2.bf16.msra.mxu0 0
      %1252 = vmatprep.subr.bf16.mxu0 0
      %1253 = vmatpush2.bf16.msra.mxu0 0
      %1254 = vmatprep.subr.bf16.mxu0 0
      %1255 = vmatpush2.bf16.msra.mxu0 0
      %1256 = vmatprep.subr.bf16.mxu0 0
      %1257 = vmatpush2.bf16.msra.mxu0 0
      %1258 = vmatprep.mubr.bf16.mxu0 0
      %1259 = vmatmul.mubr.bf16.gmra.mxu0 %v1224
      %v1260 = vpop.f32.mrf.mxu0
      %v1261 = vadd.f32 %v1205, %v1260
      %v1262 = vpop.f32.mrf.mxu0
      %v1263 = vpop.f32.mrf.mxu0
      %v1264 = vadd.f32 %v1208, %v1263
      %v1265 = vpop.f32.mrf.mxu0
      %1266 = vdwg.mxu0
      %s1267 = scalar_lea.vmem %s4, 32
      %v1268 = vld [vmem:[%s1267] sm:$0xf]
      %v1269 = vld [vmem:[%s1267 + $0x4] sm:$0xf]
      %v1270 = vld [vmem:[%s1267 + $0x8] sm:$0xf]
      %v1271 = vld [vmem:[%s1267 + $0xc] sm:$0xf]
      %v1276 = vunpack.c.l.b16 %v1268
      %v1277 = vunpack.c.l.b16 %v1269
      %v1278 = vunpack.c.l.b16 %v1270
      %v1279 = vunpack.c.l.b16 %v1271
      %v1280 = vpack.c.b16 %v1277, %v1276
      %v1281 = vpack.c.b16 %v1279, %v1278
      %v1285 = vsel %vm1166, %v1131, 0
      %1287 = vmatprep.subr.bf16.mxu0 0
      %1288 = vmatpush1.bf16.msra.mxu0 0
      %1289 = vmatprep.subr.bf16.mxu0 0
      %1290 = vmatpush1.bf16.msra.mxu0 0
      %1291 = vmatprep.subr.bf16.mxu0 0
      %1292 = vmatpush1.bf16.msra.mxu0 0
      %1293 = vmatprep.subr.bf16.mxu0 0
      %1294 = vmatpush1.bf16.msra.mxu0 0
      %1295 = vmatprep.subr.bf16.mxu0 0
      %1296 = vmatpush1.bf16.msra.mxu0 0
      %1297 = vmatprep.subr.bf16.mxu0 0
      %1298 = vmatpush1.bf16.msra.mxu0 0
      %1299 = vmatprep.subr.bf16.mxu0 0
      %1300 = vmatpush1.bf16.msra.mxu0 %v1281
      %1301 = vmatprep.subr.bf16.mxu0 0
      %1302 = vmatpush1.bf16.msra.mxu0 %v1280
      %1303 = vmatprep.subr.bf16.mxu0 0
      %1304 = vmatpush2.bf16.msra.mxu0 0
      %1305 = vmatprep.subr.bf16.mxu0 0
      %1306 = vmatpush2.bf16.msra.mxu0 0
      %1307 = vmatprep.subr.bf16.mxu0 0
      %1308 = vmatpush2.bf16.msra.mxu0 0
      %1309 = vmatprep.subr.bf16.mxu0 0
      %1310 = vmatpush2.bf16.msra.mxu0 0
      %1311 = vmatprep.subr.bf16.mxu0 0
      %1312 = vmatpush2.bf16.msra.mxu0 0
      %1313 = vmatprep.subr.bf16.mxu0 0
      %1314 = vmatpush2.bf16.msra.mxu0 0
      %1315 = vmatprep.subr.bf16.mxu0 0
      %1316 = vmatpush2.bf16.msra.mxu0 0
      %1317 = vmatprep.subr.bf16.mxu0 0
      %1318 = vmatpush2.bf16.msra.mxu0 0
      %1319 = vmatprep.mubr.bf16.mxu0 0
      %1320 = vmatmul.mubr.bf16.gmra.mxu0 %v1285
      %v1321 = vpop.f32.mrf.mxu0
      %v1322 = vadd.f32 0.0, %v1321
      %v1323 = vpop.f32.mrf.mxu0
      %v1324 = vpop.f32.mrf.mxu0
      %v1325 = vadd.f32 0.0, %v1324
      %v1326 = vpop.f32.mrf.mxu0
      %1327 = vdwg.mxu0
      %v1328 = vadd.f32 %v1261, %v1322
      %v1329 = vadd.f32 %v1264, %v1325
      %s1330 = scalar_lea.vmem %s4, 48
      %v1331 = vld [vmem:[%s1330] sm:$0xf]
      %v1332 = vld [vmem:[%s1330 + $0x4] sm:$0xf]
      %v1333 = vld [vmem:[%s1330 + $0x8] sm:$0xf]
      %v1334 = vld [vmem:[%s1330 + $0xc] sm:$0xf]
      %v1339 = vunpack.c.l.b16 %v1331
      %v1340 = vunpack.c.l.b16 %v1332
      %v1341 = vunpack.c.l.b16 %v1333
      %v1342 = vunpack.c.l.b16 %v1334
      %v1343 = vpack.c.b16 %v1340, %v1339
      %v1344 = vpack.c.b16 %v1342, %v1341
      %v1348 = vsel %vm1166, %v1132, 0
      %1350 = vmatprep.subr.bf16.mxu0 0
      %1351 = vmatpush1.bf16.msra.mxu0 0
      %1352 = vmatprep.subr.bf16.mxu0 0
      %1353 = vmatpush1.bf16.msra.mxu0 0
      %1354 = vmatprep.subr.bf16.mxu0 0
      %1355 = vmatpush1.bf16.msra.mxu0 0
      %1356 = vmatprep.subr.bf16.mxu0 0
      %1357 = vmatpush1.bf16.msra.mxu0 0
      %1358 = vmatprep.subr.bf16.mxu0 0
      %1359 = vmatpush1.bf16.msra.mxu0 0
      %1360 = vmatprep.subr.bf16.mxu0 0
      %1361 = vmatpush1.bf16.msra.mxu0 0
      %1362 = vmatprep.subr.bf16.mxu0 0
      %1363 = vmatpush1.bf16.msra.mxu0 %v1344
      %1364 = vmatprep.subr.bf16.mxu0 0
      %1365 = vmatpush1.bf16.msra.mxu0 %v1343
      %1366 = vmatprep.subr.bf16.mxu0 0
      %1367 = vmatpush2.bf16.msra.mxu0 0
      %1368 = vmatprep.subr.bf16.mxu0 0
      %1369 = vmatpush2.bf16.msra.mxu0 0
      %1370 = vmatprep.subr.bf16.mxu0 0
      %1371 = vmatpush2.bf16.msra.mxu0 0
      %1372 = vmatprep.subr.bf16.mxu0 0
      %1373 = vmatpush2.bf16.msra.mxu0 0
      %1374 = vmatprep.subr.bf16.mxu0 0
      %1375 = vmatpush2.bf16.msra.mxu0 0
      %1376 = vmatprep.subr.bf16.mxu0 0
      %1377 = vmatpush2.bf16.msra.mxu0 0
      %1378 = vmatprep.subr.bf16.mxu0 0
      %1379 = vmatpush2.bf16.msra.mxu0 0
      %1380 = vmatprep.subr.bf16.mxu0 0
      %1381 = vmatpush2.bf16.msra.mxu0 0
      %1382 = vmatprep.mubr.bf16.mxu0 0
      %1383 = vmatmul.mubr.bf16.gmra.mxu0 %v1348
      %v1384 = vpop.f32.mrf.mxu0
      %v1385 = vadd.f32 0.0, %v1384
      %v1386 = vpop.f32.mrf.mxu0
      %v1387 = vpop.f32.mrf.mxu0
      %v1388 = vadd.f32 0.0, %v1387
      %v1389 = vpop.f32.mrf.mxu0
      %1390 = vdwg.mxu0
      %v1391 = vadd.f32 %v1328, %v1385
      %v1392 = vadd.f32 %v1329, %v1388
      %s1393 = scalar_lea.vmem %s4, 64
      %v1394 = vld [vmem:[%s1393] sm:$0xf]
      %v1395 = vld [vmem:[%s1393 + $0x4] sm:$0xf]
      %v1396 = vld [vmem:[%s1393 + $0x8] sm:$0xf]
      %v1397 = vld [vmem:[%s1393 + $0xc] sm:$0xf]
      %v1402 = vunpack.c.l.b16 %v1394
      %v1403 = vunpack.c.l.b16 %v1395
      %v1404 = vunpack.c.l.b16 %v1396
      %v1405 = vunpack.c.l.b16 %v1397
      %v1406 = vpack.c.b16 %v1403, %v1402
      %v1407 = vpack.c.b16 %v1405, %v1404
      %v1411 = vsel %vm1166, %v1133, 0
      %1413 = vmatprep.subr.bf16.mxu0 0
      %1414 = vmatpush1.bf16.msra.mxu0 0
      %1415 = vmatprep.subr.bf16.mxu0 0
      %1416 = vmatpush1.bf16.msra.mxu0 0
      %1417 = vmatprep.subr.bf16.mxu0 0
      %1418 = vmatpush1.bf16.msra.mxu0 0
      %1419 = vmatprep.subr.bf16.mxu0 0
      %1420 = vmatpush1.bf16.msra.mxu0 0
      %1421 = vmatprep.subr.bf16.mxu0 0
      %1422 = vmatpush1.bf16.msra.mxu0 0
      %1423 = vmatprep.subr.bf16.mxu0 0
      %1424 = vmatpush1.bf16.msra.mxu0 0
      %1425 = vmatprep.subr.bf16.mxu0 0
      %1426 = vmatpush1.bf16.msra.mxu0 %v1407
      %1427 = vmatprep.subr.bf16.mxu0 0
      %1428 = vmatpush1.bf16.msra.mxu0 %v1406
      %1429 = vmatprep.subr.bf16.mxu0 0
      %1430 = vmatpush2.bf16.msra.mxu0 0
      %1431 = vmatprep.subr.bf16.mxu0 0
      %1432 = vmatpush2.bf16.msra.mxu0 0
      %1433 = vmatprep.subr.bf16.mxu0 0
      %1434 = vmatpush2.bf16.msra.mxu0 0
      %1435 = vmatprep.subr.bf16.mxu0 0
      %1436 = vmatpush2.bf16.msra.mxu0 0
      %1437 = vmatprep.subr.bf16.mxu0 0
      %1438 = vmatpush2.bf16.msra.mxu0 0
      %1439 = vmatprep.subr.bf16.mxu0 0
      %1440 = vmatpush2.bf16.msra.mxu0 0
      %1441 = vmatprep.subr.bf16.mxu0 0
      %1442 = vmatpush2.bf16.msra.mxu0 0
      %1443 = vmatprep.subr.bf16.mxu0 0
      %1444 = vmatpush2.bf16.msra.mxu0 0
      %1445 = vmatprep.mubr.bf16.mxu0 0
      %1446 = vmatmul.mubr.bf16.gmra.mxu0 %v1411
      %v1447 = vpop.f32.mrf.mxu0
      %v1448 = vadd.f32 0.0, %v1447
      %v1449 = vpop.f32.mrf.mxu0
      %v1450 = vpop.f32.mrf.mxu0
      %v1451 = vadd.f32 0.0, %v1450
      %v1452 = vpop.f32.mrf.mxu0
      %1453 = vdwg.mxu0
      %v1454 = vadd.f32 %v1391, %v1448
      %v1455 = vadd.f32 %v1392, %v1451
      %s1456 = scalar_lea.vmem %s4, 80
      %v1457 = vld [vmem:[%s1456] sm:$0xf]
      %v1458 = vld [vmem:[%s1456 + $0x4] sm:$0xf]
      %v1459 = vld [vmem:[%s1456 + $0x8] sm:$0xf]
      %v1460 = vld [vmem:[%s1456 + $0xc] sm:$0xf]
      %v1465 = vunpack.c.l.b16 %v1457
      %v1466 = vunpack.c.l.b16 %v1458
      %v1467 = vunpack.c.l.b16 %v1459
      %v1468 = vunpack.c.l.b16 %v1460
      %v1469 = vpack.c.b16 %v1466, %v1465
      %v1470 = vpack.c.b16 %v1468, %v1467
      %v1474 = vsel %vm1166, %v1134, 0
      %1476 = vmatprep.subr.bf16.mxu0 0
      %1477 = vmatpush1.bf16.msra.mxu0 0
      %1478 = vmatprep.subr.bf16.mxu0 0
      %1479 = vmatpush1.bf16.msra.mxu0 0
      %1480 = vmatprep.subr.bf16.mxu0 0
      %1481 = vmatpush1.bf16.msra.mxu0 0
      %1482 = vmatprep.subr.bf16.mxu0 0
      %1483 = vmatpush1.bf16.msra.mxu0 0
      %1484 = vmatprep.subr.bf16.mxu0 0
      %1485 = vmatpush1.bf16.msra.mxu0 0
      %1486 = vmatprep.subr.bf16.mxu0 0
      %1487 = vmatpush1.bf16.msra.mxu0 0
      %1488 = vmatprep.subr.bf16.mxu0 0
      %1489 = vmatpush1.bf16.msra.mxu0 %v1470
      %1490 = vmatprep.subr.bf16.mxu0 0
      %1491 = vmatpush1.bf16.msra.mxu0 %v1469
      %1492 = vmatprep.subr.bf16.mxu0 0
      %1493 = vmatpush2.bf16.msra.mxu0 0
      %1494 = vmatprep.subr.bf16.mxu0 0
      %1495 = vmatpush2.bf16.msra.mxu0 0
      %1496 = vmatprep.subr.bf16.mxu0 0
      %1497 = vmatpush2.bf16.msra.mxu0 0
      %1498 = vmatprep.subr.bf16.mxu0 0
      %1499 = vmatpush2.bf16.msra.mxu0 0
      %1500 = vmatprep.subr.bf16.mxu0 0
      %1501 = vmatpush2.bf16.msra.mxu0 0
      %1502 = vmatprep.subr.bf16.mxu0 0
      %1503 = vmatpush2.bf16.msra.mxu0 0
      %1504 = vmatprep.subr.bf16.mxu0 0
      %1505 = vmatpush2.bf16.msra.mxu0 0
      %1506 = vmatprep.subr.bf16.mxu0 0
      %1507 = vmatpush2.bf16.msra.mxu0 0
      %1508 = vmatprep.mubr.bf16.mxu0 0
      %1509 = vmatmul.mubr.bf16.gmra.mxu0 %v1474
      %v1510 = vpop.f32.mrf.mxu0
      %v1511 = vadd.f32 0.0, %v1510
      %v1512 = vpop.f32.mrf.mxu0
      %v1513 = vpop.f32.mrf.mxu0
      %v1514 = vadd.f32 0.0, %v1513
      %v1515 = vpop.f32.mrf.mxu0
      %1516 = vdwg.mxu0
      %v1517 = vadd.f32 %v1454, %v1511
      %v1518 = vadd.f32 %v1455, %v1514
      %s1519 = scalar_lea.vmem %s4, 96
      %v1520 = vld [vmem:[%s1519] sm:$0xf]
      %v1521 = vld [vmem:[%s1519 + $0x4] sm:$0xf]
      %v1522 = vld [vmem:[%s1519 + $0x8] sm:$0xf]
      %v1523 = vld [vmem:[%s1519 + $0xc] sm:$0xf]
      %v1528 = vunpack.c.l.b16 %v1520
      %v1529 = vunpack.c.l.b16 %v1521
      %v1530 = vunpack.c.l.b16 %v1522
      %v1531 = vunpack.c.l.b16 %v1523
      %v1532 = vpack.c.b16 %v1529, %v1528
      %v1533 = vpack.c.b16 %v1531, %v1530
      %v1537 = vsel %vm1166, %v1135, 0
      %1539 = vmatprep.subr.bf16.mxu0 0
      %1540 = vmatpush1.bf16.msra.mxu0 0
      %1541 = vmatprep.subr.bf16.mxu0 0
      %1542 = vmatpush1.bf16.msra.mxu0 0
      %1543 = vmatprep.subr.bf16.mxu0 0
      %1544 = vmatpush1.bf16.msra.mxu0 0
      %1545 = vmatprep.subr.bf16.mxu0 0
      %1546 = vmatpush1.bf16.msra.mxu0 0
      %1547 = vmatprep.subr.bf16.mxu0 0
      %1548 = vmatpush1.bf16.msra.mxu0 0
      %1549 = vmatprep.subr.bf16.mxu0 0
      %1550 = vmatpush1.bf16.msra.mxu0 0
      %1551 = vmatprep.subr.bf16.mxu0 0
      %1552 = vmatpush1.bf16.msra.mxu0 %v1533
      %1553 = vmatprep.subr.bf16.mxu0 0
      %1554 = vmatpush1.bf16.msra.mxu0 %v1532
      %1555 = vmatprep.subr.bf16.mxu0 0
      %1556 = vmatpush2.bf16.msra.mxu0 0
      %1557 = vmatprep.subr.bf16.mxu0 0
      %1558 = vmatpush2.bf16.msra.mxu0 0
      %1559 = vmatprep.subr.bf16.mxu0 0
      %1560 = vmatpush2.bf16.msra.mxu0 0
      %1561 = vmatprep.subr.bf16.mxu0 0
      %1562 = vmatpush2.bf16.msra.mxu0 0
      %1563 = vmatprep.subr.bf16.mxu0 0
      %1564 = vmatpush2.bf16.msra.mxu0 0
      %1565 = vmatprep.subr.bf16.mxu0 0
      %1566 = vmatpush2.bf16.msra.mxu0 0
      %1567 = vmatprep.subr.bf16.mxu0 0
      %1568 = vmatpush2.bf16.msra.mxu0 0
      %1569 = vmatprep.subr.bf16.mxu0 0
      %1570 = vmatpush2.bf16.msra.mxu0 0
      %1571 = vmatprep.mubr.bf16.mxu0 0
      %1572 = vmatmul.mubr.bf16.gmra.mxu0 %v1537
      %v1573 = vpop.f32.mrf.mxu0
      %v1574 = vadd.f32 0.0, %v1573
      %v1575 = vpop.f32.mrf.mxu0
      %v1576 = vpop.f32.mrf.mxu0
      %v1577 = vadd.f32 0.0, %v1576
      %v1578 = vpop.f32.mrf.mxu0
      %1579 = vdwg.mxu0
      %v1580 = vadd.f32 %v1517, %v1574
      %v1581 = vadd.f32 %v1518, %v1577
      %s1582 = scalar_lea.vmem %s4, 112
      %v1583 = vld [vmem:[%s1582] sm:$0xf]
      %v1584 = vld [vmem:[%s1582 + $0x4] sm:$0xf]
      %v1585 = vld [vmem:[%s1582 + $0x8] sm:$0xf]
      %v1586 = vld [vmem:[%s1582 + $0xc] sm:$0xf]
      %v1591 = vunpack.c.l.b16 %v1583
      %v1592 = vunpack.c.l.b16 %v1584
      %v1593 = vunpack.c.l.b16 %v1585
      %v1594 = vunpack.c.l.b16 %v1586
      %v1595 = vpack.c.b16 %v1592, %v1591
      %v1596 = vpack.c.b16 %v1594, %v1593
      %v1600 = vsel %vm1166, %v1136, 0
      %1602 = vmatprep.subr.bf16.mxu0 0
      %1603 = vmatpush1.bf16.msra.mxu0 0
      %1604 = vmatprep.subr.bf16.mxu0 0
      %1605 = vmatpush1.bf16.msra.mxu0 0
      %1606 = vmatprep.subr.bf16.mxu0 0
      %1607 = vmatpush1.bf16.msra.mxu0 0
      %1608 = vmatprep.subr.bf16.mxu0 0
      %1609 = vmatpush1.bf16.msra.mxu0 0
      %1610 = vmatprep.subr.bf16.mxu0 0
      %1611 = vmatpush1.bf16.msra.mxu0 0
      %1612 = vmatprep.subr.bf16.mxu0 0
      %1613 = vmatpush1.bf16.msra.mxu0 0
      %1614 = vmatprep.subr.bf16.mxu0 0
      %1615 = vmatpush1.bf16.msra.mxu0 %v1596
      %1616 = vmatprep.subr.bf16.mxu0 0
      %1617 = vmatpush1.bf16.msra.mxu0 %v1595
      %1618 = vmatprep.subr.bf16.mxu0 0
      %1619 = vmatpush2.bf16.msra.mxu0 0
      %1620 = vmatprep.subr.bf16.mxu0 0
      %1621 = vmatpush2.bf16.msra.mxu0 0
      %1622 = vmatprep.subr.bf16.mxu0 0
      %1623 = vmatpush2.bf16.msra.mxu0 0
      %1624 = vmatprep.subr.bf16.mxu0 0
      %1625 = vmatpush2.bf16.msra.mxu0 0
      %1626 = vmatprep.subr.bf16.mxu0 0
      %1627 = vmatpush2.bf16.msra.mxu0 0
      %1628 = vmatprep.subr.bf16.mxu0 0
      %1629 = vmatpush2.bf16.msra.mxu0 0
      %1630 = vmatprep.subr.bf16.mxu0 0
      %1631 = vmatpush2.bf16.msra.mxu0 0
      %1632 = vmatprep.subr.bf16.mxu0 0
      %1633 = vmatpush2.bf16.msra.mxu0 0
      %1634 = vmatprep.mubr.bf16.mxu0 0
      %1635 = vmatmul.mubr.bf16.gmra.mxu0 %v1600
      %v1636 = vpop.f32.mrf.mxu0
      %v1637 = vadd.f32 0.0, %v1636
      %v1638 = vpop.f32.mrf.mxu0
      %v1639 = vpop.f32.mrf.mxu0
      %v1640 = vadd.f32 0.0, %v1639
      %v1641 = vpop.f32.mrf.mxu0
      %1642 = vdwg.mxu0
      %v1643 = vadd.f32 %v1580, %v1637
      %v1644 = vadd.f32 %v1581, %v1640
      %s1645 = scalar_lea.vmem %s4, 128
      %v1646 = vld [vmem:[%s1645] sm:$0xf]
      %v1647 = vld [vmem:[%s1645 + $0x4] sm:$0xf]
      %v1648 = vld [vmem:[%s1645 + $0x8] sm:$0xf]
      %v1649 = vld [vmem:[%s1645 + $0xc] sm:$0xf]
      %v1654 = vunpack.c.l.b16 %v1646
      %v1655 = vunpack.c.l.b16 %v1647
      %v1656 = vunpack.c.l.b16 %v1648
      %v1657 = vunpack.c.l.b16 %v1649
      %v1658 = vpack.c.b16 %v1655, %v1654
      %v1659 = vpack.c.b16 %v1657, %v1656
      %v1663 = vsel %vm1166, %v1137, 0
      %1665 = vmatprep.subr.bf16.mxu0 0
      %1666 = vmatpush1.bf16.msra.mxu0 0
      %1667 = vmatprep.subr.bf16.mxu0 0
      %1668 = vmatpush1.bf16.msra.mxu0 0
      %1669 = vmatprep.subr.bf16.mxu0 0
      %1670 = vmatpush1.bf16.msra.mxu0 0
      %1671 = vmatprep.subr.bf16.mxu0 0
      %1672 = vmatpush1.bf16.msra.mxu0 0
      %1673 = vmatprep.subr.bf16.mxu0 0
      %1674 = vmatpush1.bf16.msra.mxu0 0
      %1675 = vmatprep.subr.bf16.mxu0 0
      %1676 = vmatpush1.bf16.msra.mxu0 0
      %1677 = vmatprep.subr.bf16.mxu0 0
      %1678 = vmatpush1.bf16.msra.mxu0 %v1659
      %1679 = vmatprep.subr.bf16.mxu0 0
      %1680 = vmatpush1.bf16.msra.mxu0 %v1658
      %1681 = vmatprep.subr.bf16.mxu0 0
      %1682 = vmatpush2.bf16.msra.mxu0 0
      %1683 = vmatprep.subr.bf16.mxu0 0
      %1684 = vmatpush2.bf16.msra.mxu0 0
      %1685 = vmatprep.subr.bf16.mxu0 0
      %1686 = vmatpush2.bf16.msra.mxu0 0
      %1687 = vmatprep.subr.bf16.mxu0 0
      %1688 = vmatpush2.bf16.msra.mxu0 0
      %1689 = vmatprep.subr.bf16.mxu0 0
      %1690 = vmatpush2.bf16.msra.mxu0 0
      %1691 = vmatprep.subr.bf16.mxu0 0
      %1692 = vmatpush2.bf16.msra.mxu0 0
      %1693 = vmatprep.subr.bf16.mxu0 0
      %1694 = vmatpush2.bf16.msra.mxu0 0
      %1695 = vmatprep.subr.bf16.mxu0 0
      %1696 = vmatpush2.bf16.msra.mxu0 0
      %1697 = vmatprep.mubr.bf16.mxu0 0
      %1698 = vmatmul.mubr.bf16.gmra.mxu0 %v1663
      %v1699 = vpop.f32.mrf.mxu0
      %v1700 = vadd.f32 0.0, %v1699
      %v1701 = vpop.f32.mrf.mxu0
      %v1702 = vpop.f32.mrf.mxu0
      %v1703 = vadd.f32 0.0, %v1702
      %v1704 = vpop.f32.mrf.mxu0
      %1705 = vdwg.mxu0
      %v1706 = vadd.f32 %v1643, %v1700
      %v1707 = vadd.f32 %v1644, %v1703
      %s1708 = scalar_lea.vmem %s4, 144
      %v1709 = vld [vmem:[%s1708] sm:$0xf]
      %v1710 = vld [vmem:[%s1708 + $0x4] sm:$0xf]
      %v1711 = vld [vmem:[%s1708 + $0x8] sm:$0xf]
      %v1712 = vld [vmem:[%s1708 + $0xc] sm:$0xf]
      %v1717 = vunpack.c.l.b16 %v1709
      %v1718 = vunpack.c.l.b16 %v1710
      %v1719 = vunpack.c.l.b16 %v1711
      %v1720 = vunpack.c.l.b16 %v1712
      %v1721 = vpack.c.b16 %v1718, %v1717
      %v1722 = vpack.c.b16 %v1720, %v1719
      %v1726 = vsel %vm1166, %v1138, 0
      %1728 = vmatprep.subr.bf16.mxu0 0
      %1729 = vmatpush1.bf16.msra.mxu0 0
      %1730 = vmatprep.subr.bf16.mxu0 0
      %1731 = vmatpush1.bf16.msra.mxu0 0
      %1732 = vmatprep.subr.bf16.mxu0 0
      %1733 = vmatpush1.bf16.msra.mxu0 0
      %1734 = vmatprep.subr.bf16.mxu0 0
      %1735 = vmatpush1.bf16.msra.mxu0 0
      %1736 = vmatprep.subr.bf16.mxu0 0
      %1737 = vmatpush1.bf16.msra.mxu0 0
      %1738 = vmatprep.subr.bf16.mxu0 0
      %1739 = vmatpush1.bf16.msra.mxu0 0
      %1740 = vmatprep.subr.bf16.mxu0 0
      %1741 = vmatpush1.bf16.msra.mxu0 %v1722
      %1742 = vmatprep.subr.bf16.mxu0 0
      %1743 = vmatpush1.bf16.msra.mxu0 %v1721
      %1744 = vmatprep.subr.bf16.mxu0 0
      %1745 = vmatpush2.bf16.msra.mxu0 0
      %1746 = vmatprep.subr.bf16.mxu0 0
      %1747 = vmatpush2.bf16.msra.mxu0 0
      %1748 = vmatprep.subr.bf16.mxu0 0
      %1749 = vmatpush2.bf16.msra.mxu0 0
      %1750 = vmatprep.subr.bf16.mxu0 0
      %1751 = vmatpush2.bf16.msra.mxu0 0
      %1752 = vmatprep.subr.bf16.mxu0 0
      %1753 = vmatpush2.bf16.msra.mxu0 0
      %1754 = vmatprep.subr.bf16.mxu0 0
      %1755 = vmatpush2.bf16.msra.mxu0 0
      %1756 = vmatprep.subr.bf16.mxu0 0
      %1757 = vmatpush2.bf16.msra.mxu0 0
      %1758 = vmatprep.subr.bf16.mxu0 0
      %1759 = vmatpush2.bf16.msra.mxu0 0
      %1760 = vmatprep.mubr.bf16.mxu0 0
      %1761 = vmatmul.mubr.bf16.gmra.mxu0 %v1726
      %v1762 = vpop.f32.mrf.mxu0
      %v1763 = vadd.f32 0.0, %v1762
      %v1764 = vpop.f32.mrf.mxu0
      %v1765 = vpop.f32.mrf.mxu0
      %v1766 = vadd.f32 0.0, %v1765
      %v1767 = vpop.f32.mrf.mxu0
      %1768 = vdwg.mxu0
      %v1769 = vadd.f32 %v1706, %v1763
      %v1770 = vadd.f32 %v1707, %v1766
      %s1771 = scalar_lea.vmem %s4, 160
      %v1772 = vld [vmem:[%s1771] sm:$0xf]
      %v1773 = vld [vmem:[%s1771 + $0x4] sm:$0xf]
      %v1774 = vld [vmem:[%s1771 + $0x8] sm:$0xf]
      %v1775 = vld [vmem:[%s1771 + $0xc] sm:$0xf]
      %v1780 = vunpack.c.l.b16 %v1772
      %v1781 = vunpack.c.l.b16 %v1773
      %v1782 = vunpack.c.l.b16 %v1774
      %v1783 = vunpack.c.l.b16 %v1775
      %v1784 = vpack.c.b16 %v1781, %v1780
      %v1785 = vpack.c.b16 %v1783, %v1782
      %v1789 = vsel %vm1166, %v1139, 0
      %1791 = vmatprep.subr.bf16.mxu0 0
      %1792 = vmatpush1.bf16.msra.mxu0 0
      %1793 = vmatprep.subr.bf16.mxu0 0
      %1794 = vmatpush1.bf16.msra.mxu0 0
      %1795 = vmatprep.subr.bf16.mxu0 0
      %1796 = vmatpush1.bf16.msra.mxu0 0
      %1797 = vmatprep.subr.bf16.mxu0 0
      %1798 = vmatpush1.bf16.msra.mxu0 0
      %1799 = vmatprep.subr.bf16.mxu0 0
      %1800 = vmatpush1.bf16.msra.mxu0 0
      %1801 = vmatprep.subr.bf16.mxu0 0
      %1802 = vmatpush1.bf16.msra.mxu0 0
      %1803 = vmatprep.subr.bf16.mxu0 0
      %1804 = vmatpush1.bf16.msra.mxu0 %v1785
      %1805 = vmatprep.subr.bf16.mxu0 0
      %1806 = vmatpush1.bf16.msra.mxu0 %v1784
      %1807 = vmatprep.subr.bf16.mxu0 0
      %1808 = vmatpush2.bf16.msra.mxu0 0
      %1809 = vmatprep.subr.bf16.mxu0 0
      %1810 = vmatpush2.bf16.msra.mxu0 0
      %1811 = vmatprep.subr.bf16.mxu0 0
      %1812 = vmatpush2.bf16.msra.mxu0 0
      %1813 = vmatprep.subr.bf16.mxu0 0
      %1814 = vmatpush2.bf16.msra.mxu0 0
      %1815 = vmatprep.subr.bf16.mxu0 0
      %1816 = vmatpush2.bf16.msra.mxu0 0
      %1817 = vmatprep.subr.bf16.mxu0 0
      %1818 = vmatpush2.bf16.msra.mxu0 0
      %1819 = vmatprep.subr.bf16.mxu0 0
      %1820 = vmatpush2.bf16.msra.mxu0 0
      %1821 = vmatprep.subr.bf16.mxu0 0
      %1822 = vmatpush2.bf16.msra.mxu0 0
      %1823 = vmatprep.mubr.bf16.mxu0 0
      %1824 = vmatmul.mubr.bf16.gmra.mxu0 %v1789
      %v1825 = vpop.f32.mrf.mxu0
      %v1826 = vadd.f32 0.0, %v1825
      %v1827 = vpop.f32.mrf.mxu0
      %v1828 = vpop.f32.mrf.mxu0
      %v1829 = vadd.f32 0.0, %v1828
      %v1830 = vpop.f32.mrf.mxu0
      %1831 = vdwg.mxu0
      %v1832 = vadd.f32 %v1769, %v1826
      %v1833 = vadd.f32 %v1770, %v1829
      %s1834 = scalar_lea.vmem %s4, 176
      %v1835 = vld [vmem:[%s1834] sm:$0xf]
      %v1836 = vld [vmem:[%s1834 + $0x4] sm:$0xf]
      %v1837 = vld [vmem:[%s1834 + $0x8] sm:$0xf]
      %v1838 = vld [vmem:[%s1834 + $0xc] sm:$0xf]
      %v1843 = vunpack.c.l.b16 %v1835
      %v1844 = vunpack.c.l.b16 %v1836
      %v1845 = vunpack.c.l.b16 %v1837
      %v1846 = vunpack.c.l.b16 %v1838
      %v1847 = vpack.c.b16 %v1844, %v1843
      %v1848 = vpack.c.b16 %v1846, %v1845
      %v1852 = vsel %vm1166, %v1140, 0
      %1854 = vmatprep.subr.bf16.mxu0 0
      %1855 = vmatpush1.bf16.msra.mxu0 0
      %1856 = vmatprep.subr.bf16.mxu0 0
      %1857 = vmatpush1.bf16.msra.mxu0 0
      %1858 = vmatprep.subr.bf16.mxu0 0
      %1859 = vmatpush1.bf16.msra.mxu0 0
      %1860 = vmatprep.subr.bf16.mxu0 0
      %1861 = vmatpush1.bf16.msra.mxu0 0
      %1862 = vmatprep.subr.bf16.mxu0 0
      %1863 = vmatpush1.bf16.msra.mxu0 0
      %1864 = vmatprep.subr.bf16.mxu0 0
      %1865 = vmatpush1.bf16.msra.mxu0 0
      %1866 = vmatprep.subr.bf16.mxu0 0
      %1867 = vmatpush1.bf16.msra.mxu0 %v1848
      %1868 = vmatprep.subr.bf16.mxu0 0
      %1869 = vmatpush1.bf16.msra.mxu0 %v1847
      %1870 = vmatprep.subr.bf16.mxu0 0
      %1871 = vmatpush2.bf16.msra.mxu0 0
      %1872 = vmatprep.subr.bf16.mxu0 0
      %1873 = vmatpush2.bf16.msra.mxu0 0
      %1874 = vmatprep.subr.bf16.mxu0 0
      %1875 = vmatpush2.bf16.msra.mxu0 0
      %1876 = vmatprep.subr.bf16.mxu0 0
      %1877 = vmatpush2.bf16.msra.mxu0 0
      %1878 = vmatprep.subr.bf16.mxu0 0
      %1879 = vmatpush2.bf16.msra.mxu0 0
      %1880 = vmatprep.subr.bf16.mxu0 0
      %1881 = vmatpush2.bf16.msra.mxu0 0
      %1882 = vmatprep.subr.bf16.mxu0 0
      %1883 = vmatpush2.bf16.msra.mxu0 0
      %1884 = vmatprep.subr.bf16.mxu0 0
      %1885 = vmatpush2.bf16.msra.mxu0 0
      %1886 = vmatprep.mubr.bf16.mxu0 0
      %1887 = vmatmul.mubr.bf16.gmra.mxu0 %v1852
      %v1888 = vpop.f32.mrf.mxu0
      %v1889 = vadd.f32 0.0, %v1888
      %v1890 = vpop.f32.mrf.mxu0
      %v1891 = vpop.f32.mrf.mxu0
      %v1892 = vadd.f32 0.0, %v1891
      %v1893 = vpop.f32.mrf.mxu0
      %1894 = vdwg.mxu0
      %v1895 = vadd.f32 %v1832, %v1889
      %v1896 = vadd.f32 %v1833, %v1892
      %s1897 = scalar_lea.vmem %s4, 192
      %v1898 = vld [vmem:[%s1897] sm:$0xf]
      %v1899 = vld [vmem:[%s1897 + $0x4] sm:$0xf]
      %v1900 = vld [vmem:[%s1897 + $0x8] sm:$0xf]
      %v1901 = vld [vmem:[%s1897 + $0xc] sm:$0xf]
      %v1906 = vunpack.c.l.b16 %v1898
      %v1907 = vunpack.c.l.b16 %v1899
      %v1908 = vunpack.c.l.b16 %v1900
      %v1909 = vunpack.c.l.b16 %v1901
      %v1910 = vpack.c.b16 %v1907, %v1906
      %v1911 = vpack.c.b16 %v1909, %v1908
      %v1915 = vsel %vm1166, %v1141, 0
      %1917 = vmatprep.subr.bf16.mxu0 0
      %1918 = vmatpush1.bf16.msra.mxu0 0
      %1919 = vmatprep.subr.bf16.mxu0 0
      %1920 = vmatpush1.bf16.msra.mxu0 0
      %1921 = vmatprep.subr.bf16.mxu0 0
      %1922 = vmatpush1.bf16.msra.mxu0 0
      %1923 = vmatprep.subr.bf16.mxu0 0
      %1924 = vmatpush1.bf16.msra.mxu0 0
      %1925 = vmatprep.subr.bf16.mxu0 0
      %1926 = vmatpush1.bf16.msra.mxu0 0
      %1927 = vmatprep.subr.bf16.mxu0 0
      %1928 = vmatpush1.bf16.msra.mxu0 0
      %1929 = vmatprep.subr.bf16.mxu0 0
      %1930 = vmatpush1.bf16.msra.mxu0 %v1911
      %1931 = vmatprep.subr.bf16.mxu0 0
      %1932 = vmatpush1.bf16.msra.mxu0 %v1910
      %1933 = vmatprep.subr.bf16.mxu0 0
      %1934 = vmatpush2.bf16.msra.mxu0 0
      %1935 = vmatprep.subr.bf16.mxu0 0
      %1936 = vmatpush2.bf16.msra.mxu0 0
      %1937 = vmatprep.subr.bf16.mxu0 0
      %1938 = vmatpush2.bf16.msra.mxu0 0
      %1939 = vmatprep.subr.bf16.mxu0 0
      %1940 = vmatpush2.bf16.msra.mxu0 0
      %1941 = vmatprep.subr.bf16.mxu0 0
      %1942 = vmatpush2.bf16.msra.mxu0 0
      %1943 = vmatprep.subr.bf16.mxu0 0
      %1944 = vmatpush2.bf16.msra.mxu0 0
      %1945 = vmatprep.subr.bf16.mxu0 0
      %1946 = vmatpush2.bf16.msra.mxu0 0
      %1947 = vmatprep.subr.bf16.mxu0 0
      %1948 = vmatpush2.bf16.msra.mxu0 0
      %1949 = vmatprep.mubr.bf16.mxu0 0
      %1950 = vmatmul.mubr.bf16.gmra.mxu0 %v1915
      %v1951 = vpop.f32.mrf.mxu0
      %v1952 = vadd.f32 0.0, %v1951
      %v1953 = vpop.f32.mrf.mxu0
      %v1954 = vpop.f32.mrf.mxu0
      %v1955 = vadd.f32 0.0, %v1954
      %v1956 = vpop.f32.mrf.mxu0
      %1957 = vdwg.mxu0
      %v1958 = vadd.f32 %v1895, %v1952
      %v1959 = vadd.f32 %v1896, %v1955
      %s1960 = scalar_lea.vmem %s4, 208
      %v1961 = vld [vmem:[%s1960] sm:$0xf]
      %v1962 = vld [vmem:[%s1960 + $0x4] sm:$0xf]
      %v1963 = vld [vmem:[%s1960 + $0x8] sm:$0xf]
      %v1964 = vld [vmem:[%s1960 + $0xc] sm:$0xf]
      %v1969 = vunpack.c.l.b16 %v1961
      %v1970 = vunpack.c.l.b16 %v1962
      %v1971 = vunpack.c.l.b16 %v1963
      %v1972 = vunpack.c.l.b16 %v1964
      %v1973 = vpack.c.b16 %v1970, %v1969
      %v1974 = vpack.c.b16 %v1972, %v1971
      %v1978 = vsel %vm1166, %v1142, 0
      %1980 = vmatprep.subr.bf16.mxu0 0
      %1981 = vmatpush1.bf16.msra.mxu0 0
      %1982 = vmatprep.subr.bf16.mxu0 0
      %1983 = vmatpush1.bf16.msra.mxu0 0
      %1984 = vmatprep.subr.bf16.mxu0 0
      %1985 = vmatpush1.bf16.msra.mxu0 0
      %1986 = vmatprep.subr.bf16.mxu0 0
      %1987 = vmatpush1.bf16.msra.mxu0 0
      %1988 = vmatprep.subr.bf16.mxu0 0
      %1989 = vmatpush1.bf16.msra.mxu0 0
      %1990 = vmatprep.subr.bf16.mxu0 0
      %1991 = vmatpush1.bf16.msra.mxu0 0
      %1992 = vmatprep.subr.bf16.mxu0 0
      %1993 = vmatpush1.bf16.msra.mxu0 %v1974
      %1994 = vmatprep.subr.bf16.mxu0 0
      %1995 = vmatpush1.bf16.msra.mxu0 %v1973
      %1996 = vmatprep.subr.bf16.mxu0 0
      %1997 = vmatpush2.bf16.msra.mxu0 0
      %1998 = vmatprep.subr.bf16.mxu0 0
      %1999 = vmatpush2.bf16.msra.mxu0 0
      %2000 = vmatprep.subr.bf16.mxu0 0
      %2001 = vmatpush2.bf16.msra.mxu0 0
      %2002 = vmatprep.subr.bf16.mxu0 0
      %2003 = vmatpush2.bf16.msra.mxu0 0
      %2004 = vmatprep.subr.bf16.mxu0 0
      %2005 = vmatpush2.bf16.msra.mxu0 0
      %2006 = vmatprep.subr.bf16.mxu0 0
      %2007 = vmatpush2.bf16.msra.mxu0 0
      %2008 = vmatprep.subr.bf16.mxu0 0
      %2009 = vmatpush2.bf16.msra.mxu0 0
      %2010 = vmatprep.subr.bf16.mxu0 0
      %2011 = vmatpush2.bf16.msra.mxu0 0
      %2012 = vmatprep.mubr.bf16.mxu0 0
      %2013 = vmatmul.mubr.bf16.gmra.mxu0 %v1978
      %v2014 = vpop.f32.mrf.mxu0
      %v2015 = vadd.f32 0.0, %v2014
      %v2016 = vpop.f32.mrf.mxu0
      %v2017 = vpop.f32.mrf.mxu0
      %v2018 = vadd.f32 0.0, %v2017
      %v2019 = vpop.f32.mrf.mxu0
      %2020 = vdwg.mxu0
      %v2021 = vadd.f32 %v1958, %v2015
      %v2022 = vadd.f32 %v1959, %v2018
      %s2023 = scalar_lea.vmem %s4, 224
      %v2024 = vld [vmem:[%s2023] sm:$0xf]
      %v2025 = vld [vmem:[%s2023 + $0x4] sm:$0xf]
      %v2026 = vld [vmem:[%s2023 + $0x8] sm:$0xf]
      %v2027 = vld [vmem:[%s2023 + $0xc] sm:$0xf]
      %v2032 = vunpack.c.l.b16 %v2024
      %v2033 = vunpack.c.l.b16 %v2025
      %v2034 = vunpack.c.l.b16 %v2026
      %v2035 = vunpack.c.l.b16 %v2027
      %v2036 = vpack.c.b16 %v2033, %v2032
      %v2037 = vpack.c.b16 %v2035, %v2034
      %v2041 = vsel %vm1166, %v1143, 0
      %2043 = vmatprep.subr.bf16.mxu0 0
      %2044 = vmatpush1.bf16.msra.mxu0 0
      %2045 = vmatprep.subr.bf16.mxu0 0
      %2046 = vmatpush1.bf16.msra.mxu0 0
      %2047 = vmatprep.subr.bf16.mxu0 0
      %2048 = vmatpush1.bf16.msra.mxu0 0
      %2049 = vmatprep.subr.bf16.mxu0 0
      %2050 = vmatpush1.bf16.msra.mxu0 0
      %2051 = vmatprep.subr.bf16.mxu0 0
      %2052 = vmatpush1.bf16.msra.mxu0 0
      %2053 = vmatprep.subr.bf16.mxu0 0
      %2054 = vmatpush1.bf16.msra.mxu0 0
      %2055 = vmatprep.subr.bf16.mxu0 0
      %2056 = vmatpush1.bf16.msra.mxu0 %v2037
      %2057 = vmatprep.subr.bf16.mxu0 0
      %2058 = vmatpush1.bf16.msra.mxu0 %v2036
      %2059 = vmatprep.subr.bf16.mxu0 0
      %2060 = vmatpush2.bf16.msra.mxu0 0
      %2061 = vmatprep.subr.bf16.mxu0 0
      %2062 = vmatpush2.bf16.msra.mxu0 0
      %2063 = vmatprep.subr.bf16.mxu0 0
      %2064 = vmatpush2.bf16.msra.mxu0 0
      %2065 = vmatprep.subr.bf16.mxu0 0
      %2066 = vmatpush2.bf16.msra.mxu0 0
      %2067 = vmatprep.subr.bf16.mxu0 0
      %2068 = vmatpush2.bf16.msra.mxu0 0
      %2069 = vmatprep.subr.bf16.mxu0 0
      %2070 = vmatpush2.bf16.msra.mxu0 0
      %2071 = vmatprep.subr.bf16.mxu0 0
      %2072 = vmatpush2.bf16.msra.mxu0 0
      %2073 = vmatprep.subr.bf16.mxu0 0
      %2074 = vmatpush2.bf16.msra.mxu0 0
      %2075 = vmatprep.mubr.bf16.mxu0 0
      %2076 = vmatmul.mubr.bf16.gmra.mxu0 %v2041
      %v2077 = vpop.f32.mrf.mxu0
      %v2078 = vadd.f32 0.0, %v2077
      %v2079 = vpop.f32.mrf.mxu0
      %v2080 = vpop.f32.mrf.mxu0
      %v2081 = vadd.f32 0.0, %v2080
      %v2082 = vpop.f32.mrf.mxu0
      %2083 = vdwg.mxu0
      %v2084 = vadd.f32 %v2021, %v2078
      %v2085 = vadd.f32 %v2022, %v2081
      %s2086 = scalar_lea.vmem %s4, 240
      %v2087 = vld [vmem:[%s2086] sm:$0xf]
      %v2088 = vld [vmem:[%s2086 + $0x4] sm:$0xf]
      %v2089 = vld [vmem:[%s2086 + $0x8] sm:$0xf]
      %v2090 = vld [vmem:[%s2086 + $0xc] sm:$0xf]
      %v2095 = vunpack.c.l.b16 %v2087
      %v2096 = vunpack.c.l.b16 %v2088
      %v2097 = vunpack.c.l.b16 %v2089
      %v2098 = vunpack.c.l.b16 %v2090
      %v2099 = vpack.c.b16 %v2096, %v2095
      %v2100 = vpack.c.b16 %v2098, %v2097
      %v2104 = vsel %vm1166, %v1144, 0
      %2106 = vmatprep.subr.bf16.mxu0 0
      %2107 = vmatpush1.bf16.msra.mxu0 0
      %2108 = vmatprep.subr.bf16.mxu0 0
      %2109 = vmatpush1.bf16.msra.mxu0 0
      %2110 = vmatprep.subr.bf16.mxu0 0
      %2111 = vmatpush1.bf16.msra.mxu0 0
      %2112 = vmatprep.subr.bf16.mxu0 0
      %2113 = vmatpush1.bf16.msra.mxu0 0
      %2114 = vmatprep.subr.bf16.mxu0 0
      %2115 = vmatpush1.bf16.msra.mxu0 0
      %2116 = vmatprep.subr.bf16.mxu0 0
      %2117 = vmatpush1.bf16.msra.mxu0 0
      %2118 = vmatprep.subr.bf16.mxu0 0
      %2119 = vmatpush1.bf16.msra.mxu0 %v2100
      %2120 = vmatprep.subr.bf16.mxu0 0
      %2121 = vmatpush1.bf16.msra.mxu0 %v2099
      %2122 = vmatprep.subr.bf16.mxu0 0
      %2123 = vmatpush2.bf16.msra.mxu0 0
      %2124 = vmatprep.subr.bf16.mxu0 0
      %2125 = vmatpush2.bf16.msra.mxu0 0
      %2126 = vmatprep.subr.bf16.mxu0 0
      %2127 = vmatpush2.bf16.msra.mxu0 0
      %2128 = vmatprep.subr.bf16.mxu0 0
      %2129 = vmatpush2.bf16.msra.mxu0 0
      %2130 = vmatprep.subr.bf16.mxu0 0
      %2131 = vmatpush2.bf16.msra.mxu0 0
      %2132 = vmatprep.subr.bf16.mxu0 0
      %2133 = vmatpush2.bf16.msra.mxu0 0
      %2134 = vmatprep.subr.bf16.mxu0 0
      %2135 = vmatpush2.bf16.msra.mxu0 0
      %2136 = vmatprep.subr.bf16.mxu0 0
      %2137 = vmatpush2.bf16.msra.mxu0 0
      %2138 = vmatprep.mubr.bf16.mxu0 0
      %2139 = vmatmul.mubr.bf16.gmra.mxu0 %v2104
      %v2140 = vpop.f32.mrf.mxu0
      %v2141 = vadd.f32 0.0, %v2140
      %v2142 = vpop.f32.mrf.mxu0
      %v2143 = vpop.f32.mrf.mxu0
      %v2144 = vadd.f32 0.0, %v2143
      %v2145 = vpop.f32.mrf.mxu0
      %2146 = vdwg.mxu0
      %v2147 = vadd.f32 %v2084, %v2141
      %v2148 = vadd.f32 %v2085, %v2144
      %v2149 = vld [vmem:[%s5] sm:$0x1]
      %v2151 = vlaneseq
      %v2152 = vshrl.u32 %v2151, 7
      %v2153 = vsub.s32 0, %v2152
      %v2154 = vrot.slane %v2149, %v2153
      %v2156 = vadd.f32 %v2147, %v2154
      %v2157 = vadd.f32 %v2148, %v2154
      %v2158 = vmax.f32 %v2156, 0.0
      %v2159 = vmax.f32 %v2157, 0.0
      %v2160 = vpack.c.bf16 %v2159, %v2158
      %v2161 = vld [vmem:[%s6] sm:$0xf]
      %v2162 = vld [vmem:[%s6 + $0x4] sm:$0xf]
      %v2163 = vld [vmem:[%s6 + $0x8] sm:$0xf]
      %v2164 = vld [vmem:[%s6 + $0xc] sm:$0xf]
      %v2165 = vld [vmem:[%s6 + $0x10] sm:$0xf]
      %v2166 = vld [vmem:[%s6 + $0x14] sm:$0xf]
      %v2167 = vld [vmem:[%s6 + $0x18] sm:$0xf]
      %v2168 = vld [vmem:[%s6 + $0x1c] sm:$0xf]
      %v2169 = vld [vmem:[%s6 + $0x20] sm:$0xf]
      %v2170 = vld [vmem:[%s6 + $0x24] sm:$0xf]
      %v2171 = vld [vmem:[%s6 + $0x28] sm:$0xf]
      %v2172 = vld [vmem:[%s6 + $0x2c] sm:$0xf]
      %v2173 = vld [vmem:[%s6 + $0x30] sm:$0xf]
      %v2174 = vld [vmem:[%s6 + $0x34] sm:$0xf]
      %v2175 = vld [vmem:[%s6 + $0x38] sm:$0xf]
      %v2176 = vld [vmem:[%s6 + $0x3c] sm:$0xf]
      %v2177 = vld [vmem:[%s6 + $0x40] sm:$0xf]
      %v2178 = vld [vmem:[%s6 + $0x44] sm:$0xf]
      %v2197 = vunpack.c.l.b16 %v2161
      %v2198 = vunpack.c.l.b16 %v2162
      %v2199 = vunpack.c.l.b16 %v2163
      %v2200 = vunpack.c.l.b16 %v2164
      %v2201 = vunpack.c.l.b16 %v2165
      %v2202 = vunpack.c.l.b16 %v2166
      %v2203 = vunpack.c.l.b16 %v2167
      %v2204 = vunpack.c.l.b16 %v2168
      %v2205 = vunpack.c.l.b16 %v2169
      %v2206 = vunpack.c.l.b16 %v2170
      %v2207 = vunpack.c.l.b16 %v2171
      %v2208 = vunpack.c.l.b16 %v2172
      %v2209 = vunpack.c.l.b16 %v2173
      %v2210 = vunpack.c.l.b16 %v2174
      %v2211 = vunpack.c.l.b16 %v2175
      %v2212 = vunpack.c.l.b16 %v2176
      %v2213 = vunpack.c.l.b16 %v2177
      %v2214 = vunpack.c.l.b16 %v2178
      %v2215 = vpack.c.b16 %v2198, %v2197
      %v2216 = vpack.c.b16 %v2200, %v2199
      %v2217 = vpack.c.b16 %v2202, %v2201
      %v2218 = vpack.c.b16 %v2204, %v2203
      %v2219 = vpack.c.b16 %v2206, %v2205
      %v2220 = vpack.c.b16 %v2208, %v2207
      %v2221 = vpack.c.b16 %v2210, %v2209
      %v2222 = vpack.c.b16 %v2212, %v2211
      %v2223 = vpack.c.b16 %v2214, %v2213
      %vm2224 = vcmask 130048
      %v2226 = vsel %vm2224, %v2215, 0
      %v2229 = vsel %vm2224, %v2216, 0
      %v2232 = vsel %vm2224, %v2217, 0
      %v2235 = vsel %vm2224, %v2218, 0
      %v2238 = vsel %vm2224, %v2219, 0
      %v2241 = vsel %vm2224, %v2220, 0
      %v2244 = vsel %vm2224, %v2221, 0
      %v2247 = vsel %vm2224, %v2222, 0
      %v2250 = vsel %vm2224, %v2223, 0
      %2252 = vmatprep.subr.bf16.mxu0 0
      %2253 = vmatpush1.bf16.msra.mxu0 0
      %2254 = vmatprep.subr.bf16.mxu0 0
      %2255 = vmatpush1.bf16.msra.mxu0 0
      %2256 = vmatprep.subr.bf16.mxu0 0
      %2257 = vmatpush1.bf16.msra.mxu0 0
      %2258 = vmatprep.subr.bf16.mxu0 0
      %2259 = vmatpush1.bf16.msra.mxu0 0
      %2260 = vmatprep.subr.bf16.mxu0 0
      %2261 = vmatpush1.bf16.msra.mxu0 0
      %2262 = vmatprep.subr.bf16.mxu0 0
      %2263 = vmatpush1.bf16.msra.mxu0 0
      %2264 = vmatprep.subr.bf16.mxu0 0
      %2265 = vmatpush1.bf16.msra.mxu0 0
      %2266 = vmatprep.subr.bf16.mxu0 0
      %2267 = vmatpush1.bf16.msra.mxu0 %v2160
      %2268 = vmatprep.subr.bf16.mxu0 0
      %2269 = vmatpush2.bf16.msra.mxu0 0
      %2270 = vmatprep.subr.bf16.mxu0 0
      %2271 = vmatpush2.bf16.msra.mxu0 0
      %2272 = vmatprep.subr.bf16.mxu0 0
      %2273 = vmatpush2.bf16.msra.mxu0 0
      %2274 = vmatprep.subr.bf16.mxu0 0
      %2275 = vmatpush2.bf16.msra.mxu0 0
      %2276 = vmatprep.subr.bf16.mxu0 0
      %2277 = vmatpush2.bf16.msra.mxu0 0
      %2278 = vmatprep.subr.bf16.mxu0 0
      %2279 = vmatpush2.bf16.msra.mxu0 0
      %2280 = vmatprep.subr.bf16.mxu0 0
      %2281 = vmatpush2.bf16.msra.mxu0 0
      %2282 = vmatprep.subr.bf16.mxu0 0
      %2283 = vmatpush2.bf16.msra.mxu0 0
      %2284 = vmatprep.mubr.bf16.mxu0 0
      %2285 = vmatmul.mubr.bf16.gmra.mxu0 %v2226
      %v2286 = vpop.f32.mrf.mxu0
      %v2287 = vadd.f32 0.0, %v2286
      %v2288 = vpop.f32.mrf.mxu0
      %v2289 = vpop.f32.mrf.mxu0
      %v2290 = vadd.f32 0.0, %v2289
      %v2291 = vpop.f32.mrf.mxu0
      %2292 = vmatprep.mubr.bf16.mxu0 0
      %2293 = vmatmul.mubr.bf16.gmra.mxu0 %v2229
      %v2294 = vpop.f32.mrf.mxu0
      %v2295 = vadd.f32 0.0, %v2294
      %v2296 = vpop.f32.mrf.mxu0
      %v2297 = vpop.f32.mrf.mxu0
      %v2298 = vadd.f32 0.0, %v2297
      %v2299 = vpop.f32.mrf.mxu0
      %2300 = vmatprep.mubr.bf16.mxu0 0
      %2301 = vmatmul.mubr.bf16.gmra.mxu0 %v2232
      %v2302 = vpop.f32.mrf.mxu0
      %v2303 = vadd.f32 0.0, %v2302
      %v2304 = vpop.f32.mrf.mxu0
      %v2305 = vpop.f32.mrf.mxu0
      %v2306 = vadd.f32 0.0, %v2305
      %v2307 = vpop.f32.mrf.mxu0
      %2308 = vmatprep.mubr.bf16.mxu0 0
      %2309 = vmatmul.mubr.bf16.gmra.mxu0 %v2235
      %v2310 = vpop.f32.mrf.mxu0
      %v2311 = vadd.f32 0.0, %v2310
      %v2312 = vpop.f32.mrf.mxu0
      %v2313 = vpop.f32.mrf.mxu0
      %v2314 = vadd.f32 0.0, %v2313
      %v2315 = vpop.f32.mrf.mxu0
      %2316 = vmatprep.mubr.bf16.mxu0 0
      %2317 = vmatmul.mubr.bf16.gmra.mxu0 %v2238
      %v2318 = vpop.f32.mrf.mxu0
      %v2319 = vadd.f32 0.0, %v2318
      %v2320 = vpop.f32.mrf.mxu0
      %v2321 = vpop.f32.mrf.mxu0
      %v2322 = vadd.f32 0.0, %v2321
      %v2323 = vpop.f32.mrf.mxu0
      %2324 = vmatprep.mubr.bf16.mxu0 0
      %2325 = vmatmul.mubr.bf16.gmra.mxu0 %v2241
      %v2326 = vpop.f32.mrf.mxu0
      %v2327 = vadd.f32 0.0, %v2326
      %v2328 = vpop.f32.mrf.mxu0
      %v2329 = vpop.f32.mrf.mxu0
      %v2330 = vadd.f32 0.0, %v2329
      %v2331 = vpop.f32.mrf.mxu0
      %2332 = vmatprep.mubr.bf16.mxu0 0
      %2333 = vmatmul.mubr.bf16.gmra.mxu0 %v2244
      %v2334 = vpop.f32.mrf.mxu0
      %v2335 = vadd.f32 0.0, %v2334
      %v2336 = vpop.f32.mrf.mxu0
      %v2337 = vpop.f32.mrf.mxu0
      %v2338 = vadd.f32 0.0, %v2337
      %v2339 = vpop.f32.mrf.mxu0
      %2340 = vmatprep.mubr.bf16.mxu0 0
      %2341 = vmatmul.mubr.bf16.gmra.mxu0 %v2247
      %v2342 = vpop.f32.mrf.mxu0
      %v2343 = vadd.f32 0.0, %v2342
      %v2344 = vpop.f32.mrf.mxu0
      %v2345 = vpop.f32.mrf.mxu0
      %v2346 = vadd.f32 0.0, %v2345
      %v2347 = vpop.f32.mrf.mxu0
      %2348 = vmatprep.mubr.bf16.mxu0 0
      %2349 = vmatmul.mubr.bf16.gmra.mxu0 %v2250
      %v2350 = vpop.f32.mrf.mxu0
      %v2351 = vadd.f32 0.0, %v2350
      %v2352 = vpop.f32.mrf.mxu0
      %v2353 = vpop.f32.mrf.mxu0
      %v2354 = vadd.f32 0.0, %v2353
      %v2355 = vpop.f32.mrf.mxu0
      %2356 = vdwg.mxu0
      %v2357 = vpack.c.bf16 %v2290, %v2287
      %v2358 = vpack.c.bf16 %v2298, %v2295
      %v2359 = vpack.c.bf16 %v2306, %v2303
      %v2360 = vpack.c.bf16 %v2314, %v2311
      %v2361 = vpack.c.bf16 %v2322, %v2319
      %v2362 = vpack.c.bf16 %v2330, %v2327
      %v2363 = vpack.c.bf16 %v2338, %v2335
      %v2364 = vpack.c.bf16 %v2346, %v2343
      %v2365 = vpack.c.bf16 %v2354, %v2351
      %v2366 = vld [vmem:[%s7] sm:$0xf]
      %v2367 = vld [vmem:[%s7 + $0x4] sm:$0xf]
      %v2368 = vld [vmem:[%s7 + $0x8] sm:$0xf]
      %v2369 = vld [vmem:[%s7 + $0xc] sm:$0xf]
      %v2370 = vld [vmem:[%s7 + $0x10] sm:$0xf]
      %v2371 = vld [vmem:[%s7 + $0x14] sm:$0xf]
      %v2372 = vld [vmem:[%s7 + $0x18] sm:$0xf]
      %v2373 = vld [vmem:[%s7 + $0x1c] sm:$0xf]
      %s2374 = scalar_lea.vmem %s7, 32
      %v2375 = vld [vmem:[%s2374] sm:$0xf]
      %v2376 = vld [vmem:[%s2374 + $0x4] sm:$0xf]
      %v2377 = vld [vmem:[%s2374 + $0x8] sm:$0xf]
      %v2378 = vld [vmem:[%s2374 + $0xc] sm:$0xf]
      %v2379 = vld [vmem:[%s2374 + $0x10] sm:$0xf]
      %v2380 = vld [vmem:[%s2374 + $0x14] sm:$0xf]
      %v2381 = vld [vmem:[%s2374 + $0x18] sm:$0xf]
      %v2382 = vld [vmem:[%s2374 + $0x1c] sm:$0xf]
      %v2391 = vunpack.c.l.b16 %v2375
      %v2392 = vunpack.c.l.b16 %v2376
      %v2393 = vunpack.c.l.b16 %v2377
      %v2394 = vunpack.c.l.b16 %v2378
      %v2395 = vunpack.c.l.b16 %v2379
      %v2396 = vunpack.c.l.b16 %v2380
      %v2397 = vunpack.c.l.b16 %v2381
      %v2398 = vunpack.c.l.b16 %v2382
      %v2399 = vpack.c.b16 %v2392, %v2391
      %v2400 = vpack.c.b16 %v2394, %v2393
      %v2401 = vpack.c.b16 %v2396, %v2395
      %v2402 = vpack.c.b16 %v2398, %v2397
      %v2408 = vsel %vm919, %v2358, 0
      %2410 = vmatprep.subr.bf16.mxu0 0
      %2411 = vmatpush1.bf16.msra.mxu0 0
      %2412 = vmatprep.subr.bf16.mxu0 0
      %2413 = vmatpush1.bf16.msra.mxu0 0
      %2414 = vmatprep.subr.bf16.mxu0 0
      %2415 = vmatpush1.bf16.msra.mxu0 0
      %2416 = vmatprep.subr.bf16.mxu0 0
      %2417 = vmatpush1.bf16.msra.mxu0 0
      %2418 = vmatprep.subr.bf16.mxu0 0
      %2419 = vmatpush1.bf16.msra.mxu0 %v2402
      %2420 = vmatprep.subr.bf16.mxu0 0
      %2421 = vmatpush1.bf16.msra.mxu0 %v2401
      %2422 = vmatprep.subr.bf16.mxu0 0
      %2423 = vmatpush1.bf16.msra.mxu0 %v2400
      %2424 = vmatprep.subr.bf16.mxu0 0
      %2425 = vmatpush1.bf16.msra.mxu0 %v2399
      %2426 = vmatprep.subr.bf16.mxu0 0
      %2427 = vmatpush2.bf16.msra.mxu0 0
      %2428 = vmatprep.subr.bf16.mxu0 0
      %2429 = vmatpush2.bf16.msra.mxu0 0
      %2430 = vmatprep.subr.bf16.mxu0 0
      %2431 = vmatpush2.bf16.msra.mxu0 0
      %2432 = vmatprep.subr.bf16.mxu0 0
      %2433 = vmatpush2.bf16.msra.mxu0 0
      %2434 = vmatprep.subr.bf16.mxu0 0
      %2435 = vmatpush2.bf16.msra.mxu0 0
      %2436 = vmatprep.subr.bf16.mxu0 0
      %2437 = vmatpush2.bf16.msra.mxu0 0
      %2438 = vmatprep.subr.bf16.mxu0 0
      %2439 = vmatpush2.bf16.msra.mxu0 0
      %2440 = vmatprep.subr.bf16.mxu0 0
      %2441 = vmatpush2.bf16.msra.mxu0 0
      %2442 = vmatprep.mubr.bf16.mxu0 0
      %2443 = vmatmul.mubr.bf16.gmra.mxu0 %v2408
      %v2444 = vpop.f32.mrf.mxu0
      %v2445 = vadd.f32 0.0, %v2444
      %v2446 = vpop.f32.mrf.mxu0
      %v2447 = vpop.f32.mrf.mxu0
      %v2448 = vadd.f32 0.0, %v2447
      %v2449 = vpop.f32.mrf.mxu0
      %2450 = vdwg.mxu0
      %v2459 = vunpack.c.l.b16 %v2366
      %v2460 = vunpack.c.l.b16 %v2367
      %v2461 = vunpack.c.l.b16 %v2368
      %v2462 = vunpack.c.l.b16 %v2369
      %v2463 = vunpack.c.l.b16 %v2370
      %v2464 = vunpack.c.l.b16 %v2371
      %v2465 = vunpack.c.l.b16 %v2372
      %v2466 = vunpack.c.l.b16 %v2373
      %v2467 = vpack.c.b16 %v2460, %v2459
      %v2468 = vpack.c.b16 %v2462, %v2461
      %v2469 = vpack.c.b16 %v2464, %v2463
      %v2470 = vpack.c.b16 %v2466, %v2465
      %v2476 = vsel %vm919, %v2357, 0
      %2478 = vmatprep.subr.bf16.mxu0 0
      %2479 = vmatpush1.bf16.msra.mxu0 0
      %2480 = vmatprep.subr.bf16.mxu0 0
      %2481 = vmatpush1.bf16.msra.mxu0 0
      %2482 = vmatprep.subr.bf16.mxu0 0
      %2483 = vmatpush1.bf16.msra.mxu0 0
      %2484 = vmatprep.subr.bf16.mxu0 0
      %2485 = vmatpush1.bf16.msra.mxu0 0
      %2486 = vmatprep.subr.bf16.mxu0 0
      %2487 = vmatpush1.bf16.msra.mxu0 %v2470
      %2488 = vmatprep.subr.bf16.mxu0 0
      %2489 = vmatpush1.bf16.msra.mxu0 %v2469
      %2490 = vmatprep.subr.bf16.mxu0 0
      %2491 = vmatpush1.bf16.msra.mxu0 %v2468
      %2492 = vmatprep.subr.bf16.mxu0 0
      %2493 = vmatpush1.bf16.msra.mxu0 %v2467
      %2494 = vmatprep.subr.bf16.mxu0 0
      %2495 = vmatpush2.bf16.msra.mxu0 0
      %2496 = vmatprep.subr.bf16.mxu0 0
      %2497 = vmatpush2.bf16.msra.mxu0 0
      %2498 = vmatprep.subr.bf16.mxu0 0
      %2499 = vmatpush2.bf16.msra.mxu0 0
      %2500 = vmatprep.subr.bf16.mxu0 0
      %2501 = vmatpush2.bf16.msra.mxu0 0
      %2502 = vmatprep.subr.bf16.mxu0 0
      %2503 = vmatpush2.bf16.msra.mxu0 0
      %2504 = vmatprep.subr.bf16.mxu0 0
      %2505 = vmatpush2.bf16.msra.mxu0 0
      %2506 = vmatprep.subr.bf16.mxu0 0
      %2507 = vmatpush2.bf16.msra.mxu0 0
      %2508 = vmatprep.subr.bf16.mxu0 0
      %2509 = vmatpush2.bf16.msra.mxu0 0
      %2510 = vmatprep.mubr.bf16.mxu0 0
      %2511 = vmatmul.mubr.bf16.gmra.mxu0 %v2476
      %v2512 = vpop.f32.mrf.mxu0
      %v2513 = vadd.f32 %v2445, %v2512
      %v2514 = vpop.f32.mrf.mxu0
      %v2515 = vpop.f32.mrf.mxu0
      %v2516 = vadd.f32 %v2448, %v2515
      %v2517 = vpop.f32.mrf.mxu0
      %2518 = vdwg.mxu0
      %s2519 = scalar_lea.vmem %s7, 64
      %v2520 = vld [vmem:[%s2519] sm:$0xf]
      %v2521 = vld [vmem:[%s2519 + $0x4] sm:$0xf]
      %v2522 = vld [vmem:[%s2519 + $0x8] sm:$0xf]
      %v2523 = vld [vmem:[%s2519 + $0xc] sm:$0xf]
      %v2524 = vld [vmem:[%s2519 + $0x10] sm:$0xf]
      %v2525 = vld [vmem:[%s2519 + $0x14] sm:$0xf]
      %v2526 = vld [vmem:[%s2519 + $0x18] sm:$0xf]
      %v2527 = vld [vmem:[%s2519 + $0x1c] sm:$0xf]
      %v2536 = vunpack.c.l.b16 %v2520
      %v2537 = vunpack.c.l.b16 %v2521
      %v2538 = vunpack.c.l.b16 %v2522
      %v2539 = vunpack.c.l.b16 %v2523
      %v2540 = vunpack.c.l.b16 %v2524
      %v2541 = vunpack.c.l.b16 %v2525
      %v2542 = vunpack.c.l.b16 %v2526
      %v2543 = vunpack.c.l.b16 %v2527
      %v2544 = vpack.c.b16 %v2537, %v2536
      %v2545 = vpack.c.b16 %v2539, %v2538
      %v2546 = vpack.c.b16 %v2541, %v2540
      %v2547 = vpack.c.b16 %v2543, %v2542
      %v2553 = vsel %vm919, %v2359, 0
      %2555 = vmatprep.subr.bf16.mxu0 0
      %2556 = vmatpush1.bf16.msra.mxu0 0
      %2557 = vmatprep.subr.bf16.mxu0 0
      %2558 = vmatpush1.bf16.msra.mxu0 0
      %2559 = vmatprep.subr.bf16.mxu0 0
      %2560 = vmatpush1.bf16.msra.mxu0 0
      %2561 = vmatprep.subr.bf16.mxu0 0
      %2562 = vmatpush1.bf16.msra.mxu0 0
      %2563 = vmatprep.subr.bf16.mxu0 0
      %2564 = vmatpush1.bf16.msra.mxu0 %v2547
      %2565 = vmatprep.subr.bf16.mxu0 0
      %2566 = vmatpush1.bf16.msra.mxu0 %v2546
      %2567 = vmatprep.subr.bf16.mxu0 0
      %2568 = vmatpush1.bf16.msra.mxu0 %v2545
      %2569 = vmatprep.subr.bf16.mxu0 0
      %2570 = vmatpush1.bf16.msra.mxu0 %v2544
      %2571 = vmatprep.subr.bf16.mxu0 0
      %2572 = vmatpush2.bf16.msra.mxu0 0
      %2573 = vmatprep.subr.bf16.mxu0 0
      %2574 = vmatpush2.bf16.msra.mxu0 0
      %2575 = vmatprep.subr.bf16.mxu0 0
      %2576 = vmatpush2.bf16.msra.mxu0 0
      %2577 = vmatprep.subr.bf16.mxu0 0
      %2578 = vmatpush2.bf16.msra.mxu0 0
      %2579 = vmatprep.subr.bf16.mxu0 0
      %2580 = vmatpush2.bf16.msra.mxu0 0
      %2581 = vmatprep.subr.bf16.mxu0 0
      %2582 = vmatpush2.bf16.msra.mxu0 0
      %2583 = vmatprep.subr.bf16.mxu0 0
      %2584 = vmatpush2.bf16.msra.mxu0 0
      %2585 = vmatprep.subr.bf16.mxu0 0
      %2586 = vmatpush2.bf16.msra.mxu0 0
      %2587 = vmatprep.mubr.bf16.mxu0 0
      %2588 = vmatmul.mubr.bf16.gmra.mxu0 %v2553
      %v2589 = vpop.f32.mrf.mxu0
      %v2590 = vadd.f32 0.0, %v2589
      %v2591 = vpop.f32.mrf.mxu0
      %v2592 = vpop.f32.mrf.mxu0
      %v2593 = vadd.f32 0.0, %v2592
      %v2594 = vpop.f32.mrf.mxu0
      %2595 = vdwg.mxu0
      %v2596 = vadd.f32 %v2513, %v2590
      %v2597 = vadd.f32 %v2516, %v2593
      %s2598 = scalar_lea.vmem %s7, 96
      %v2599 = vld [vmem:[%s2598] sm:$0xf]
      %v2600 = vld [vmem:[%s2598 + $0x4] sm:$0xf]
      %v2601 = vld [vmem:[%s2598 + $0x8] sm:$0xf]
      %v2602 = vld [vmem:[%s2598 + $0xc] sm:$0xf]
      %v2603 = vld [vmem:[%s2598 + $0x10] sm:$0xf]
      %v2604 = vld [vmem:[%s2598 + $0x14] sm:$0xf]
      %v2605 = vld [vmem:[%s2598 + $0x18] sm:$0xf]
      %v2606 = vld [vmem:[%s2598 + $0x1c] sm:$0xf]
      %v2615 = vunpack.c.l.b16 %v2599
      %v2616 = vunpack.c.l.b16 %v2600
      %v2617 = vunpack.c.l.b16 %v2601
      %v2618 = vunpack.c.l.b16 %v2602
      %v2619 = vunpack.c.l.b16 %v2603
      %v2620 = vunpack.c.l.b16 %v2604
      %v2621 = vunpack.c.l.b16 %v2605
      %v2622 = vunpack.c.l.b16 %v2606
      %v2623 = vpack.c.b16 %v2616, %v2615
      %v2624 = vpack.c.b16 %v2618, %v2617
      %v2625 = vpack.c.b16 %v2620, %v2619
      %v2626 = vpack.c.b16 %v2622, %v2621
      %v2632 = vsel %vm919, %v2360, 0
      %2634 = vmatprep.subr.bf16.mxu0 0
      %2635 = vmatpush1.bf16.msra.mxu0 0
      %2636 = vmatprep.subr.bf16.mxu0 0
      %2637 = vmatpush1.bf16.msra.mxu0 0
      %2638 = vmatprep.subr.bf16.mxu0 0
      %2639 = vmatpush1.bf16.msra.mxu0 0
      %2640 = vmatprep.subr.bf16.mxu0 0
      %2641 = vmatpush1.bf16.msra.mxu0 0
      %2642 = vmatprep.subr.bf16.mxu0 0
      %2643 = vmatpush1.bf16.msra.mxu0 %v2626
      %2644 = vmatprep.subr.bf16.mxu0 0
      %2645 = vmatpush1.bf16.msra.mxu0 %v2625
      %2646 = vmatprep.subr.bf16.mxu0 0
      %2647 = vmatpush1.bf16.msra.mxu0 %v2624
      %2648 = vmatprep.subr.bf16.mxu0 0
      %2649 = vmatpush1.bf16.msra.mxu0 %v2623
      %2650 = vmatprep.subr.bf16.mxu0 0
      %2651 = vmatpush2.bf16.msra.mxu0 0
      %2652 = vmatprep.subr.bf16.mxu0 0
      %2653 = vmatpush2.bf16.msra.mxu0 0
      %2654 = vmatprep.subr.bf16.mxu0 0
      %2655 = vmatpush2.bf16.msra.mxu0 0
      %2656 = vmatprep.subr.bf16.mxu0 0
      %2657 = vmatpush2.bf16.msra.mxu0 0
      %2658 = vmatprep.subr.bf16.mxu0 0
      %2659 = vmatpush2.bf16.msra.mxu0 0
      %2660 = vmatprep.subr.bf16.mxu0 0
      %2661 = vmatpush2.bf16.msra.mxu0 0
      %2662 = vmatprep.subr.bf16.mxu0 0
      %2663 = vmatpush2.bf16.msra.mxu0 0
      %2664 = vmatprep.subr.bf16.mxu0 0
      %2665 = vmatpush2.bf16.msra.mxu0 0
      %2666 = vmatprep.mubr.bf16.mxu0 0
      %2667 = vmatmul.mubr.bf16.gmra.mxu0 %v2632
      %v2668 = vpop.f32.mrf.mxu0
      %v2669 = vadd.f32 0.0, %v2668
      %v2670 = vpop.f32.mrf.mxu0
      %v2671 = vpop.f32.mrf.mxu0
      %v2672 = vadd.f32 0.0, %v2671
      %v2673 = vpop.f32.mrf.mxu0
      %2674 = vdwg.mxu0
      %v2675 = vadd.f32 %v2596, %v2669
      %v2676 = vadd.f32 %v2597, %v2672
      %s2677 = scalar_lea.vmem %s7, 128
      %v2678 = vld [vmem:[%s2677] sm:$0xf]
      %v2679 = vld [vmem:[%s2677 + $0x4] sm:$0xf]
      %v2680 = vld [vmem:[%s2677 + $0x8] sm:$0xf]
      %v2681 = vld [vmem:[%s2677 + $0xc] sm:$0xf]
      %v2682 = vld [vmem:[%s2677 + $0x10] sm:$0xf]
      %v2683 = vld [vmem:[%s2677 + $0x14] sm:$0xf]
      %v2684 = vld [vmem:[%s2677 + $0x18] sm:$0xf]
      %v2685 = vld [vmem:[%s2677 + $0x1c] sm:$0xf]
      %v2694 = vunpack.c.l.b16 %v2678
      %v2695 = vunpack.c.l.b16 %v2679
      %v2696 = vunpack.c.l.b16 %v2680
      %v2697 = vunpack.c.l.b16 %v2681
      %v2698 = vunpack.c.l.b16 %v2682
      %v2699 = vunpack.c.l.b16 %v2683
      %v2700 = vunpack.c.l.b16 %v2684
      %v2701 = vunpack.c.l.b16 %v2685
      %v2702 = vpack.c.b16 %v2695, %v2694
      %v2703 = vpack.c.b16 %v2697, %v2696
      %v2704 = vpack.c.b16 %v2699, %v2698
      %v2705 = vpack.c.b16 %v2701, %v2700
      %v2711 = vsel %vm919, %v2361, 0
      %2713 = vmatprep.subr.bf16.mxu0 0
      %2714 = vmatpush1.bf16.msra.mxu0 0
      %2715 = vmatprep.subr.bf16.mxu0 0
      %2716 = vmatpush1.bf16.msra.mxu0 0
      %2717 = vmatprep.subr.bf16.mxu0 0
      %2718 = vmatpush1.bf16.msra.mxu0 0
      %2719 = vmatprep.subr.bf16.mxu0 0
      %2720 = vmatpush1.bf16.msra.mxu0 0
      %2721 = vmatprep.subr.bf16.mxu0 0
      %2722 = vmatpush1.bf16.msra.mxu0 %v2705
      %2723 = vmatprep.subr.bf16.mxu0 0
      %2724 = vmatpush1.bf16.msra.mxu0 %v2704
      %2725 = vmatprep.subr.bf16.mxu0 0
      %2726 = vmatpush1.bf16.msra.mxu0 %v2703
      %2727 = vmatprep.subr.bf16.mxu0 0
      %2728 = vmatpush1.bf16.msra.mxu0 %v2702
      %2729 = vmatprep.subr.bf16.mxu0 0
      %2730 = vmatpush2.bf16.msra.mxu0 0
      %2731 = vmatprep.subr.bf16.mxu0 0
      %2732 = vmatpush2.bf16.msra.mxu0 0
      %2733 = vmatprep.subr.bf16.mxu0 0
      %2734 = vmatpush2.bf16.msra.mxu0 0
      %2735 = vmatprep.subr.bf16.mxu0 0
      %2736 = vmatpush2.bf16.msra.mxu0 0
      %2737 = vmatprep.subr.bf16.mxu0 0
      %2738 = vmatpush2.bf16.msra.mxu0 0
      %2739 = vmatprep.subr.bf16.mxu0 0
      %2740 = vmatpush2.bf16.msra.mxu0 0
      %2741 = vmatprep.subr.bf16.mxu0 0
      %2742 = vmatpush2.bf16.msra.mxu0 0
      %2743 = vmatprep.subr.bf16.mxu0 0
      %2744 = vmatpush2.bf16.msra.mxu0 0
      %2745 = vmatprep.mubr.bf16.mxu0 0
      %2746 = vmatmul.mubr.bf16.gmra.mxu0 %v2711
      %v2747 = vpop.f32.mrf.mxu0
      %v2748 = vadd.f32 0.0, %v2747
      %v2749 = vpop.f32.mrf.mxu0
      %v2750 = vpop.f32.mrf.mxu0
      %v2751 = vadd.f32 0.0, %v2750
      %v2752 = vpop.f32.mrf.mxu0
      %2753 = vdwg.mxu0
      %v2754 = vadd.f32 %v2675, %v2748
      %v2755 = vadd.f32 %v2676, %v2751
      %s2756 = scalar_lea.vmem %s7, 160
      %v2757 = vld [vmem:[%s2756] sm:$0xf]
      %v2758 = vld [vmem:[%s2756 + $0x4] sm:$0xf]
      %v2759 = vld [vmem:[%s2756 + $0x8] sm:$0xf]
      %v2760 = vld [vmem:[%s2756 + $0xc] sm:$0xf]
      %v2761 = vld [vmem:[%s2756 + $0x10] sm:$0xf]
      %v2762 = vld [vmem:[%s2756 + $0x14] sm:$0xf]
      %v2763 = vld [vmem:[%s2756 + $0x18] sm:$0xf]
      %v2764 = vld [vmem:[%s2756 + $0x1c] sm:$0xf]
      %v2773 = vunpack.c.l.b16 %v2757
      %v2774 = vunpack.c.l.b16 %v2758
      %v2775 = vunpack.c.l.b16 %v2759
      %v2776 = vunpack.c.l.b16 %v2760
      %v2777 = vunpack.c.l.b16 %v2761
      %v2778 = vunpack.c.l.b16 %v2762
      %v2779 = vunpack.c.l.b16 %v2763
      %v2780 = vunpack.c.l.b16 %v2764
      %v2781 = vpack.c.b16 %v2774, %v2773
      %v2782 = vpack.c.b16 %v2776, %v2775
      %v2783 = vpack.c.b16 %v2778, %v2777
      %v2784 = vpack.c.b16 %v2780, %v2779
      %v2790 = vsel %vm919, %v2362, 0
      %2792 = vmatprep.subr.bf16.mxu0 0
      %2793 = vmatpush1.bf16.msra.mxu0 0
      %2794 = vmatprep.subr.bf16.mxu0 0
      %2795 = vmatpush1.bf16.msra.mxu0 0
      %2796 = vmatprep.subr.bf16.mxu0 0
      %2797 = vmatpush1.bf16.msra.mxu0 0
      %2798 = vmatprep.subr.bf16.mxu0 0
      %2799 = vmatpush1.bf16.msra.mxu0 0
      %2800 = vmatprep.subr.bf16.mxu0 0
      %2801 = vmatpush1.bf16.msra.mxu0 %v2784
      %2802 = vmatprep.subr.bf16.mxu0 0
      %2803 = vmatpush1.bf16.msra.mxu0 %v2783
      %2804 = vmatprep.subr.bf16.mxu0 0
      %2805 = vmatpush1.bf16.msra.mxu0 %v2782
      %2806 = vmatprep.subr.bf16.mxu0 0
      %2807 = vmatpush1.bf16.msra.mxu0 %v2781
      %2808 = vmatprep.subr.bf16.mxu0 0
      %2809 = vmatpush2.bf16.msra.mxu0 0
      %2810 = vmatprep.subr.bf16.mxu0 0
      %2811 = vmatpush2.bf16.msra.mxu0 0
      %2812 = vmatprep.subr.bf16.mxu0 0
      %2813 = vmatpush2.bf16.msra.mxu0 0
      %2814 = vmatprep.subr.bf16.mxu0 0
      %2815 = vmatpush2.bf16.msra.mxu0 0
      %2816 = vmatprep.subr.bf16.mxu0 0
      %2817 = vmatpush2.bf16.msra.mxu0 0
      %2818 = vmatprep.subr.bf16.mxu0 0
      %2819 = vmatpush2.bf16.msra.mxu0 0
      %2820 = vmatprep.subr.bf16.mxu0 0
      %2821 = vmatpush2.bf16.msra.mxu0 0
      %2822 = vmatprep.subr.bf16.mxu0 0
      %2823 = vmatpush2.bf16.msra.mxu0 0
      %2824 = vmatprep.mubr.bf16.mxu0 0
      %2825 = vmatmul.mubr.bf16.gmra.mxu0 %v2790
      %v2826 = vpop.f32.mrf.mxu0
      %v2827 = vadd.f32 0.0, %v2826
      %v2828 = vpop.f32.mrf.mxu0
      %v2829 = vpop.f32.mrf.mxu0
      %v2830 = vadd.f32 0.0, %v2829
      %v2831 = vpop.f32.mrf.mxu0
      %2832 = vdwg.mxu0
      %v2833 = vadd.f32 %v2754, %v2827
      %v2834 = vadd.f32 %v2755, %v2830
      %s2835 = scalar_lea.vmem %s7, 192
      %v2836 = vld [vmem:[%s2835] sm:$0xf]
      %v2837 = vld [vmem:[%s2835 + $0x4] sm:$0xf]
      %v2838 = vld [vmem:[%s2835 + $0x8] sm:$0xf]
      %v2839 = vld [vmem:[%s2835 + $0xc] sm:$0xf]
      %v2840 = vld [vmem:[%s2835 + $0x10] sm:$0xf]
      %v2841 = vld [vmem:[%s2835 + $0x14] sm:$0xf]
      %v2842 = vld [vmem:[%s2835 + $0x18] sm:$0xf]
      %v2843 = vld [vmem:[%s2835 + $0x1c] sm:$0xf]
      %v2852 = vunpack.c.l.b16 %v2836
      %v2853 = vunpack.c.l.b16 %v2837
      %v2854 = vunpack.c.l.b16 %v2838
      %v2855 = vunpack.c.l.b16 %v2839
      %v2856 = vunpack.c.l.b16 %v2840
      %v2857 = vunpack.c.l.b16 %v2841
      %v2858 = vunpack.c.l.b16 %v2842
      %v2859 = vunpack.c.l.b16 %v2843
      %v2860 = vpack.c.b16 %v2853, %v2852
      %v2861 = vpack.c.b16 %v2855, %v2854
      %v2862 = vpack.c.b16 %v2857, %v2856
      %v2863 = vpack.c.b16 %v2859, %v2858
      %v2869 = vsel %vm919, %v2363, 0
      %2871 = vmatprep.subr.bf16.mxu0 0
      %2872 = vmatpush1.bf16.msra.mxu0 0
      %2873 = vmatprep.subr.bf16.mxu0 0
      %2874 = vmatpush1.bf16.msra.mxu0 0
      %2875 = vmatprep.subr.bf16.mxu0 0
      %2876 = vmatpush1.bf16.msra.mxu0 0
      %2877 = vmatprep.subr.bf16.mxu0 0
      %2878 = vmatpush1.bf16.msra.mxu0 0
      %2879 = vmatprep.subr.bf16.mxu0 0
      %2880 = vmatpush1.bf16.msra.mxu0 %v2863
      %2881 = vmatprep.subr.bf16.mxu0 0
      %2882 = vmatpush1.bf16.msra.mxu0 %v2862
      %2883 = vmatprep.subr.bf16.mxu0 0
      %2884 = vmatpush1.bf16.msra.mxu0 %v2861
      %2885 = vmatprep.subr.bf16.mxu0 0
      %2886 = vmatpush1.bf16.msra.mxu0 %v2860
      %2887 = vmatprep.subr.bf16.mxu0 0
      %2888 = vmatpush2.bf16.msra.mxu0 0
      %2889 = vmatprep.subr.bf16.mxu0 0
      %2890 = vmatpush2.bf16.msra.mxu0 0
      %2891 = vmatprep.subr.bf16.mxu0 0
      %2892 = vmatpush2.bf16.msra.mxu0 0
      %2893 = vmatprep.subr.bf16.mxu0 0
      %2894 = vmatpush2.bf16.msra.mxu0 0
      %2895 = vmatprep.subr.bf16.mxu0 0
      %2896 = vmatpush2.bf16.msra.mxu0 0
      %2897 = vmatprep.subr.bf16.mxu0 0
      %2898 = vmatpush2.bf16.msra.mxu0 0
      %2899 = vmatprep.subr.bf16.mxu0 0
      %2900 = vmatpush2.bf16.msra.mxu0 0
      %2901 = vmatprep.subr.bf16.mxu0 0
      %2902 = vmatpush2.bf16.msra.mxu0 0
      %2903 = vmatprep.mubr.bf16.mxu0 0
      %2904 = vmatmul.mubr.bf16.gmra.mxu0 %v2869
      %v2905 = vpop.f32.mrf.mxu0
      %v2906 = vadd.f32 0.0, %v2905
      %v2907 = vpop.f32.mrf.mxu0
      %v2908 = vpop.f32.mrf.mxu0
      %v2909 = vadd.f32 0.0, %v2908
      %v2910 = vpop.f32.mrf.mxu0
      %2911 = vdwg.mxu0
      %v2912 = vadd.f32 %v2833, %v2906
      %v2913 = vadd.f32 %v2834, %v2909
      %s2914 = scalar_lea.vmem %s7, 224
      %v2915 = vld [vmem:[%s2914] sm:$0xf]
      %v2916 = vld [vmem:[%s2914 + $0x4] sm:$0xf]
      %v2917 = vld [vmem:[%s2914 + $0x8] sm:$0xf]
      %v2918 = vld [vmem:[%s2914 + $0xc] sm:$0xf]
      %v2919 = vld [vmem:[%s2914 + $0x10] sm:$0xf]
      %v2920 = vld [vmem:[%s2914 + $0x14] sm:$0xf]
      %v2921 = vld [vmem:[%s2914 + $0x18] sm:$0xf]
      %v2922 = vld [vmem:[%s2914 + $0x1c] sm:$0xf]
      %v2931 = vunpack.c.l.b16 %v2915
      %v2932 = vunpack.c.l.b16 %v2916
      %v2933 = vunpack.c.l.b16 %v2917
      %v2934 = vunpack.c.l.b16 %v2918
      %v2935 = vunpack.c.l.b16 %v2919
      %v2936 = vunpack.c.l.b16 %v2920
      %v2937 = vunpack.c.l.b16 %v2921
      %v2938 = vunpack.c.l.b16 %v2922
      %v2939 = vpack.c.b16 %v2932, %v2931
      %v2940 = vpack.c.b16 %v2934, %v2933
      %v2941 = vpack.c.b16 %v2936, %v2935
      %v2942 = vpack.c.b16 %v2938, %v2937
      %v2948 = vsel %vm919, %v2364, 0
      %2950 = vmatprep.subr.bf16.mxu0 0
      %2951 = vmatpush1.bf16.msra.mxu0 0
      %2952 = vmatprep.subr.bf16.mxu0 0
      %2953 = vmatpush1.bf16.msra.mxu0 0
      %2954 = vmatprep.subr.bf16.mxu0 0
      %2955 = vmatpush1.bf16.msra.mxu0 0
      %2956 = vmatprep.subr.bf16.mxu0 0
      %2957 = vmatpush1.bf16.msra.mxu0 0
      %2958 = vmatprep.subr.bf16.mxu0 0
      %2959 = vmatpush1.bf16.msra.mxu0 %v2942
      %2960 = vmatprep.subr.bf16.mxu0 0
      %2961 = vmatpush1.bf16.msra.mxu0 %v2941
      %2962 = vmatprep.subr.bf16.mxu0 0
      %2963 = vmatpush1.bf16.msra.mxu0 %v2940
      %2964 = vmatprep.subr.bf16.mxu0 0
      %2965 = vmatpush1.bf16.msra.mxu0 %v2939
      %2966 = vmatprep.subr.bf16.mxu0 0
      %2967 = vmatpush2.bf16.msra.mxu0 0
      %2968 = vmatprep.subr.bf16.mxu0 0
      %2969 = vmatpush2.bf16.msra.mxu0 0
      %2970 = vmatprep.subr.bf16.mxu0 0
      %2971 = vmatpush2.bf16.msra.mxu0 0
      %2972 = vmatprep.subr.bf16.mxu0 0
      %2973 = vmatpush2.bf16.msra.mxu0 0
      %2974 = vmatprep.subr.bf16.mxu0 0
      %2975 = vmatpush2.bf16.msra.mxu0 0
      %2976 = vmatprep.subr.bf16.mxu0 0
      %2977 = vmatpush2.bf16.msra.mxu0 0
      %2978 = vmatprep.subr.bf16.mxu0 0
      %2979 = vmatpush2.bf16.msra.mxu0 0
      %2980 = vmatprep.subr.bf16.mxu0 0
      %2981 = vmatpush2.bf16.msra.mxu0 0
      %2982 = vmatprep.mubr.bf16.mxu0 0
      %2983 = vmatmul.mubr.bf16.gmra.mxu0 %v2948
      %v2984 = vpop.f32.mrf.mxu0
      %v2985 = vadd.f32 0.0, %v2984
      %v2986 = vpop.f32.mrf.mxu0
      %v2987 = vpop.f32.mrf.mxu0
      %v2988 = vadd.f32 0.0, %v2987
      %v2989 = vpop.f32.mrf.mxu0
      %2990 = vdwg.mxu0
      %v2991 = vadd.f32 %v2912, %v2985
      %v2992 = vadd.f32 %v2913, %v2988
      %s2993 = scalar_lea.vmem %s7, 256
      %v2994 = vld [vmem:[%s2993] sm:$0xf]
      %v2995 = vld [vmem:[%s2993 + $0x4] sm:$0xf]
      %v2996 = vld [vmem:[%s2993 + $0x8] sm:$0xf]
      %v2997 = vld [vmem:[%s2993 + $0xc] sm:$0xf]
      %v2998 = vld [vmem:[%s2993 + $0x10] sm:$0xf]
      %v2999 = vld [vmem:[%s2993 + $0x14] sm:$0xf]
      %v3000 = vld [vmem:[%s2993 + $0x18] sm:$0xf]
      %v3001 = vld [vmem:[%s2993 + $0x1c] sm:$0xf]
      %v3010 = vunpack.c.l.b16 %v2994
      %v3011 = vunpack.c.l.b16 %v2995
      %v3012 = vunpack.c.l.b16 %v2996
      %v3013 = vunpack.c.l.b16 %v2997
      %v3014 = vunpack.c.l.b16 %v2998
      %v3015 = vunpack.c.l.b16 %v2999
      %v3016 = vunpack.c.l.b16 %v3000
      %v3017 = vunpack.c.l.b16 %v3001
      %v3018 = vpack.c.b16 %v3011, %v3010
      %v3019 = vpack.c.b16 %v3013, %v3012
      %v3020 = vpack.c.b16 %v3015, %v3014
      %v3021 = vpack.c.b16 %v3017, %v3016
      %v3027 = vsel %vm919, %v2365, 0
      %3029 = vmatprep.subr.bf16.mxu0 0
      %3030 = vmatpush1.bf16.msra.mxu0 0
      %3031 = vmatprep.subr.bf16.mxu0 0
      %3032 = vmatpush1.bf16.msra.mxu0 0
      %3033 = vmatprep.subr.bf16.mxu0 0
      %3034 = vmatpush1.bf16.msra.mxu0 0
      %3035 = vmatprep.subr.bf16.mxu0 0
      %3036 = vmatpush1.bf16.msra.mxu0 0
      %3037 = vmatprep.subr.bf16.mxu0 0
      %3038 = vmatpush1.bf16.msra.mxu0 %v3021
      %3039 = vmatprep.subr.bf16.mxu0 0
      %3040 = vmatpush1.bf16.msra.mxu0 %v3020
      %3041 = vmatprep.subr.bf16.mxu0 0
      %3042 = vmatpush1.bf16.msra.mxu0 %v3019
      %3043 = vmatprep.subr.bf16.mxu0 0
      %3044 = vmatpush1.bf16.msra.mxu0 %v3018
      %3045 = vmatprep.subr.bf16.mxu0 0
      %3046 = vmatpush2.bf16.msra.mxu0 0
      %3047 = vmatprep.subr.bf16.mxu0 0
      %3048 = vmatpush2.bf16.msra.mxu0 0
      %3049 = vmatprep.subr.bf16.mxu0 0
      %3050 = vmatpush2.bf16.msra.mxu0 0
      %3051 = vmatprep.subr.bf16.mxu0 0
      %3052 = vmatpush2.bf16.msra.mxu0 0
      %3053 = vmatprep.subr.bf16.mxu0 0
      %3054 = vmatpush2.bf16.msra.mxu0 0
      %3055 = vmatprep.subr.bf16.mxu0 0
      %3056 = vmatpush2.bf16.msra.mxu0 0
      %3057 = vmatprep.subr.bf16.mxu0 0
      %3058 = vmatpush2.bf16.msra.mxu0 0
      %3059 = vmatprep.subr.bf16.mxu0 0
      %3060 = vmatpush2.bf16.msra.mxu0 0
      %3061 = vmatprep.mubr.bf16.mxu0 0
      %3062 = vmatmul.mubr.bf16.gmra.mxu0 %v3027
      %v3063 = vpop.f32.mrf.mxu0
      %v3064 = vadd.f32 0.0, %v3063
      %v3065 = vpop.f32.mrf.mxu0
      %v3066 = vpop.f32.mrf.mxu0
      %v3067 = vadd.f32 0.0, %v3066
      %v3068 = vpop.f32.mrf.mxu0
      %3069 = vdwg.mxu0
      %v3070 = vadd.f32 %v2991, %v3064
      %v3071 = vadd.f32 %v2992, %v3067
      %v3072 = vld [vmem:[%s8] sm:$0x1]
      %v3074 = vlaneseq
      %v3075 = vshrl.u32 %v3074, 7
      %v3076 = vsub.s32 0, %v3075
      %v3077 = vrot.slane %v3072, %v3076
      %v3079 = vadd.f32 %v3070, %v3077
      %v3080 = vadd.f32 %v3071, %v3077
      %v3081 = vmax.f32 %v3079, 0.0
      %v3082 = vmax.f32 %v3080, 0.0
      %v3083 = vpack.c.bf16 %v3082, %v3081
      %v3084 = vld [vmem:[%s9] sm:$0xff]
      %v3085 = vld [vmem:[%s9 + $0x8] sm:$0xff]
      %v3086 = vld [vmem:[%s9 + $0x10] sm:$0xff]
      %v3087 = vld [vmem:[%s9 + $0x18] sm:$0xff]
      %v3088 = vld [vmem:[%s9 + $0x20] sm:$0xff]
      %v3089 = vld [vmem:[%s9 + $0x28] sm:$0xff]
      %v3090 = vld [vmem:[%s9 + $0x30] sm:$0xff]
      %v3091 = vld [vmem:[%s9 + $0x38] sm:$0xff]
      %v3092 = vld [vmem:[%s9 + $0x40] sm:$0xff]
      %v3093 = vld [vmem:[%s9 + $0x48] sm:$0xff]
      %v3094 = vld [vmem:[%s9 + $0x50] sm:$0xff]
      %v3095 = vld [vmem:[%s9 + $0x58] sm:$0xff]
      %v3096 = vld [vmem:[%s9 + $0x60] sm:$0xff]
      %v3097 = vld [vmem:[%s9 + $0x68] sm:$0xff]
      %v3098 = vld [vmem:[%s9 + $0x70] sm:$0xff]
      %v3099 = vld [vmem:[%s9 + $0x78] sm:$0xff]
      %s3100 = scalar_lea.vmem %s9, 128
      %v3101 = vld [vmem:[%s3100] sm:$0xff]
      %v3102 = vld [vmem:[%s3100 + $0x8] sm:$0xff]
      %v3103 = vld [vmem:[%s3100 + $0x10] sm:$0xff]
      %v3104 = vld [vmem:[%s3100 + $0x18] sm:$0xff]
      %v3105 = vld [vmem:[%s3100 + $0x20] sm:$0xff]
      %v3106 = vld [vmem:[%s3100 + $0x28] sm:$0xff]
      %v3107 = vld [vmem:[%s3100 + $0x30] sm:$0xff]
      %v3108 = vld [vmem:[%s3100 + $0x38] sm:$0xff]
      %v3109 = vld [vmem:[%s3100 + $0x40] sm:$0xff]
      %v3110 = vld [vmem:[%s3100 + $0x48] sm:$0xff]
      %v3111 = vld [vmem:[%s3100 + $0x50] sm:$0xff]
      %v3112 = vld [vmem:[%s3100 + $0x58] sm:$0xff]
      %v3113 = vld [vmem:[%s3100 + $0x60] sm:$0xff]
      %v3114 = vld [vmem:[%s3100 + $0x68] sm:$0xff]
      %v3115 = vld [vmem:[%s3100 + $0x70] sm:$0xff]
      %v3116 = vld [vmem:[%s3100 + $0x78] sm:$0xff]
      %v3118 = vshrl.u32 %v3083, 16
      %v3136 = vunpack.c.l.b16 %v3101
      %v3137 = vunpack.c.h.b16 %v3101
      %v3138 = vunpack.c.l.b16 %v3102
      %v3139 = vunpack.c.h.b16 %v3102
      %v3140 = vunpack.c.l.b16 %v3103
      %v3141 = vunpack.c.h.b16 %v3103
      %v3142 = vunpack.c.l.b16 %v3104
      %v3143 = vunpack.c.h.b16 %v3104
      %v3144 = vunpack.c.l.b16 %v3105
      %v3145 = vunpack.c.h.b16 %v3105
      %v3146 = vunpack.c.l.b16 %v3106
      %v3147 = vunpack.c.h.b16 %v3106
      %v3148 = vunpack.c.l.b16 %v3107
      %v3149 = vunpack.c.h.b16 %v3107
      %v3150 = vunpack.c.l.b16 %v3108
      %v3151 = vunpack.c.h.b16 %v3108
      %v3152 = vunpack.c.l.b16 %v3109
      %v3153 = vunpack.c.h.b16 %v3109
      %v3154 = vunpack.c.l.b16 %v3110
      %v3155 = vunpack.c.h.b16 %v3110
      %v3156 = vunpack.c.l.b16 %v3111
      %v3157 = vunpack.c.h.b16 %v3111
      %v3158 = vunpack.c.l.b16 %v3112
      %v3159 = vunpack.c.h.b16 %v3112
      %v3160 = vunpack.c.l.b16 %v3113
      %v3161 = vunpack.c.h.b16 %v3113
      %v3162 = vunpack.c.l.b16 %v3114
      %v3163 = vunpack.c.h.b16 %v3114
      %v3164 = vunpack.c.l.b16 %v3115
      %v3165 = vunpack.c.h.b16 %v3115
      %v3166 = vunpack.c.l.b16 %v3116
      %v3167 = vunpack.c.h.b16 %v3116
      %v3168 = vpack.c.b16 %v3140, %v3136
      %v3169 = vpack.c.b16 %v3141, %v3137
      %v3170 = vpack.c.b16 %v3142, %v3138
      %v3171 = vpack.c.b16 %v3143, %v3139
      %v3172 = vpack.c.b16 %v3148, %v3144
      %v3173 = vpack.c.b16 %v3149, %v3145
      %v3174 = vpack.c.b16 %v3150, %v3146
      %v3175 = vpack.c.b16 %v3151, %v3147
      %v3176 = vpack.c.b16 %v3156, %v3152
      %v3177 = vpack.c.b16 %v3157, %v3153
      %v3178 = vpack.c.b16 %v3158, %v3154
      %v3179 = vpack.c.b16 %v3159, %v3155
      %v3180 = vpack.c.b16 %v3164, %v3160
      %v3181 = vpack.c.b16 %v3165, %v3161
      %v3182 = vpack.c.b16 %v3166, %v3162
      %v3183 = vpack.c.b16 %v3167, %v3163
      %v3201 = vsel %vm919, %v3118, 0
      %3203 = vmatprep.subr.bf16.mxu0 0
      %3204 = vmatpush1.bf16.msra.mxu0 0
      %3205 = vmatprep.subr.bf16.mxu0 0
      %3206 = vmatpush1.bf16.msra.mxu0 0
      %3207 = vmatprep.subr.bf16.mxu0 0
      %3208 = vmatpush1.bf16.msra.mxu0 0
      %3209 = vmatprep.subr.bf16.mxu0 0
      %3210 = vmatpush1.bf16.msra.mxu0 0
      %3211 = vmatprep.subr.bf16.mxu0 %v3181
      %3212 = vmatpush1.bf16.msra.mxu0 %v3180
      %3213 = vmatprep.subr.bf16.mxu0 %v3177
      %3214 = vmatpush1.bf16.msra.mxu0 %v3176
      %3215 = vmatprep.subr.bf16.mxu0 %v3173
      %3216 = vmatpush1.bf16.msra.mxu0 %v3172
      %3217 = vmatprep.subr.bf16.mxu0 %v3169
      %3218 = vmatpush1.bf16.msra.mxu0 %v3168
      %3219 = vmatprep.subr.bf16.mxu0 0
      %3220 = vmatpush2.bf16.msra.mxu0 0
      %3221 = vmatprep.subr.bf16.mxu0 0
      %3222 = vmatpush2.bf16.msra.mxu0 0
      %3223 = vmatprep.subr.bf16.mxu0 0
      %3224 = vmatpush2.bf16.msra.mxu0 0
      %3225 = vmatprep.subr.bf16.mxu0 0
      %3226 = vmatpush2.bf16.msra.mxu0 0
      %3227 = vmatprep.subr.bf16.mxu0 0
      %3228 = vmatpush2.bf16.msra.mxu0 0
      %3229 = vmatprep.subr.bf16.mxu0 0
      %3230 = vmatpush2.bf16.msra.mxu0 0
      %3231 = vmatprep.subr.bf16.mxu0 0
      %3232 = vmatpush2.bf16.msra.mxu0 0
      %3233 = vmatprep.subr.bf16.mxu0 0
      %3234 = vmatpush2.bf16.msra.mxu0 0
      %3235 = vmatprep.mubr.bf16.mxu0 0
      %3236 = vmatmul.mubr.bf16.gmra.mxu0 %v3201
      %v3237 = vpop.f32.mrf.mxu0
      %v3238 = vadd.f32 0.0, %v3237
      %v3239 = vpop.f32.mrf.mxu0
      %v3240 = vadd.f32 0.0, %v3239
      %v3241 = vpop.f32.mrf.mxu0
      %v3242 = vpop.f32.mrf.mxu0
      %3243 = vdwg.mxu0
      %3244 = vmatprep.subr.bf16.mxu0 0
      %3245 = vmatpush1.bf16.msra.mxu0 0
      %3246 = vmatprep.subr.bf16.mxu0 0
      %3247 = vmatpush1.bf16.msra.mxu0 0
      %3248 = vmatprep.subr.bf16.mxu0 0
      %3249 = vmatpush1.bf16.msra.mxu0 0
      %3250 = vmatprep.subr.bf16.mxu0 0
      %3251 = vmatpush1.bf16.msra.mxu0 0
      %3252 = vmatprep.subr.bf16.mxu0 %v3183
      %3253 = vmatpush1.bf16.msra.mxu0 %v3182
      %3254 = vmatprep.subr.bf16.mxu0 %v3179
      %3255 = vmatpush1.bf16.msra.mxu0 %v3178
      %3256 = vmatprep.subr.bf16.mxu0 %v3175
      %3257 = vmatpush1.bf16.msra.mxu0 %v3174
      %3258 = vmatprep.subr.bf16.mxu0 %v3171
      %3259 = vmatpush1.bf16.msra.mxu0 %v3170
      %3260 = vmatprep.subr.bf16.mxu0 0
      %3261 = vmatpush2.bf16.msra.mxu0 0
      %3262 = vmatprep.subr.bf16.mxu0 0
      %3263 = vmatpush2.bf16.msra.mxu0 0
      %3264 = vmatprep.subr.bf16.mxu0 0
      %3265 = vmatpush2.bf16.msra.mxu0 0
      %3266 = vmatprep.subr.bf16.mxu0 0
      %3267 = vmatpush2.bf16.msra.mxu0 0
      %3268 = vmatprep.subr.bf16.mxu0 0
      %3269 = vmatpush2.bf16.msra.mxu0 0
      %3270 = vmatprep.subr.bf16.mxu0 0
      %3271 = vmatpush2.bf16.msra.mxu0 0
      %3272 = vmatprep.subr.bf16.mxu0 0
      %3273 = vmatpush2.bf16.msra.mxu0 0
      %3274 = vmatprep.subr.bf16.mxu0 0
      %3275 = vmatpush2.bf16.msra.mxu0 0
      %3276 = vmatprep.mubr.bf16.mxu0 0
      %3277 = vmatmul.mubr.bf16.gmra.mxu0 %v3201
      %v3278 = vpop.f32.mrf.mxu0
      %v3279 = vadd.f32 0.0, %v3278
      %v3280 = vpop.f32.mrf.mxu0
      %v3281 = vadd.f32 0.0, %v3280
      %v3282 = vpop.f32.mrf.mxu0
      %v3283 = vpop.f32.mrf.mxu0
      %3284 = vdwg.mxu0
      %v3301 = vunpack.c.l.b16 %v3084
      %v3302 = vunpack.c.h.b16 %v3084
      %v3303 = vunpack.c.l.b16 %v3085
      %v3304 = vunpack.c.h.b16 %v3085
      %v3305 = vunpack.c.l.b16 %v3086
      %v3306 = vunpack.c.h.b16 %v3086
      %v3307 = vunpack.c.l.b16 %v3087
      %v3308 = vunpack.c.h.b16 %v3087
      %v3309 = vunpack.c.l.b16 %v3088
      %v3310 = vunpack.c.h.b16 %v3088
      %v3311 = vunpack.c.l.b16 %v3089
      %v3312 = vunpack.c.h.b16 %v3089
      %v3313 = vunpack.c.l.b16 %v3090
      %v3314 = vunpack.c.h.b16 %v3090
      %v3315 = vunpack.c.l.b16 %v3091
      %v3316 = vunpack.c.h.b16 %v3091
      %v3317 = vunpack.c.l.b16 %v3092
      %v3318 = vunpack.c.h.b16 %v3092
      %v3319 = vunpack.c.l.b16 %v3093
      %v3320 = vunpack.c.h.b16 %v3093
      %v3321 = vunpack.c.l.b16 %v3094
      %v3322 = vunpack.c.h.b16 %v3094
      %v3323 = vunpack.c.l.b16 %v3095
      %v3324 = vunpack.c.h.b16 %v3095
      %v3325 = vunpack.c.l.b16 %v3096
      %v3326 = vunpack.c.h.b16 %v3096
      %v3327 = vunpack.c.l.b16 %v3097
      %v3328 = vunpack.c.h.b16 %v3097
      %v3329 = vunpack.c.l.b16 %v3098
      %v3330 = vunpack.c.h.b16 %v3098
      %v3331 = vunpack.c.l.b16 %v3099
      %v3332 = vunpack.c.h.b16 %v3099
      %v3333 = vpack.c.b16 %v3305, %v3301
      %v3334 = vpack.c.b16 %v3306, %v3302
      %v3335 = vpack.c.b16 %v3307, %v3303
      %v3336 = vpack.c.b16 %v3308, %v3304
      %v3337 = vpack.c.b16 %v3313, %v3309
      %v3338 = vpack.c.b16 %v3314, %v3310
      %v3339 = vpack.c.b16 %v3315, %v3311
      %v3340 = vpack.c.b16 %v3316, %v3312
      %v3341 = vpack.c.b16 %v3321, %v3317
      %v3342 = vpack.c.b16 %v3322, %v3318
      %v3343 = vpack.c.b16 %v3323, %v3319
      %v3344 = vpack.c.b16 %v3324, %v3320
      %v3345 = vpack.c.b16 %v3329, %v3325
      %v3346 = vpack.c.b16 %v3330, %v3326
      %v3347 = vpack.c.b16 %v3331, %v3327
      %v3348 = vpack.c.b16 %v3332, %v3328
      %v3365 = vsel %vm919, %v3083, 0
      %3367 = vmatprep.subr.bf16.mxu0 0
      %3368 = vmatpush1.bf16.msra.mxu0 0
      %3369 = vmatprep.subr.bf16.mxu0 0
      %3370 = vmatpush1.bf16.msra.mxu0 0
      %3371 = vmatprep.subr.bf16.mxu0 0
      %3372 = vmatpush1.bf16.msra.mxu0 0
      %3373 = vmatprep.subr.bf16.mxu0 0
      %3374 = vmatpush1.bf16.msra.mxu0 0
      %3375 = vmatprep.subr.bf16.mxu0 %v3346
      %3376 = vmatpush1.bf16.msra.mxu0 %v3345
      %3377 = vmatprep.subr.bf16.mxu0 %v3342
      %3378 = vmatpush1.bf16.msra.mxu0 %v3341
      %3379 = vmatprep.subr.bf16.mxu0 %v3338
      %3380 = vmatpush1.bf16.msra.mxu0 %v3337
      %3381 = vmatprep.subr.bf16.mxu0 %v3334
      %3382 = vmatpush1.bf16.msra.mxu0 %v3333
      %3383 = vmatprep.subr.bf16.mxu0 0
      %3384 = vmatpush2.bf16.msra.mxu0 0
      %3385 = vmatprep.subr.bf16.mxu0 0
      %3386 = vmatpush2.bf16.msra.mxu0 0
      %3387 = vmatprep.subr.bf16.mxu0 0
      %3388 = vmatpush2.bf16.msra.mxu0 0
      %3389 = vmatprep.subr.bf16.mxu0 0
      %3390 = vmatpush2.bf16.msra.mxu0 0
      %3391 = vmatprep.subr.bf16.mxu0 0
      %3392 = vmatpush2.bf16.msra.mxu0 0
      %3393 = vmatprep.subr.bf16.mxu0 0
      %3394 = vmatpush2.bf16.msra.mxu0 0
      %3395 = vmatprep.subr.bf16.mxu0 0
      %3396 = vmatpush2.bf16.msra.mxu0 0
      %3397 = vmatprep.subr.bf16.mxu0 0
      %3398 = vmatpush2.bf16.msra.mxu0 0
      %3399 = vmatprep.mubr.bf16.mxu0 0
      %3400 = vmatmul.mubr.bf16.gmra.mxu0 %v3365
      %v3401 = vpop.f32.mrf.mxu0
      %v3402 = vadd.f32 %v3238, %v3401
      %v3403 = vpop.f32.mrf.mxu0
      %v3404 = vadd.f32 %v3240, %v3403
      %v3405 = vpop.f32.mrf.mxu0
      %v3406 = vpop.f32.mrf.mxu0
      %3407 = vdwg.mxu0
      %3408 = vmatprep.subr.bf16.mxu0 0
      %3409 = vmatpush1.bf16.msra.mxu0 0
      %3410 = vmatprep.subr.bf16.mxu0 0
      %3411 = vmatpush1.bf16.msra.mxu0 0
      %3412 = vmatprep.subr.bf16.mxu0 0
      %3413 = vmatpush1.bf16.msra.mxu0 0
      %3414 = vmatprep.subr.bf16.mxu0 0
      %3415 = vmatpush1.bf16.msra.mxu0 0
      %3416 = vmatprep.subr.bf16.mxu0 %v3348
      %3417 = vmatpush1.bf16.msra.mxu0 %v3347
      %3418 = vmatprep.subr.bf16.mxu0 %v3344
      %3419 = vmatpush1.bf16.msra.mxu0 %v3343
      %3420 = vmatprep.subr.bf16.mxu0 %v3340
      %3421 = vmatpush1.bf16.msra.mxu0 %v3339
      %3422 = vmatprep.subr.bf16.mxu0 %v3336
      %3423 = vmatpush1.bf16.msra.mxu0 %v3335
      %3424 = vmatprep.subr.bf16.mxu0 0
      %3425 = vmatpush2.bf16.msra.mxu0 0
      %3426 = vmatprep.subr.bf16.mxu0 0
      %3427 = vmatpush2.bf16.msra.mxu0 0
      %3428 = vmatprep.subr.bf16.mxu0 0
      %3429 = vmatpush2.bf16.msra.mxu0 0
      %3430 = vmatprep.subr.bf16.mxu0 0
      %3431 = vmatpush2.bf16.msra.mxu0 0
      %3432 = vmatprep.subr.bf16.mxu0 0
      %3433 = vmatpush2.bf16.msra.mxu0 0
      %3434 = vmatprep.subr.bf16.mxu0 0
      %3435 = vmatpush2.bf16.msra.mxu0 0
      %3436 = vmatprep.subr.bf16.mxu0 0
      %3437 = vmatpush2.bf16.msra.mxu0 0
      %3438 = vmatprep.subr.bf16.mxu0 0
      %3439 = vmatpush2.bf16.msra.mxu0 0
      %3440 = vmatprep.mubr.bf16.mxu0 0
      %3441 = vmatmul.mubr.bf16.gmra.mxu0 %v3365
      %v3442 = vpop.f32.mrf.mxu0
      %v3443 = vadd.f32 %v3279, %v3442
      %v3444 = vpop.f32.mrf.mxu0
      %v3445 = vadd.f32 %v3281, %v3444
      %v3446 = vpop.f32.mrf.mxu0
      %v3447 = vpop.f32.mrf.mxu0
      %3448 = vdwg.mxu0
      %s3449 = scalar_lea.vmem %s9, 256
      %v3450 = vld [vmem:[%s3449] sm:$0xff]
      %v3451 = vld [vmem:[%s3449 + $0x8] sm:$0xff]
      %v3452 = vld [vmem:[%s3449 + $0x10] sm:$0xff]
      %v3453 = vld [vmem:[%s3449 + $0x18] sm:$0xff]
      %v3454 = vld [vmem:[%s3449 + $0x20] sm:$0xff]
      %v3455 = vld [vmem:[%s3449 + $0x28] sm:$0xff]
      %v3456 = vld [vmem:[%s3449 + $0x30] sm:$0xff]
      %v3457 = vld [vmem:[%s3449 + $0x38] sm:$0xff]
      %v3458 = vld [vmem:[%s3449 + $0x40] sm:$0xff]
      %v3459 = vld [vmem:[%s3449 + $0x48] sm:$0xff]
      %v3460 = vld [vmem:[%s3449 + $0x50] sm:$0xff]
      %v3461 = vld [vmem:[%s3449 + $0x58] sm:$0xff]
      %v3462 = vld [vmem:[%s3449 + $0x60] sm:$0xff]
      %v3463 = vld [vmem:[%s3449 + $0x68] sm:$0xff]
      %v3464 = vld [vmem:[%s3449 + $0x70] sm:$0xff]
      %v3465 = vld [vmem:[%s3449 + $0x78] sm:$0xff]
      %v3467 = vrot.slane %v3083, 1
      %v3484 = vunpack.c.l.b16 %v3450
      %v3485 = vunpack.c.h.b16 %v3450
      %v3486 = vunpack.c.l.b16 %v3451
      %v3487 = vunpack.c.h.b16 %v3451
      %v3488 = vunpack.c.l.b16 %v3452
      %v3489 = vunpack.c.h.b16 %v3452
      %v3490 = vunpack.c.l.b16 %v3453
      %v3491 = vunpack.c.h.b16 %v3453
      %v3492 = vunpack.c.l.b16 %v3454
      %v3493 = vunpack.c.h.b16 %v3454
      %v3494 = vunpack.c.l.b16 %v3455
      %v3495 = vunpack.c.h.b16 %v3455
      %v3496 = vunpack.c.l.b16 %v3456
      %v3497 = vunpack.c.h.b16 %v3456
      %v3498 = vunpack.c.l.b16 %v3457
      %v3499 = vunpack.c.h.b16 %v3457
      %v3500 = vunpack.c.l.b16 %v3458
      %v3501 = vunpack.c.h.b16 %v3458
      %v3502 = vunpack.c.l.b16 %v3459
      %v3503 = vunpack.c.h.b16 %v3459
      %v3504 = vunpack.c.l.b16 %v3460
      %v3505 = vunpack.c.h.b16 %v3460
      %v3506 = vunpack.c.l.b16 %v3461
      %v3507 = vunpack.c.h.b16 %v3461
      %v3508 = vunpack.c.l.b16 %v3462
      %v3509 = vunpack.c.h.b16 %v3462
      %v3510 = vunpack.c.l.b16 %v3463
      %v3511 = vunpack.c.h.b16 %v3463
      %v3512 = vunpack.c.l.b16 %v3464
      %v3513 = vunpack.c.h.b16 %v3464
      %v3514 = vunpack.c.l.b16 %v3465
      %v3515 = vunpack.c.h.b16 %v3465
      %v3516 = vpack.c.b16 %v3488, %v3484
      %v3517 = vpack.c.b16 %v3489, %v3485
      %v3518 = vpack.c.b16 %v3490, %v3486
      %v3519 = vpack.c.b16 %v3491, %v3487
      %v3520 = vpack.c.b16 %v3496, %v3492
      %v3521 = vpack.c.b16 %v3497, %v3493
      %v3522 = vpack.c.b16 %v3498, %v3494
      %v3523 = vpack.c.b16 %v3499, %v3495
      %v3524 = vpack.c.b16 %v3504, %v3500
      %v3525 = vpack.c.b16 %v3505, %v3501
      %v3526 = vpack.c.b16 %v3506, %v3502
      %v3527 = vpack.c.b16 %v3507, %v3503
      %v3528 = vpack.c.b16 %v3512, %v3508
      %v3529 = vpack.c.b16 %v3513, %v3509
      %v3530 = vpack.c.b16 %v3514, %v3510
      %v3531 = vpack.c.b16 %v3515, %v3511
      %v3549 = vsel %vm919, %v3467, 0
      %3551 = vmatprep.subr.bf16.mxu0 0
      %3552 = vmatpush1.bf16.msra.mxu0 0
      %3553 = vmatprep.subr.bf16.mxu0 0
      %3554 = vmatpush1.bf16.msra.mxu0 0
      %3555 = vmatprep.subr.bf16.mxu0 0
      %3556 = vmatpush1.bf16.msra.mxu0 0
      %3557 = vmatprep.subr.bf16.mxu0 0
      %3558 = vmatpush1.bf16.msra.mxu0 0
      %3559 = vmatprep.subr.bf16.mxu0 %v3529
      %3560 = vmatpush1.bf16.msra.mxu0 %v3528
      %3561 = vmatprep.subr.bf16.mxu0 %v3525
      %3562 = vmatpush1.bf16.msra.mxu0 %v3524
      %3563 = vmatprep.subr.bf16.mxu0 %v3521
      %3564 = vmatpush1.bf16.msra.mxu0 %v3520
      %3565 = vmatprep.subr.bf16.mxu0 %v3517
      %3566 = vmatpush1.bf16.msra.mxu0 %v3516
      %3567 = vmatprep.subr.bf16.mxu0 0
      %3568 = vmatpush2.bf16.msra.mxu0 0
      %3569 = vmatprep.subr.bf16.mxu0 0
      %3570 = vmatpush2.bf16.msra.mxu0 0
      %3571 = vmatprep.subr.bf16.mxu0 0
      %3572 = vmatpush2.bf16.msra.mxu0 0
      %3573 = vmatprep.subr.bf16.mxu0 0
      %3574 = vmatpush2.bf16.msra.mxu0 0
      %3575 = vmatprep.subr.bf16.mxu0 0
      %3576 = vmatpush2.bf16.msra.mxu0 0
      %3577 = vmatprep.subr.bf16.mxu0 0
      %3578 = vmatpush2.bf16.msra.mxu0 0
      %3579 = vmatprep.subr.bf16.mxu0 0
      %3580 = vmatpush2.bf16.msra.mxu0 0
      %3581 = vmatprep.subr.bf16.mxu0 0
      %3582 = vmatpush2.bf16.msra.mxu0 0
      %3583 = vmatprep.mubr.bf16.mxu0 0
      %3584 = vmatmul.mubr.bf16.gmra.mxu0 %v3549
      %v3585 = vpop.f32.mrf.mxu0
      %v3586 = vadd.f32 0.0, %v3585
      %v3587 = vpop.f32.mrf.mxu0
      %v3588 = vadd.f32 0.0, %v3587
      %v3589 = vpop.f32.mrf.mxu0
      %v3590 = vpop.f32.mrf.mxu0
      %3591 = vdwg.mxu0
      %3592 = vmatprep.subr.bf16.mxu0 0
      %3593 = vmatpush1.bf16.msra.mxu0 0
      %3594 = vmatprep.subr.bf16.mxu0 0
      %3595 = vmatpush1.bf16.msra.mxu0 0
      %3596 = vmatprep.subr.bf16.mxu0 0
      %3597 = vmatpush1.bf16.msra.mxu0 0
      %3598 = vmatprep.subr.bf16.mxu0 0
      %3599 = vmatpush1.bf16.msra.mxu0 0
      %3600 = vmatprep.subr.bf16.mxu0 %v3531
      %3601 = vmatpush1.bf16.msra.mxu0 %v3530
      %3602 = vmatprep.subr.bf16.mxu0 %v3527
      %3603 = vmatpush1.bf16.msra.mxu0 %v3526
      %3604 = vmatprep.subr.bf16.mxu0 %v3523
      %3605 = vmatpush1.bf16.msra.mxu0 %v3522
      %3606 = vmatprep.subr.bf16.mxu0 %v3519
      %3607 = vmatpush1.bf16.msra.mxu0 %v3518
      %3608 = vmatprep.subr.bf16.mxu0 0
      %3609 = vmatpush2.bf16.msra.mxu0 0
      %3610 = vmatprep.subr.bf16.mxu0 0
      %3611 = vmatpush2.bf16.msra.mxu0 0
      %3612 = vmatprep.subr.bf16.mxu0 0
      %3613 = vmatpush2.bf16.msra.mxu0 0
      %3614 = vmatprep.subr.bf16.mxu0 0
      %3615 = vmatpush2.bf16.msra.mxu0 0
      %3616 = vmatprep.subr.bf16.mxu0 0
      %3617 = vmatpush2.bf16.msra.mxu0 0
      %3618 = vmatprep.subr.bf16.mxu0 0
      %3619 = vmatpush2.bf16.msra.mxu0 0
      %3620 = vmatprep.subr.bf16.mxu0 0
      %3621 = vmatpush2.bf16.msra.mxu0 0
      %3622 = vmatprep.subr.bf16.mxu0 0
      %3623 = vmatpush2.bf16.msra.mxu0 0
      %3624 = vmatprep.mubr.bf16.mxu0 0
      %3625 = vmatmul.mubr.bf16.gmra.mxu0 %v3549
      %v3626 = vpop.f32.mrf.mxu0
      %v3627 = vadd.f32 0.0, %v3626
      %v3628 = vpop.f32.mrf.mxu0
      %v3629 = vadd.f32 0.0, %v3628
      %v3630 = vpop.f32.mrf.mxu0
      %v3631 = vpop.f32.mrf.mxu0
      %3632 = vdwg.mxu0
      %v3633 = vadd.f32 %v3402, %v3586
      %v3634 = vadd.f32 %v3404, %v3588
      %v3635 = vadd.f32 %v3443, %v3627
      %v3636 = vadd.f32 %v3445, %v3629
      %s3637 = scalar_lea.vmem %s9, 384
      %v3638 = vld [vmem:[%s3637] sm:$0xff]
      %v3639 = vld [vmem:[%s3637 + $0x8] sm:$0xff]
      %v3640 = vld [vmem:[%s3637 + $0x10] sm:$0xff]
      %v3641 = vld [vmem:[%s3637 + $0x18] sm:$0xff]
      %v3642 = vld [vmem:[%s3637 + $0x20] sm:$0xff]
      %v3643 = vld [vmem:[%s3637 + $0x28] sm:$0xff]
      %v3644 = vld [vmem:[%s3637 + $0x30] sm:$0xff]
      %v3645 = vld [vmem:[%s3637 + $0x38] sm:$0xff]
      %v3646 = vld [vmem:[%s3637 + $0x40] sm:$0xff]
      %v3647 = vld [vmem:[%s3637 + $0x48] sm:$0xff]
      %v3648 = vld [vmem:[%s3637 + $0x50] sm:$0xff]
      %v3649 = vld [vmem:[%s3637 + $0x58] sm:$0xff]
      %v3650 = vld [vmem:[%s3637 + $0x60] sm:$0xff]
      %v3651 = vld [vmem:[%s3637 + $0x68] sm:$0xff]
      %v3652 = vld [vmem:[%s3637 + $0x70] sm:$0xff]
      %v3653 = vld [vmem:[%s3637 + $0x78] sm:$0xff]
      %v3654 = vrot.slane %v3118, 1
      %v3671 = vunpack.c.l.b16 %v3638
      %v3672 = vunpack.c.h.b16 %v3638
      %v3673 = vunpack.c.l.b16 %v3639
      %v3674 = vunpack.c.h.b16 %v3639
      %v3675 = vunpack.c.l.b16 %v3640
      %v3676 = vunpack.c.h.b16 %v3640
      %v3677 = vunpack.c.l.b16 %v3641
      %v3678 = vunpack.c.h.b16 %v3641
      %v3679 = vunpack.c.l.b16 %v3642
      %v3680 = vunpack.c.h.b16 %v3642
      %v3681 = vunpack.c.l.b16 %v3643
      %v3682 = vunpack.c.h.b16 %v3643
      %v3683 = vunpack.c.l.b16 %v3644
      %v3684 = vunpack.c.h.b16 %v3644
      %v3685 = vunpack.c.l.b16 %v3645
      %v3686 = vunpack.c.h.b16 %v3645
      %v3687 = vunpack.c.l.b16 %v3646
      %v3688 = vunpack.c.h.b16 %v3646
      %v3689 = vunpack.c.l.b16 %v3647
      %v3690 = vunpack.c.h.b16 %v3647
      %v3691 = vunpack.c.l.b16 %v3648
      %v3692 = vunpack.c.h.b16 %v3648
      %v3693 = vunpack.c.l.b16 %v3649
      %v3694 = vunpack.c.h.b16 %v3649
      %v3695 = vunpack.c.l.b16 %v3650
      %v3696 = vunpack.c.h.b16 %v3650
      %v3697 = vunpack.c.l.b16 %v3651
      %v3698 = vunpack.c.h.b16 %v3651
      %v3699 = vunpack.c.l.b16 %v3652
      %v3700 = vunpack.c.h.b16 %v3652
      %v3701 = vunpack.c.l.b16 %v3653
      %v3702 = vunpack.c.h.b16 %v3653
      %v3703 = vpack.c.b16 %v3675, %v3671
      %v3704 = vpack.c.b16 %v3676, %v3672
      %v3705 = vpack.c.b16 %v3677, %v3673
      %v3706 = vpack.c.b16 %v3678, %v3674
      %v3707 = vpack.c.b16 %v3683, %v3679
      %v3708 = vpack.c.b16 %v3684, %v3680
      %v3709 = vpack.c.b16 %v3685, %v3681
      %v3710 = vpack.c.b16 %v3686, %v3682
      %v3711 = vpack.c.b16 %v3691, %v3687
      %v3712 = vpack.c.b16 %v3692, %v3688
      %v3713 = vpack.c.b16 %v3693, %v3689
      %v3714 = vpack.c.b16 %v3694, %v3690
      %v3715 = vpack.c.b16 %v3699, %v3695
      %v3716 = vpack.c.b16 %v3700, %v3696
      %v3717 = vpack.c.b16 %v3701, %v3697
      %v3718 = vpack.c.b16 %v3702, %v3698
      %v3736 = vsel %vm919, %v3654, 0
      %3738 = vmatprep.subr.bf16.mxu0 0
      %3739 = vmatpush1.bf16.msra.mxu0 0
      %3740 = vmatprep.subr.bf16.mxu0 0
      %3741 = vmatpush1.bf16.msra.mxu0 0
      %3742 = vmatprep.subr.bf16.mxu0 0
      %3743 = vmatpush1.bf16.msra.mxu0 0
      %3744 = vmatprep.subr.bf16.mxu0 0
      %3745 = vmatpush1.bf16.msra.mxu0 0
      %3746 = vmatprep.subr.bf16.mxu0 %v3716
      %3747 = vmatpush1.bf16.msra.mxu0 %v3715
      %3748 = vmatprep.subr.bf16.mxu0 %v3712
      %3749 = vmatpush1.bf16.msra.mxu0 %v3711
      %3750 = vmatprep.subr.bf16.mxu0 %v3708
      %3751 = vmatpush1.bf16.msra.mxu0 %v3707
      %3752 = vmatprep.subr.bf16.mxu0 %v3704
      %3753 = vmatpush1.bf16.msra.mxu0 %v3703
      %3754 = vmatprep.subr.bf16.mxu0 0
      %3755 = vmatpush2.bf16.msra.mxu0 0
      %3756 = vmatprep.subr.bf16.mxu0 0
      %3757 = vmatpush2.bf16.msra.mxu0 0
      %3758 = vmatprep.subr.bf16.mxu0 0
      %3759 = vmatpush2.bf16.msra.mxu0 0
      %3760 = vmatprep.subr.bf16.mxu0 0
      %3761 = vmatpush2.bf16.msra.mxu0 0
      %3762 = vmatprep.subr.bf16.mxu0 0
      %3763 = vmatpush2.bf16.msra.mxu0 0
      %3764 = vmatprep.subr.bf16.mxu0 0
      %3765 = vmatpush2.bf16.msra.mxu0 0
      %3766 = vmatprep.subr.bf16.mxu0 0
      %3767 = vmatpush2.bf16.msra.mxu0 0
      %3768 = vmatprep.subr.bf16.mxu0 0
      %3769 = vmatpush2.bf16.msra.mxu0 0
      %3770 = vmatprep.mubr.bf16.mxu0 0
      %3771 = vmatmul.mubr.bf16.gmra.mxu0 %v3736
      %v3772 = vpop.f32.mrf.mxu0
      %v3773 = vadd.f32 0.0, %v3772
      %v3774 = vpop.f32.mrf.mxu0
      %v3775 = vadd.f32 0.0, %v3774
      %v3776 = vpop.f32.mrf.mxu0
      %v3777 = vpop.f32.mrf.mxu0
      %3778 = vdwg.mxu0
      %3779 = vmatprep.subr.bf16.mxu0 0
      %3780 = vmatpush1.bf16.msra.mxu0 0
      %3781 = vmatprep.subr.bf16.mxu0 0
      %3782 = vmatpush1.bf16.msra.mxu0 0
      %3783 = vmatprep.subr.bf16.mxu0 0
      %3784 = vmatpush1.bf16.msra.mxu0 0
      %3785 = vmatprep.subr.bf16.mxu0 0
      %3786 = vmatpush1.bf16.msra.mxu0 0
      %3787 = vmatprep.subr.bf16.mxu0 %v3718
      %3788 = vmatpush1.bf16.msra.mxu0 %v3717
      %3789 = vmatprep.subr.bf16.mxu0 %v3714
      %3790 = vmatpush1.bf16.msra.mxu0 %v3713
      %3791 = vmatprep.subr.bf16.mxu0 %v3710
      %3792 = vmatpush1.bf16.msra.mxu0 %v3709
      %3793 = vmatprep.subr.bf16.mxu0 %v3706
      %3794 = vmatpush1.bf16.msra.mxu0 %v3705
      %3795 = vmatprep.subr.bf16.mxu0 0
      %3796 = vmatpush2.bf16.msra.mxu0 0
      %3797 = vmatprep.subr.bf16.mxu0 0
      %3798 = vmatpush2.bf16.msra.mxu0 0
      %3799 = vmatprep.subr.bf16.mxu0 0
      %3800 = vmatpush2.bf16.msra.mxu0 0
      %3801 = vmatprep.subr.bf16.mxu0 0
      %3802 = vmatpush2.bf16.msra.mxu0 0
      %3803 = vmatprep.subr.bf16.mxu0 0
      %3804 = vmatpush2.bf16.msra.mxu0 0
      %3805 = vmatprep.subr.bf16.mxu0 0
      %3806 = vmatpush2.bf16.msra.mxu0 0
      %3807 = vmatprep.subr.bf16.mxu0 0
      %3808 = vmatpush2.bf16.msra.mxu0 0
      %3809 = vmatprep.subr.bf16.mxu0 0
      %3810 = vmatpush2.bf16.msra.mxu0 0
      %3811 = vmatprep.mubr.bf16.mxu0 0
      %3812 = vmatmul.mubr.bf16.gmra.mxu0 %v3736
      %v3813 = vpop.f32.mrf.mxu0
      %v3814 = vadd.f32 0.0, %v3813
      %v3815 = vpop.f32.mrf.mxu0
      %v3816 = vadd.f32 0.0, %v3815
      %v3817 = vpop.f32.mrf.mxu0
      %v3818 = vpop.f32.mrf.mxu0
      %3819 = vdwg.mxu0
      %v3820 = vadd.f32 %v3633, %v3773
      %v3821 = vadd.f32 %v3634, %v3775
      %v3822 = vadd.f32 %v3635, %v3814
      %v3823 = vadd.f32 %v3636, %v3816
      %s3824 = scalar_lea.vmem %s9, 512
      %v3825 = vld [vmem:[%s3824] sm:$0xff]
      %v3826 = vld [vmem:[%s3824 + $0x8] sm:$0xff]
      %v3827 = vld [vmem:[%s3824 + $0x10] sm:$0xff]
      %v3828 = vld [vmem:[%s3824 + $0x18] sm:$0xff]
      %v3829 = vld [vmem:[%s3824 + $0x20] sm:$0xff]
      %v3830 = vld [vmem:[%s3824 + $0x28] sm:$0xff]
      %v3831 = vld [vmem:[%s3824 + $0x30] sm:$0xff]
      %v3832 = vld [vmem:[%s3824 + $0x38] sm:$0xff]
      %v3833 = vld [vmem:[%s3824 + $0x40] sm:$0xff]
      %v3834 = vld [vmem:[%s3824 + $0x48] sm:$0xff]
      %v3835 = vld [vmem:[%s3824 + $0x50] sm:$0xff]
      %v3836 = vld [vmem:[%s3824 + $0x58] sm:$0xff]
      %v3837 = vld [vmem:[%s3824 + $0x60] sm:$0xff]
      %v3838 = vld [vmem:[%s3824 + $0x68] sm:$0xff]
      %v3839 = vld [vmem:[%s3824 + $0x70] sm:$0xff]
      %v3840 = vld [vmem:[%s3824 + $0x78] sm:$0xff]
      %v3841 = vrot.slane %v3083, 2
      %v3858 = vunpack.c.l.b16 %v3825
      %v3859 = vunpack.c.h.b16 %v3825
      %v3860 = vunpack.c.l.b16 %v3826
      %v3861 = vunpack.c.h.b16 %v3826
      %v3862 = vunpack.c.l.b16 %v3827
      %v3863 = vunpack.c.h.b16 %v3827
      %v3864 = vunpack.c.l.b16 %v3828
      %v3865 = vunpack.c.h.b16 %v3828
      %v3866 = vunpack.c.l.b16 %v3829
      %v3867 = vunpack.c.h.b16 %v3829
      %v3868 = vunpack.c.l.b16 %v3830
      %v3869 = vunpack.c.h.b16 %v3830
      %v3870 = vunpack.c.l.b16 %v3831
      %v3871 = vunpack.c.h.b16 %v3831
      %v3872 = vunpack.c.l.b16 %v3832
      %v3873 = vunpack.c.h.b16 %v3832
      %v3874 = vunpack.c.l.b16 %v3833
      %v3875 = vunpack.c.h.b16 %v3833
      %v3876 = vunpack.c.l.b16 %v3834
      %v3877 = vunpack.c.h.b16 %v3834
      %v3878 = vunpack.c.l.b16 %v3835
      %v3879 = vunpack.c.h.b16 %v3835
      %v3880 = vunpack.c.l.b16 %v3836
      %v3881 = vunpack.c.h.b16 %v3836
      %v3882 = vunpack.c.l.b16 %v3837
      %v3883 = vunpack.c.h.b16 %v3837
      %v3884 = vunpack.c.l.b16 %v3838
      %v3885 = vunpack.c.h.b16 %v3838
      %v3886 = vunpack.c.l.b16 %v3839
      %v3887 = vunpack.c.h.b16 %v3839
      %v3888 = vunpack.c.l.b16 %v3840
      %v3889 = vunpack.c.h.b16 %v3840
      %v3890 = vpack.c.b16 %v3862, %v3858
      %v3891 = vpack.c.b16 %v3863, %v3859
      %v3892 = vpack.c.b16 %v3864, %v3860
      %v3893 = vpack.c.b16 %v3865, %v3861
      %v3894 = vpack.c.b16 %v3870, %v3866
      %v3895 = vpack.c.b16 %v3871, %v3867
      %v3896 = vpack.c.b16 %v3872, %v3868
      %v3897 = vpack.c.b16 %v3873, %v3869
      %v3898 = vpack.c.b16 %v3878, %v3874
      %v3899 = vpack.c.b16 %v3879, %v3875
      %v3900 = vpack.c.b16 %v3880, %v3876
      %v3901 = vpack.c.b16 %v3881, %v3877
      %v3902 = vpack.c.b16 %v3886, %v3882
      %v3903 = vpack.c.b16 %v3887, %v3883
      %v3904 = vpack.c.b16 %v3888, %v3884
      %v3905 = vpack.c.b16 %v3889, %v3885
      %v3923 = vsel %vm919, %v3841, 0
      %3925 = vmatprep.subr.bf16.mxu0 0
      %3926 = vmatpush1.bf16.msra.mxu0 0
      %3927 = vmatprep.subr.bf16.mxu0 0
      %3928 = vmatpush1.bf16.msra.mxu0 0
      %3929 = vmatprep.subr.bf16.mxu0 0
      %3930 = vmatpush1.bf16.msra.mxu0 0
      %3931 = vmatprep.subr.bf16.mxu0 0
      %3932 = vmatpush1.bf16.msra.mxu0 0
      %3933 = vmatprep.subr.bf16.mxu0 %v3903
      %3934 = vmatpush1.bf16.msra.mxu0 %v3902
      %3935 = vmatprep.subr.bf16.mxu0 %v3899
      %3936 = vmatpush1.bf16.msra.mxu0 %v3898
      %3937 = vmatprep.subr.bf16.mxu0 %v3895
      %3938 = vmatpush1.bf16.msra.mxu0 %v3894
      %3939 = vmatprep.subr.bf16.mxu0 %v3891
      %3940 = vmatpush1.bf16.msra.mxu0 %v3890
      %3941 = vmatprep.subr.bf16.mxu0 0
      %3942 = vmatpush2.bf16.msra.mxu0 0
      %3943 = vmatprep.subr.bf16.mxu0 0
      %3944 = vmatpush2.bf16.msra.mxu0 0
      %3945 = vmatprep.subr.bf16.mxu0 0
      %3946 = vmatpush2.bf16.msra.mxu0 0
      %3947 = vmatprep.subr.bf16.mxu0 0
      %3948 = vmatpush2.bf16.msra.mxu0 0
      %3949 = vmatprep.subr.bf16.mxu0 0
      %3950 = vmatpush2.bf16.msra.mxu0 0
      %3951 = vmatprep.subr.bf16.mxu0 0
      %3952 = vmatpush2.bf16.msra.mxu0 0
      %3953 = vmatprep.subr.bf16.mxu0 0
      %3954 = vmatpush2.bf16.msra.mxu0 0
      %3955 = vmatprep.subr.bf16.mxu0 0
      %3956 = vmatpush2.bf16.msra.mxu0 0
      %3957 = vmatprep.mubr.bf16.mxu0 0
      %3958 = vmatmul.mubr.bf16.gmra.mxu0 %v3923
      %v3959 = vpop.f32.mrf.mxu0
      %v3960 = vadd.f32 0.0, %v3959
      %v3961 = vpop.f32.mrf.mxu0
      %v3962 = vadd.f32 0.0, %v3961
      %v3963 = vpop.f32.mrf.mxu0
      %v3964 = vpop.f32.mrf.mxu0
      %3965 = vdwg.mxu0
      %3966 = vmatprep.subr.bf16.mxu0 0
      %3967 = vmatpush1.bf16.msra.mxu0 0
      %3968 = vmatprep.subr.bf16.mxu0 0
      %3969 = vmatpush1.bf16.msra.mxu0 0
      %3970 = vmatprep.subr.bf16.mxu0 0
      %3971 = vmatpush1.bf16.msra.mxu0 0
      %3972 = vmatprep.subr.bf16.mxu0 0
      %3973 = vmatpush1.bf16.msra.mxu0 0
      %3974 = vmatprep.subr.bf16.mxu0 %v3905
      %3975 = vmatpush1.bf16.msra.mxu0 %v3904
      %3976 = vmatprep.subr.bf16.mxu0 %v3901
      %3977 = vmatpush1.bf16.msra.mxu0 %v3900
      %3978 = vmatprep.subr.bf16.mxu0 %v3897
      %3979 = vmatpush1.bf16.msra.mxu0 %v3896
      %3980 = vmatprep.subr.bf16.mxu0 %v3893
      %3981 = vmatpush1.bf16.msra.mxu0 %v3892
      %3982 = vmatprep.subr.bf16.mxu0 0
      %3983 = vmatpush2.bf16.msra.mxu0 0
      %3984 = vmatprep.subr.bf16.mxu0 0
      %3985 = vmatpush2.bf16.msra.mxu0 0
      %3986 = vmatprep.subr.bf16.mxu0 0
      %3987 = vmatpush2.bf16.msra.mxu0 0
      %3988 = vmatprep.subr.bf16.mxu0 0
      %3989 = vmatpush2.bf16.msra.mxu0 0
      %3990 = vmatprep.subr.bf16.mxu0 0
      %3991 = vmatpush2.bf16.msra.mxu0 0
      %3992 = vmatprep.subr.bf16.mxu0 0
      %3993 = vmatpush2.bf16.msra.mxu0 0
      %3994 = vmatprep.subr.bf16.mxu0 0
      %3995 = vmatpush2.bf16.msra.mxu0 0
      %3996 = vmatprep.subr.bf16.mxu0 0
      %3997 = vmatpush2.bf16.msra.mxu0 0
      %3998 = vmatprep.mubr.bf16.mxu0 0
      %3999 = vmatmul.mubr.bf16.gmra.mxu0 %v3923
      %v4000 = vpop.f32.mrf.mxu0
      %v4001 = vadd.f32 0.0, %v4000
      %v4002 = vpop.f32.mrf.mxu0
      %v4003 = vadd.f32 0.0, %v4002
      %v4004 = vpop.f32.mrf.mxu0
      %v4005 = vpop.f32.mrf.mxu0
      %4006 = vdwg.mxu0
      %v4007 = vadd.f32 %v3820, %v3960
      %v4008 = vadd.f32 %v3821, %v3962
      %v4009 = vadd.f32 %v3822, %v4001
      %v4010 = vadd.f32 %v3823, %v4003
      %s4011 = scalar_lea.vmem %s9, 640
      %v4012 = vld [vmem:[%s4011] sm:$0xff]
      %v4013 = vld [vmem:[%s4011 + $0x8] sm:$0xff]
      %v4014 = vld [vmem:[%s4011 + $0x10] sm:$0xff]
      %v4015 = vld [vmem:[%s4011 + $0x18] sm:$0xff]
      %v4016 = vld [vmem:[%s4011 + $0x20] sm:$0xff]
      %v4017 = vld [vmem:[%s4011 + $0x28] sm:$0xff]
      %v4018 = vld [vmem:[%s4011 + $0x30] sm:$0xff]
      %v4019 = vld [vmem:[%s4011 + $0x38] sm:$0xff]
      %v4020 = vld [vmem:[%s4011 + $0x40] sm:$0xff]
      %v4021 = vld [vmem:[%s4011 + $0x48] sm:$0xff]
      %v4022 = vld [vmem:[%s4011 + $0x50] sm:$0xff]
      %v4023 = vld [vmem:[%s4011 + $0x58] sm:$0xff]
      %v4024 = vld [vmem:[%s4011 + $0x60] sm:$0xff]
      %v4025 = vld [vmem:[%s4011 + $0x68] sm:$0xff]
      %v4026 = vld [vmem:[%s4011 + $0x70] sm:$0xff]
      %v4027 = vld [vmem:[%s4011 + $0x78] sm:$0xff]
      %v4028 = vrot.slane %v3118, 2
      %v4045 = vunpack.c.l.b16 %v4012
      %v4046 = vunpack.c.h.b16 %v4012
      %v4047 = vunpack.c.l.b16 %v4013
      %v4048 = vunpack.c.h.b16 %v4013
      %v4049 = vunpack.c.l.b16 %v4014
      %v4050 = vunpack.c.h.b16 %v4014
      %v4051 = vunpack.c.l.b16 %v4015
      %v4052 = vunpack.c.h.b16 %v4015
      %v4053 = vunpack.c.l.b16 %v4016
      %v4054 = vunpack.c.h.b16 %v4016
      %v4055 = vunpack.c.l.b16 %v4017
      %v4056 = vunpack.c.h.b16 %v4017
      %v4057 = vunpack.c.l.b16 %v4018
      %v4058 = vunpack.c.h.b16 %v4018
      %v4059 = vunpack.c.l.b16 %v4019
      %v4060 = vunpack.c.h.b16 %v4019
      %v4061 = vunpack.c.l.b16 %v4020
      %v4062 = vunpack.c.h.b16 %v4020
      %v4063 = vunpack.c.l.b16 %v4021
      %v4064 = vunpack.c.h.b16 %v4021
      %v4065 = vunpack.c.l.b16 %v4022
      %v4066 = vunpack.c.h.b16 %v4022
      %v4067 = vunpack.c.l.b16 %v4023
      %v4068 = vunpack.c.h.b16 %v4023
      %v4069 = vunpack.c.l.b16 %v4024
      %v4070 = vunpack.c.h.b16 %v4024
      %v4071 = vunpack.c.l.b16 %v4025
      %v4072 = vunpack.c.h.b16 %v4025
      %v4073 = vunpack.c.l.b16 %v4026
      %v4074 = vunpack.c.h.b16 %v4026
      %v4075 = vunpack.c.l.b16 %v4027
      %v4076 = vunpack.c.h.b16 %v4027
      %v4077 = vpack.c.b16 %v4049, %v4045
      %v4078 = vpack.c.b16 %v4050, %v4046
      %v4079 = vpack.c.b16 %v4051, %v4047
      %v4080 = vpack.c.b16 %v4052, %v4048
      %v4081 = vpack.c.b16 %v4057, %v4053
      %v4082 = vpack.c.b16 %v4058, %v4054
      %v4083 = vpack.c.b16 %v4059, %v4055
      %v4084 = vpack.c.b16 %v4060, %v4056
      %v4085 = vpack.c.b16 %v4065, %v4061
      %v4086 = vpack.c.b16 %v4066, %v4062
      %v4087 = vpack.c.b16 %v4067, %v4063
      %v4088 = vpack.c.b16 %v4068, %v4064
      %v4089 = vpack.c.b16 %v4073, %v4069
      %v4090 = vpack.c.b16 %v4074, %v4070
      %v4091 = vpack.c.b16 %v4075, %v4071
      %v4092 = vpack.c.b16 %v4076, %v4072
      %v4110 = vsel %vm919, %v4028, 0
      %4112 = vmatprep.subr.bf16.mxu0 0
      %4113 = vmatpush1.bf16.msra.mxu0 0
      %4114 = vmatprep.subr.bf16.mxu0 0
      %4115 = vmatpush1.bf16.msra.mxu0 0
      %4116 = vmatprep.subr.bf16.mxu0 0
      %4117 = vmatpush1.bf16.msra.mxu0 0
      %4118 = vmatprep.subr.bf16.mxu0 0
      %4119 = vmatpush1.bf16.msra.mxu0 0
      %4120 = vmatprep.subr.bf16.mxu0 %v4090
      %4121 = vmatpush1.bf16.msra.mxu0 %v4089
      %4122 = vmatprep.subr.bf16.mxu0 %v4086
      %4123 = vmatpush1.bf16.msra.mxu0 %v4085
      %4124 = vmatprep.subr.bf16.mxu0 %v4082
      %4125 = vmatpush1.bf16.msra.mxu0 %v4081
      %4126 = vmatprep.subr.bf16.mxu0 %v4078
      %4127 = vmatpush1.bf16.msra.mxu0 %v4077
      %4128 = vmatprep.subr.bf16.mxu0 0
      %4129 = vmatpush2.bf16.msra.mxu0 0
      %4130 = vmatprep.subr.bf16.mxu0 0
      %4131 = vmatpush2.bf16.msra.mxu0 0
      %4132 = vmatprep.subr.bf16.mxu0 0
      %4133 = vmatpush2.bf16.msra.mxu0 0
      %4134 = vmatprep.subr.bf16.mxu0 0
      %4135 = vmatpush2.bf16.msra.mxu0 0
      %4136 = vmatprep.subr.bf16.mxu0 0
      %4137 = vmatpush2.bf16.msra.mxu0 0
      %4138 = vmatprep.subr.bf16.mxu0 0
      %4139 = vmatpush2.bf16.msra.mxu0 0
      %4140 = vmatprep.subr.bf16.mxu0 0
      %4141 = vmatpush2.bf16.msra.mxu0 0
      %4142 = vmatprep.subr.bf16.mxu0 0
      %4143 = vmatpush2.bf16.msra.mxu0 0
      %4144 = vmatprep.mubr.bf16.mxu0 0
      %4145 = vmatmul.mubr.bf16.gmra.mxu0 %v4110
      %v4146 = vpop.f32.mrf.mxu0
      %v4147 = vadd.f32 0.0, %v4146
      %v4148 = vpop.f32.mrf.mxu0
      %v4149 = vadd.f32 0.0, %v4148
      %v4150 = vpop.f32.mrf.mxu0
      %v4151 = vpop.f32.mrf.mxu0
      %4152 = vdwg.mxu0
      %4153 = vmatprep.subr.bf16.mxu0 0
      %4154 = vmatpush1.bf16.msra.mxu0 0
      %4155 = vmatprep.subr.bf16.mxu0 0
      %4156 = vmatpush1.bf16.msra.mxu0 0
      %4157 = vmatprep.subr.bf16.mxu0 0
      %4158 = vmatpush1.bf16.msra.mxu0 0
      %4159 = vmatprep.subr.bf16.mxu0 0
      %4160 = vmatpush1.bf16.msra.mxu0 0
      %4161 = vmatprep.subr.bf16.mxu0 %v4092
      %4162 = vmatpush1.bf16.msra.mxu0 %v4091
      %4163 = vmatprep.subr.bf16.mxu0 %v4088
      %4164 = vmatpush1.bf16.msra.mxu0 %v4087
      %4165 = vmatprep.subr.bf16.mxu0 %v4084
      %4166 = vmatpush1.bf16.msra.mxu0 %v4083
      %4167 = vmatprep.subr.bf16.mxu0 %v4080
      %4168 = vmatpush1.bf16.msra.mxu0 %v4079
      %4169 = vmatprep.subr.bf16.mxu0 0
      %4170 = vmatpush2.bf16.msra.mxu0 0
      %4171 = vmatprep.subr.bf16.mxu0 0
      %4172 = vmatpush2.bf16.msra.mxu0 0
      %4173 = vmatprep.subr.bf16.mxu0 0
      %4174 = vmatpush2.bf16.msra.mxu0 0
      %4175 = vmatprep.subr.bf16.mxu0 0
      %4176 = vmatpush2.bf16.msra.mxu0 0
      %4177 = vmatprep.subr.bf16.mxu0 0
      %4178 = vmatpush2.bf16.msra.mxu0 0
      %4179 = vmatprep.subr.bf16.mxu0 0
      %4180 = vmatpush2.bf16.msra.mxu0 0
      %4181 = vmatprep.subr.bf16.mxu0 0
      %4182 = vmatpush2.bf16.msra.mxu0 0
      %4183 = vmatprep.subr.bf16.mxu0 0
      %4184 = vmatpush2.bf16.msra.mxu0 0
      %4185 = vmatprep.mubr.bf16.mxu0 0
      %4186 = vmatmul.mubr.bf16.gmra.mxu0 %v4110
      %v4187 = vpop.f32.mrf.mxu0
      %v4188 = vadd.f32 0.0, %v4187
      %v4189 = vpop.f32.mrf.mxu0
      %v4190 = vadd.f32 0.0, %v4189
      %v4191 = vpop.f32.mrf.mxu0
      %v4192 = vpop.f32.mrf.mxu0
      %4193 = vdwg.mxu0
      %v4194 = vadd.f32 %v4007, %v4147
      %v4195 = vadd.f32 %v4008, %v4149
      %v4196 = vadd.f32 %v4009, %v4188
      %v4197 = vadd.f32 %v4010, %v4190
      %s4198 = scalar_lea.vmem %s9, 768
      %v4199 = vld [vmem:[%s4198] sm:$0xff]
      %v4200 = vld [vmem:[%s4198 + $0x8] sm:$0xff]
      %v4201 = vld [vmem:[%s4198 + $0x10] sm:$0xff]
      %v4202 = vld [vmem:[%s4198 + $0x18] sm:$0xff]
      %v4203 = vld [vmem:[%s4198 + $0x20] sm:$0xff]
      %v4204 = vld [vmem:[%s4198 + $0x28] sm:$0xff]
      %v4205 = vld [vmem:[%s4198 + $0x30] sm:$0xff]
      %v4206 = vld [vmem:[%s4198 + $0x38] sm:$0xff]
      %v4207 = vld [vmem:[%s4198 + $0x40] sm:$0xff]
      %v4208 = vld [vmem:[%s4198 + $0x48] sm:$0xff]
      %v4209 = vld [vmem:[%s4198 + $0x50] sm:$0xff]
      %v4210 = vld [vmem:[%s4198 + $0x58] sm:$0xff]
      %v4211 = vld [vmem:[%s4198 + $0x60] sm:$0xff]
      %v4212 = vld [vmem:[%s4198 + $0x68] sm:$0xff]
      %v4213 = vld [vmem:[%s4198 + $0x70] sm:$0xff]
      %v4214 = vld [vmem:[%s4198 + $0x78] sm:$0xff]
      %v4215 = vrot.slane %v3083, 3
      %v4232 = vunpack.c.l.b16 %v4199
      %v4233 = vunpack.c.h.b16 %v4199
      %v4234 = vunpack.c.l.b16 %v4200
      %v4235 = vunpack.c.h.b16 %v4200
      %v4236 = vunpack.c.l.b16 %v4201
      %v4237 = vunpack.c.h.b16 %v4201
      %v4238 = vunpack.c.l.b16 %v4202
      %v4239 = vunpack.c.h.b16 %v4202
      %v4240 = vunpack.c.l.b16 %v4203
      %v4241 = vunpack.c.h.b16 %v4203
      %v4242 = vunpack.c.l.b16 %v4204
      %v4243 = vunpack.c.h.b16 %v4204
      %v4244 = vunpack.c.l.b16 %v4205
      %v4245 = vunpack.c.h.b16 %v4205
      %v4246 = vunpack.c.l.b16 %v4206
      %v4247 = vunpack.c.h.b16 %v4206
      %v4248 = vunpack.c.l.b16 %v4207
      %v4249 = vunpack.c.h.b16 %v4207
      %v4250 = vunpack.c.l.b16 %v4208
      %v4251 = vunpack.c.h.b16 %v4208
      %v4252 = vunpack.c.l.b16 %v4209
      %v4253 = vunpack.c.h.b16 %v4209
      %v4254 = vunpack.c.l.b16 %v4210
      %v4255 = vunpack.c.h.b16 %v4210
      %v4256 = vunpack.c.l.b16 %v4211
      %v4257 = vunpack.c.h.b16 %v4211
      %v4258 = vunpack.c.l.b16 %v4212
      %v4259 = vunpack.c.h.b16 %v4212
      %v4260 = vunpack.c.l.b16 %v4213
      %v4261 = vunpack.c.h.b16 %v4213
      %v4262 = vunpack.c.l.b16 %v4214
      %v4263 = vunpack.c.h.b16 %v4214
      %v4264 = vpack.c.b16 %v4236, %v4232
      %v4265 = vpack.c.b16 %v4237, %v4233
      %v4266 = vpack.c.b16 %v4238, %v4234
      %v4267 = vpack.c.b16 %v4239, %v4235
      %v4268 = vpack.c.b16 %v4244, %v4240
      %v4269 = vpack.c.b16 %v4245, %v4241
      %v4270 = vpack.c.b16 %v4246, %v4242
      %v4271 = vpack.c.b16 %v4247, %v4243
      %v4272 = vpack.c.b16 %v4252, %v4248
      %v4273 = vpack.c.b16 %v4253, %v4249
      %v4274 = vpack.c.b16 %v4254, %v4250
      %v4275 = vpack.c.b16 %v4255, %v4251
      %v4276 = vpack.c.b16 %v4260, %v4256
      %v4277 = vpack.c.b16 %v4261, %v4257
      %v4278 = vpack.c.b16 %v4262, %v4258
      %v4279 = vpack.c.b16 %v4263, %v4259
      %v4297 = vsel %vm919, %v4215, 0
      %4299 = vmatprep.subr.bf16.mxu0 0
      %4300 = vmatpush1.bf16.msra.mxu0 0
      %4301 = vmatprep.subr.bf16.mxu0 0
      %4302 = vmatpush1.bf16.msra.mxu0 0
      %4303 = vmatprep.subr.bf16.mxu0 0
      %4304 = vmatpush1.bf16.msra.mxu0 0
      %4305 = vmatprep.subr.bf16.mxu0 0
      %4306 = vmatpush1.bf16.msra.mxu0 0
      %4307 = vmatprep.subr.bf16.mxu0 %v4277
      %4308 = vmatpush1.bf16.msra.mxu0 %v4276
      %4309 = vmatprep.subr.bf16.mxu0 %v4273
      %4310 = vmatpush1.bf16.msra.mxu0 %v4272
      %4311 = vmatprep.subr.bf16.mxu0 %v4269
      %4312 = vmatpush1.bf16.msra.mxu0 %v4268
      %4313 = vmatprep.subr.bf16.mxu0 %v4265
      %4314 = vmatpush1.bf16.msra.mxu0 %v4264
      %4315 = vmatprep.subr.bf16.mxu0 0
      %4316 = vmatpush2.bf16.msra.mxu0 0
      %4317 = vmatprep.subr.bf16.mxu0 0
      %4318 = vmatpush2.bf16.msra.mxu0 0
      %4319 = vmatprep.subr.bf16.mxu0 0
      %4320 = vmatpush2.bf16.msra.mxu0 0
      %4321 = vmatprep.subr.bf16.mxu0 0
      %4322 = vmatpush2.bf16.msra.mxu0 0
      %4323 = vmatprep.subr.bf16.mxu0 0
      %4324 = vmatpush2.bf16.msra.mxu0 0
      %4325 = vmatprep.subr.bf16.mxu0 0
      %4326 = vmatpush2.bf16.msra.mxu0 0
      %4327 = vmatprep.subr.bf16.mxu0 0
      %4328 = vmatpush2.bf16.msra.mxu0 0
      %4329 = vmatprep.subr.bf16.mxu0 0
      %4330 = vmatpush2.bf16.msra.mxu0 0
      %4331 = vmatprep.mubr.bf16.mxu0 0
      %4332 = vmatmul.mubr.bf16.gmra.mxu0 %v4297
      %v4333 = vpop.f32.mrf.mxu0
      %v4334 = vadd.f32 0.0, %v4333
      %v4335 = vpop.f32.mrf.mxu0
      %v4336 = vadd.f32 0.0, %v4335
      %v4337 = vpop.f32.mrf.mxu0
      %v4338 = vpop.f32.mrf.mxu0
      %4339 = vdwg.mxu0
      %4340 = vmatprep.subr.bf16.mxu0 0
      %4341 = vmatpush1.bf16.msra.mxu0 0
      %4342 = vmatprep.subr.bf16.mxu0 0
      %4343 = vmatpush1.bf16.msra.mxu0 0
      %4344 = vmatprep.subr.bf16.mxu0 0
      %4345 = vmatpush1.bf16.msra.mxu0 0
      %4346 = vmatprep.subr.bf16.mxu0 0
      %4347 = vmatpush1.bf16.msra.mxu0 0
      %4348 = vmatprep.subr.bf16.mxu0 %v4279
      %4349 = vmatpush1.bf16.msra.mxu0 %v4278
      %4350 = vmatprep.subr.bf16.mxu0 %v4275
      %4351 = vmatpush1.bf16.msra.mxu0 %v4274
      %4352 = vmatprep.subr.bf16.mxu0 %v4271
      %4353 = vmatpush1.bf16.msra.mxu0 %v4270
      %4354 = vmatprep.subr.bf16.mxu0 %v4267
      %4355 = vmatpush1.bf16.msra.mxu0 %v4266
      %4356 = vmatprep.subr.bf16.mxu0 0
      %4357 = vmatpush2.bf16.msra.mxu0 0
      %4358 = vmatprep.subr.bf16.mxu0 0
      %4359 = vmatpush2.bf16.msra.mxu0 0
      %4360 = vmatprep.subr.bf16.mxu0 0
      %4361 = vmatpush2.bf16.msra.mxu0 0
      %4362 = vmatprep.subr.bf16.mxu0 0
      %4363 = vmatpush2.bf16.msra.mxu0 0
      %4364 = vmatprep.subr.bf16.mxu0 0
      %4365 = vmatpush2.bf16.msra.mxu0 0
      %4366 = vmatprep.subr.bf16.mxu0 0
      %4367 = vmatpush2.bf16.msra.mxu0 0
      %4368 = vmatprep.subr.bf16.mxu0 0
      %4369 = vmatpush2.bf16.msra.mxu0 0
      %4370 = vmatprep.subr.bf16.mxu0 0
      %4371 = vmatpush2.bf16.msra.mxu0 0
      %4372 = vmatprep.mubr.bf16.mxu0 0
      %4373 = vmatmul.mubr.bf16.gmra.mxu0 %v4297
      %v4374 = vpop.f32.mrf.mxu0
      %v4375 = vadd.f32 0.0, %v4374
      %v4376 = vpop.f32.mrf.mxu0
      %v4377 = vadd.f32 0.0, %v4376
      %v4378 = vpop.f32.mrf.mxu0
      %v4379 = vpop.f32.mrf.mxu0
      %4380 = vdwg.mxu0
      %v4381 = vadd.f32 %v4194, %v4334
      %v4382 = vadd.f32 %v4195, %v4336
      %v4383 = vadd.f32 %v4196, %v4375
      %v4384 = vadd.f32 %v4197, %v4377
      %s4385 = scalar_lea.vmem %s9, 896
      %v4386 = vld [vmem:[%s4385] sm:$0xff]
      %v4387 = vld [vmem:[%s4385 + $0x8] sm:$0xff]
      %v4388 = vld [vmem:[%s4385 + $0x10] sm:$0xff]
      %v4389 = vld [vmem:[%s4385 + $0x18] sm:$0xff]
      %v4390 = vld [vmem:[%s4385 + $0x20] sm:$0xff]
      %v4391 = vld [vmem:[%s4385 + $0x28] sm:$0xff]
      %v4392 = vld [vmem:[%s4385 + $0x30] sm:$0xff]
      %v4393 = vld [vmem:[%s4385 + $0x38] sm:$0xff]
      %v4394 = vld [vmem:[%s4385 + $0x40] sm:$0xff]
      %v4395 = vld [vmem:[%s4385 + $0x48] sm:$0xff]
      %v4396 = vld [vmem:[%s4385 + $0x50] sm:$0xff]
      %v4397 = vld [vmem:[%s4385 + $0x58] sm:$0xff]
      %v4398 = vld [vmem:[%s4385 + $0x60] sm:$0xff]
      %v4399 = vld [vmem:[%s4385 + $0x68] sm:$0xff]
      %v4400 = vld [vmem:[%s4385 + $0x70] sm:$0xff]
      %v4401 = vld [vmem:[%s4385 + $0x78] sm:$0xff]
      %v4402 = vrot.slane %v3118, 3
      %v4419 = vunpack.c.l.b16 %v4386
      %v4420 = vunpack.c.h.b16 %v4386
      %v4421 = vunpack.c.l.b16 %v4387
      %v4422 = vunpack.c.h.b16 %v4387
      %v4423 = vunpack.c.l.b16 %v4388
      %v4424 = vunpack.c.h.b16 %v4388
      %v4425 = vunpack.c.l.b16 %v4389
      %v4426 = vunpack.c.h.b16 %v4389
      %v4427 = vunpack.c.l.b16 %v4390
      %v4428 = vunpack.c.h.b16 %v4390
      %v4429 = vunpack.c.l.b16 %v4391
      %v4430 = vunpack.c.h.b16 %v4391
      %v4431 = vunpack.c.l.b16 %v4392
      %v4432 = vunpack.c.h.b16 %v4392
      %v4433 = vunpack.c.l.b16 %v4393
      %v4434 = vunpack.c.h.b16 %v4393
      %v4435 = vunpack.c.l.b16 %v4394
      %v4436 = vunpack.c.h.b16 %v4394
      %v4437 = vunpack.c.l.b16 %v4395
      %v4438 = vunpack.c.h.b16 %v4395
      %v4439 = vunpack.c.l.b16 %v4396
      %v4440 = vunpack.c.h.b16 %v4396
      %v4441 = vunpack.c.l.b16 %v4397
      %v4442 = vunpack.c.h.b16 %v4397
      %v4443 = vunpack.c.l.b16 %v4398
      %v4444 = vunpack.c.h.b16 %v4398
      %v4445 = vunpack.c.l.b16 %v4399
      %v4446 = vunpack.c.h.b16 %v4399
      %v4447 = vunpack.c.l.b16 %v4400
      %v4448 = vunpack.c.h.b16 %v4400
      %v4449 = vunpack.c.l.b16 %v4401
      %v4450 = vunpack.c.h.b16 %v4401
      %v4451 = vpack.c.b16 %v4423, %v4419
      %v4452 = vpack.c.b16 %v4424, %v4420
      %v4453 = vpack.c.b16 %v4425, %v4421
      %v4454 = vpack.c.b16 %v4426, %v4422
      %v4455 = vpack.c.b16 %v4431, %v4427
      %v4456 = vpack.c.b16 %v4432, %v4428
      %v4457 = vpack.c.b16 %v4433, %v4429
      %v4458 = vpack.c.b16 %v4434, %v4430
      %v4459 = vpack.c.b16 %v4439, %v4435
      %v4460 = vpack.c.b16 %v4440, %v4436
      %v4461 = vpack.c.b16 %v4441, %v4437
      %v4462 = vpack.c.b16 %v4442, %v4438
      %v4463 = vpack.c.b16 %v4447, %v4443
      %v4464 = vpack.c.b16 %v4448, %v4444
      %v4465 = vpack.c.b16 %v4449, %v4445
      %v4466 = vpack.c.b16 %v4450, %v4446
      %v4484 = vsel %vm919, %v4402, 0
      %4486 = vmatprep.subr.bf16.mxu0 0
      %4487 = vmatpush1.bf16.msra.mxu0 0
      %4488 = vmatprep.subr.bf16.mxu0 0
      %4489 = vmatpush1.bf16.msra.mxu0 0
      %4490 = vmatprep.subr.bf16.mxu0 0
      %4491 = vmatpush1.bf16.msra.mxu0 0
      %4492 = vmatprep.subr.bf16.mxu0 0
      %4493 = vmatpush1.bf16.msra.mxu0 0
      %4494 = vmatprep.subr.bf16.mxu0 %v4464
      %4495 = vmatpush1.bf16.msra.mxu0 %v4463
      %4496 = vmatprep.subr.bf16.mxu0 %v4460
      %4497 = vmatpush1.bf16.msra.mxu0 %v4459
      %4498 = vmatprep.subr.bf16.mxu0 %v4456
      %4499 = vmatpush1.bf16.msra.mxu0 %v4455
      %4500 = vmatprep.subr.bf16.mxu0 %v4452
      %4501 = vmatpush1.bf16.msra.mxu0 %v4451
      %4502 = vmatprep.subr.bf16.mxu0 0
      %4503 = vmatpush2.bf16.msra.mxu0 0
      %4504 = vmatprep.subr.bf16.mxu0 0
      %4505 = vmatpush2.bf16.msra.mxu0 0
      %4506 = vmatprep.subr.bf16.mxu0 0
      %4507 = vmatpush2.bf16.msra.mxu0 0
      %4508 = vmatprep.subr.bf16.mxu0 0
      %4509 = vmatpush2.bf16.msra.mxu0 0
      %4510 = vmatprep.subr.bf16.mxu0 0
      %4511 = vmatpush2.bf16.msra.mxu0 0
      %4512 = vmatprep.subr.bf16.mxu0 0
      %4513 = vmatpush2.bf16.msra.mxu0 0
      %4514 = vmatprep.subr.bf16.mxu0 0
      %4515 = vmatpush2.bf16.msra.mxu0 0
      %4516 = vmatprep.subr.bf16.mxu0 0
      %4517 = vmatpush2.bf16.msra.mxu0 0
      %4518 = vmatprep.mubr.bf16.mxu0 0
      %4519 = vmatmul.mubr.bf16.gmra.mxu0 %v4484
      %v4520 = vpop.f32.mrf.mxu0
      %v4521 = vadd.f32 0.0, %v4520
      %v4522 = vpop.f32.mrf.mxu0
      %v4523 = vadd.f32 0.0, %v4522
      %v4524 = vpop.f32.mrf.mxu0
      %v4525 = vpop.f32.mrf.mxu0
      %4526 = vdwg.mxu0
      %4527 = vmatprep.subr.bf16.mxu0 0
      %4528 = vmatpush1.bf16.msra.mxu0 0
      %4529 = vmatprep.subr.bf16.mxu0 0
      %4530 = vmatpush1.bf16.msra.mxu0 0
      %4531 = vmatprep.subr.bf16.mxu0 0
      %4532 = vmatpush1.bf16.msra.mxu0 0
      %4533 = vmatprep.subr.bf16.mxu0 0
      %4534 = vmatpush1.bf16.msra.mxu0 0
      %4535 = vmatprep.subr.bf16.mxu0 %v4466
      %4536 = vmatpush1.bf16.msra.mxu0 %v4465
      %4537 = vmatprep.subr.bf16.mxu0 %v4462
      %4538 = vmatpush1.bf16.msra.mxu0 %v4461
      %4539 = vmatprep.subr.bf16.mxu0 %v4458
      %4540 = vmatpush1.bf16.msra.mxu0 %v4457
      %4541 = vmatprep.subr.bf16.mxu0 %v4454
      %4542 = vmatpush1.bf16.msra.mxu0 %v4453
      %4543 = vmatprep.subr.bf16.mxu0 0
      %4544 = vmatpush2.bf16.msra.mxu0 0
      %4545 = vmatprep.subr.bf16.mxu0 0
      %4546 = vmatpush2.bf16.msra.mxu0 0
      %4547 = vmatprep.subr.bf16.mxu0 0
      %4548 = vmatpush2.bf16.msra.mxu0 0
      %4549 = vmatprep.subr.bf16.mxu0 0
      %4550 = vmatpush2.bf16.msra.mxu0 0
      %4551 = vmatprep.subr.bf16.mxu0 0
      %4552 = vmatpush2.bf16.msra.mxu0 0
      %4553 = vmatprep.subr.bf16.mxu0 0
      %4554 = vmatpush2.bf16.msra.mxu0 0
      %4555 = vmatprep.subr.bf16.mxu0 0
      %4556 = vmatpush2.bf16.msra.mxu0 0
      %4557 = vmatprep.subr.bf16.mxu0 0
      %4558 = vmatpush2.bf16.msra.mxu0 0
      %4559 = vmatprep.mubr.bf16.mxu0 0
      %4560 = vmatmul.mubr.bf16.gmra.mxu0 %v4484
      %v4561 = vpop.f32.mrf.mxu0
      %v4562 = vadd.f32 0.0, %v4561
      %v4563 = vpop.f32.mrf.mxu0
      %v4564 = vadd.f32 0.0, %v4563
      %v4565 = vpop.f32.mrf.mxu0
      %v4566 = vpop.f32.mrf.mxu0
      %4567 = vdwg.mxu0
      %v4568 = vadd.f32 %v4381, %v4521
      %v4569 = vadd.f32 %v4382, %v4523
      %v4570 = vadd.f32 %v4383, %v4562
      %v4571 = vadd.f32 %v4384, %v4564
      %s4572 = scalar_lea.vmem %s9, 1024
      %v4573 = vld [vmem:[%s4572] sm:$0xff]
      %v4574 = vld [vmem:[%s4572 + $0x8] sm:$0xff]
      %v4575 = vld [vmem:[%s4572 + $0x10] sm:$0xff]
      %v4576 = vld [vmem:[%s4572 + $0x18] sm:$0xff]
      %v4577 = vld [vmem:[%s4572 + $0x20] sm:$0xff]
      %v4578 = vld [vmem:[%s4572 + $0x28] sm:$0xff]
      %v4579 = vld [vmem:[%s4572 + $0x30] sm:$0xff]
      %v4580 = vld [vmem:[%s4572 + $0x38] sm:$0xff]
      %v4581 = vld [vmem:[%s4572 + $0x40] sm:$0xff]
      %v4582 = vld [vmem:[%s4572 + $0x48] sm:$0xff]
      %v4583 = vld [vmem:[%s4572 + $0x50] sm:$0xff]
      %v4584 = vld [vmem:[%s4572 + $0x58] sm:$0xff]
      %v4585 = vld [vmem:[%s4572 + $0x60] sm:$0xff]
      %v4586 = vld [vmem:[%s4572 + $0x68] sm:$0xff]
      %v4587 = vld [vmem:[%s4572 + $0x70] sm:$0xff]
      %v4588 = vld [vmem:[%s4572 + $0x78] sm:$0xff]
      %v4589 = vrot.slane %v3083, 4
      %v4606 = vunpack.c.l.b16 %v4573
      %v4607 = vunpack.c.h.b16 %v4573
      %v4608 = vunpack.c.l.b16 %v4574
      %v4609 = vunpack.c.h.b16 %v4574
      %v4610 = vunpack.c.l.b16 %v4575
      %v4611 = vunpack.c.h.b16 %v4575
      %v4612 = vunpack.c.l.b16 %v4576
      %v4613 = vunpack.c.h.b16 %v4576
      %v4614 = vunpack.c.l.b16 %v4577
      %v4615 = vunpack.c.h.b16 %v4577
      %v4616 = vunpack.c.l.b16 %v4578
      %v4617 = vunpack.c.h.b16 %v4578
      %v4618 = vunpack.c.l.b16 %v4579
      %v4619 = vunpack.c.h.b16 %v4579
      %v4620 = vunpack.c.l.b16 %v4580
      %v4621 = vunpack.c.h.b16 %v4580
      %v4622 = vunpack.c.l.b16 %v4581
      %v4623 = vunpack.c.h.b16 %v4581
      %v4624 = vunpack.c.l.b16 %v4582
      %v4625 = vunpack.c.h.b16 %v4582
      %v4626 = vunpack.c.l.b16 %v4583
      %v4627 = vunpack.c.h.b16 %v4583
      %v4628 = vunpack.c.l.b16 %v4584
      %v4629 = vunpack.c.h.b16 %v4584
      %v4630 = vunpack.c.l.b16 %v4585
      %v4631 = vunpack.c.h.b16 %v4585
      %v4632 = vunpack.c.l.b16 %v4586
      %v4633 = vunpack.c.h.b16 %v4586
      %v4634 = vunpack.c.l.b16 %v4587
      %v4635 = vunpack.c.h.b16 %v4587
      %v4636 = vunpack.c.l.b16 %v4588
      %v4637 = vunpack.c.h.b16 %v4588
      %v4638 = vpack.c.b16 %v4610, %v4606
      %v4639 = vpack.c.b16 %v4611, %v4607
      %v4640 = vpack.c.b16 %v4612, %v4608
      %v4641 = vpack.c.b16 %v4613, %v4609
      %v4642 = vpack.c.b16 %v4618, %v4614
      %v4643 = vpack.c.b16 %v4619, %v4615
      %v4644 = vpack.c.b16 %v4620, %v4616
      %v4645 = vpack.c.b16 %v4621, %v4617
      %v4646 = vpack.c.b16 %v4626, %v4622
      %v4647 = vpack.c.b16 %v4627, %v4623
      %v4648 = vpack.c.b16 %v4628, %v4624
      %v4649 = vpack.c.b16 %v4629, %v4625
      %v4650 = vpack.c.b16 %v4634, %v4630
      %v4651 = vpack.c.b16 %v4635, %v4631
      %v4652 = vpack.c.b16 %v4636, %v4632
      %v4653 = vpack.c.b16 %v4637, %v4633
      %v4671 = vsel %vm919, %v4589, 0
      %4673 = vmatprep.subr.bf16.mxu0 0
      %4674 = vmatpush1.bf16.msra.mxu0 0
      %4675 = vmatprep.subr.bf16.mxu0 0
      %4676 = vmatpush1.bf16.msra.mxu0 0
      %4677 = vmatprep.subr.bf16.mxu0 0
      %4678 = vmatpush1.bf16.msra.mxu0 0
      %4679 = vmatprep.subr.bf16.mxu0 0
      %4680 = vmatpush1.bf16.msra.mxu0 0
      %4681 = vmatprep.subr.bf16.mxu0 %v4651
      %4682 = vmatpush1.bf16.msra.mxu0 %v4650
      %4683 = vmatprep.subr.bf16.mxu0 %v4647
      %4684 = vmatpush1.bf16.msra.mxu0 %v4646
      %4685 = vmatprep.subr.bf16.mxu0 %v4643
      %4686 = vmatpush1.bf16.msra.mxu0 %v4642
      %4687 = vmatprep.subr.bf16.mxu0 %v4639
      %4688 = vmatpush1.bf16.msra.mxu0 %v4638
      %4689 = vmatprep.subr.bf16.mxu0 0
      %4690 = vmatpush2.bf16.msra.mxu0 0
      %4691 = vmatprep.subr.bf16.mxu0 0
      %4692 = vmatpush2.bf16.msra.mxu0 0
      %4693 = vmatprep.subr.bf16.mxu0 0
      %4694 = vmatpush2.bf16.msra.mxu0 0
      %4695 = vmatprep.subr.bf16.mxu0 0
      %4696 = vmatpush2.bf16.msra.mxu0 0
      %4697 = vmatprep.subr.bf16.mxu0 0
      %4698 = vmatpush2.bf16.msra.mxu0 0
      %4699 = vmatprep.subr.bf16.mxu0 0
      %4700 = vmatpush2.bf16.msra.mxu0 0
      %4701 = vmatprep.subr.bf16.mxu0 0
      %4702 = vmatpush2.bf16.msra.mxu0 0
      %4703 = vmatprep.subr.bf16.mxu0 0
      %4704 = vmatpush2.bf16.msra.mxu0 0
      %4705 = vmatprep.mubr.bf16.mxu0 0
      %4706 = vmatmul.mubr.bf16.gmra.mxu0 %v4671
      %v4707 = vpop.f32.mrf.mxu0
      %v4708 = vadd.f32 0.0, %v4707
      %v4709 = vpop.f32.mrf.mxu0
      %v4710 = vadd.f32 0.0, %v4709
      %v4711 = vpop.f32.mrf.mxu0
      %v4712 = vpop.f32.mrf.mxu0
      %4713 = vdwg.mxu0
      %4714 = vmatprep.subr.bf16.mxu0 0
      %4715 = vmatpush1.bf16.msra.mxu0 0
      %4716 = vmatprep.subr.bf16.mxu0 0
      %4717 = vmatpush1.bf16.msra.mxu0 0
      %4718 = vmatprep.subr.bf16.mxu0 0
      %4719 = vmatpush1.bf16.msra.mxu0 0
      %4720 = vmatprep.subr.bf16.mxu0 0
      %4721 = vmatpush1.bf16.msra.mxu0 0
      %4722 = vmatprep.subr.bf16.mxu0 %v4653
      %4723 = vmatpush1.bf16.msra.mxu0 %v4652
      %4724 = vmatprep.subr.bf16.mxu0 %v4649
      %4725 = vmatpush1.bf16.msra.mxu0 %v4648
      %4726 = vmatprep.subr.bf16.mxu0 %v4645
      %4727 = vmatpush1.bf16.msra.mxu0 %v4644
      %4728 = vmatprep.subr.bf16.mxu0 %v4641
      %4729 = vmatpush1.bf16.msra.mxu0 %v4640
      %4730 = vmatprep.subr.bf16.mxu0 0
      %4731 = vmatpush2.bf16.msra.mxu0 0
      %4732 = vmatprep.subr.bf16.mxu0 0
      %4733 = vmatpush2.bf16.msra.mxu0 0
      %4734 = vmatprep.subr.bf16.mxu0 0
      %4735 = vmatpush2.bf16.msra.mxu0 0
      %4736 = vmatprep.subr.bf16.mxu0 0
      %4737 = vmatpush2.bf16.msra.mxu0 0
      %4738 = vmatprep.subr.bf16.mxu0 0
      %4739 = vmatpush2.bf16.msra.mxu0 0
      %4740 = vmatprep.subr.bf16.mxu0 0
      %4741 = vmatpush2.bf16.msra.mxu0 0
      %4742 = vmatprep.subr.bf16.mxu0 0
      %4743 = vmatpush2.bf16.msra.mxu0 0
      %4744 = vmatprep.subr.bf16.mxu0 0
      %4745 = vmatpush2.bf16.msra.mxu0 0
      %4746 = vmatprep.mubr.bf16.mxu0 0
      %4747 = vmatmul.mubr.bf16.gmra.mxu0 %v4671
      %v4748 = vpop.f32.mrf.mxu0
      %v4749 = vadd.f32 0.0, %v4748
      %v4750 = vpop.f32.mrf.mxu0
      %v4751 = vadd.f32 0.0, %v4750
      %v4752 = vpop.f32.mrf.mxu0
      %v4753 = vpop.f32.mrf.mxu0
      %4754 = vdwg.mxu0
      %v4755 = vadd.f32 %v4568, %v4708
      %v4756 = vadd.f32 %v4569, %v4710
      %v4757 = vadd.f32 %v4570, %v4749
      %v4758 = vadd.f32 %v4571, %v4751
      %s4759 = scalar_lea.vmem %s9, 1152
      %v4760 = vld [vmem:[%s4759] sm:$0xff]
      %v4761 = vld [vmem:[%s4759 + $0x8] sm:$0xff]
      %v4762 = vld [vmem:[%s4759 + $0x10] sm:$0xff]
      %v4763 = vld [vmem:[%s4759 + $0x18] sm:$0xff]
      %v4764 = vld [vmem:[%s4759 + $0x20] sm:$0xff]
      %v4765 = vld [vmem:[%s4759 + $0x28] sm:$0xff]
      %v4766 = vld [vmem:[%s4759 + $0x30] sm:$0xff]
      %v4767 = vld [vmem:[%s4759 + $0x38] sm:$0xff]
      %v4768 = vld [vmem:[%s4759 + $0x40] sm:$0xff]
      %v4769 = vld [vmem:[%s4759 + $0x48] sm:$0xff]
      %v4770 = vld [vmem:[%s4759 + $0x50] sm:$0xff]
      %v4771 = vld [vmem:[%s4759 + $0x58] sm:$0xff]
      %v4772 = vld [vmem:[%s4759 + $0x60] sm:$0xff]
      %v4773 = vld [vmem:[%s4759 + $0x68] sm:$0xff]
      %v4774 = vld [vmem:[%s4759 + $0x70] sm:$0xff]
      %v4775 = vld [vmem:[%s4759 + $0x78] sm:$0xff]
      %v4776 = vrot.slane %v3118, 4
      %v4793 = vunpack.c.l.b16 %v4760
      %v4794 = vunpack.c.h.b16 %v4760
      %v4795 = vunpack.c.l.b16 %v4761
      %v4796 = vunpack.c.h.b16 %v4761
      %v4797 = vunpack.c.l.b16 %v4762
      %v4798 = vunpack.c.h.b16 %v4762
      %v4799 = vunpack.c.l.b16 %v4763
      %v4800 = vunpack.c.h.b16 %v4763
      %v4801 = vunpack.c.l.b16 %v4764
      %v4802 = vunpack.c.h.b16 %v4764
      %v4803 = vunpack.c.l.b16 %v4765
      %v4804 = vunpack.c.h.b16 %v4765
      %v4805 = vunpack.c.l.b16 %v4766
      %v4806 = vunpack.c.h.b16 %v4766
      %v4807 = vunpack.c.l.b16 %v4767
      %v4808 = vunpack.c.h.b16 %v4767
      %v4809 = vunpack.c.l.b16 %v4768
      %v4810 = vunpack.c.h.b16 %v4768
      %v4811 = vunpack.c.l.b16 %v4769
      %v4812 = vunpack.c.h.b16 %v4769
      %v4813 = vunpack.c.l.b16 %v4770
      %v4814 = vunpack.c.h.b16 %v4770
      %v4815 = vunpack.c.l.b16 %v4771
      %v4816 = vunpack.c.h.b16 %v4771
      %v4817 = vunpack.c.l.b16 %v4772
      %v4818 = vunpack.c.h.b16 %v4772
      %v4819 = vunpack.c.l.b16 %v4773
      %v4820 = vunpack.c.h.b16 %v4773
      %v4821 = vunpack.c.l.b16 %v4774
      %v4822 = vunpack.c.h.b16 %v4774
      %v4823 = vunpack.c.l.b16 %v4775
      %v4824 = vunpack.c.h.b16 %v4775
      %v4825 = vpack.c.b16 %v4797, %v4793
      %v4826 = vpack.c.b16 %v4798, %v4794
      %v4827 = vpack.c.b16 %v4799, %v4795
      %v4828 = vpack.c.b16 %v4800, %v4796
      %v4829 = vpack.c.b16 %v4805, %v4801
      %v4830 = vpack.c.b16 %v4806, %v4802
      %v4831 = vpack.c.b16 %v4807, %v4803
      %v4832 = vpack.c.b16 %v4808, %v4804
      %v4833 = vpack.c.b16 %v4813, %v4809
      %v4834 = vpack.c.b16 %v4814, %v4810
      %v4835 = vpack.c.b16 %v4815, %v4811
      %v4836 = vpack.c.b16 %v4816, %v4812
      %v4837 = vpack.c.b16 %v4821, %v4817
      %v4838 = vpack.c.b16 %v4822, %v4818
      %v4839 = vpack.c.b16 %v4823, %v4819
      %v4840 = vpack.c.b16 %v4824, %v4820
      %v4858 = vsel %vm919, %v4776, 0
      %4860 = vmatprep.subr.bf16.mxu0 0
      %4861 = vmatpush1.bf16.msra.mxu0 0
      %4862 = vmatprep.subr.bf16.mxu0 0
      %4863 = vmatpush1.bf16.msra.mxu0 0
      %4864 = vmatprep.subr.bf16.mxu0 0
      %4865 = vmatpush1.bf16.msra.mxu0 0
      %4866 = vmatprep.subr.bf16.mxu0 0
      %4867 = vmatpush1.bf16.msra.mxu0 0
      %4868 = vmatprep.subr.bf16.mxu0 %v4838
      %4869 = vmatpush1.bf16.msra.mxu0 %v4837
      %4870 = vmatprep.subr.bf16.mxu0 %v4834
      %4871 = vmatpush1.bf16.msra.mxu0 %v4833
      %4872 = vmatprep.subr.bf16.mxu0 %v4830
      %4873 = vmatpush1.bf16.msra.mxu0 %v4829
      %4874 = vmatprep.subr.bf16.mxu0 %v4826
      %4875 = vmatpush1.bf16.msra.mxu0 %v4825
      %4876 = vmatprep.subr.bf16.mxu0 0
      %4877 = vmatpush2.bf16.msra.mxu0 0
      %4878 = vmatprep.subr.bf16.mxu0 0
      %4879 = vmatpush2.bf16.msra.mxu0 0
      %4880 = vmatprep.subr.bf16.mxu0 0
      %4881 = vmatpush2.bf16.msra.mxu0 0
      %4882 = vmatprep.subr.bf16.mxu0 0
      %4883 = vmatpush2.bf16.msra.mxu0 0
      %4884 = vmatprep.subr.bf16.mxu0 0
      %4885 = vmatpush2.bf16.msra.mxu0 0
      %4886 = vmatprep.subr.bf16.mxu0 0
      %4887 = vmatpush2.bf16.msra.mxu0 0
      %4888 = vmatprep.subr.bf16.mxu0 0
      %4889 = vmatpush2.bf16.msra.mxu0 0
      %4890 = vmatprep.subr.bf16.mxu0 0
      %4891 = vmatpush2.bf16.msra.mxu0 0
      %4892 = vmatprep.mubr.bf16.mxu0 0
      %4893 = vmatmul.mubr.bf16.gmra.mxu0 %v4858
      %v4894 = vpop.f32.mrf.mxu0
      %v4895 = vadd.f32 0.0, %v4894
      %v4896 = vpop.f32.mrf.mxu0
      %v4897 = vadd.f32 0.0, %v4896
      %v4898 = vpop.f32.mrf.mxu0
      %v4899 = vpop.f32.mrf.mxu0
      %4900 = vdwg.mxu0
      %4901 = vmatprep.subr.bf16.mxu0 0
      %4902 = vmatpush1.bf16.msra.mxu0 0
      %4903 = vmatprep.subr.bf16.mxu0 0
      %4904 = vmatpush1.bf16.msra.mxu0 0
      %4905 = vmatprep.subr.bf16.mxu0 0
      %4906 = vmatpush1.bf16.msra.mxu0 0
      %4907 = vmatprep.subr.bf16.mxu0 0
      %4908 = vmatpush1.bf16.msra.mxu0 0
      %4909 = vmatprep.subr.bf16.mxu0 %v4840
      %4910 = vmatpush1.bf16.msra.mxu0 %v4839
      %4911 = vmatprep.subr.bf16.mxu0 %v4836
      %4912 = vmatpush1.bf16.msra.mxu0 %v4835
      %4913 = vmatprep.subr.bf16.mxu0 %v4832
      %4914 = vmatpush1.bf16.msra.mxu0 %v4831
      %4915 = vmatprep.subr.bf16.mxu0 %v4828
      %4916 = vmatpush1.bf16.msra.mxu0 %v4827
      %4917 = vmatprep.subr.bf16.mxu0 0
      %4918 = vmatpush2.bf16.msra.mxu0 0
      %4919 = vmatprep.subr.bf16.mxu0 0
      %4920 = vmatpush2.bf16.msra.mxu0 0
      %4921 = vmatprep.subr.bf16.mxu0 0
      %4922 = vmatpush2.bf16.msra.mxu0 0
      %4923 = vmatprep.subr.bf16.mxu0 0
      %4924 = vmatpush2.bf16.msra.mxu0 0
      %4925 = vmatprep.subr.bf16.mxu0 0
      %4926 = vmatpush2.bf16.msra.mxu0 0
      %4927 = vmatprep.subr.bf16.mxu0 0
      %4928 = vmatpush2.bf16.msra.mxu0 0
      %4929 = vmatprep.subr.bf16.mxu0 0
      %4930 = vmatpush2.bf16.msra.mxu0 0
      %4931 = vmatprep.subr.bf16.mxu0 0
      %4932 = vmatpush2.bf16.msra.mxu0 0
      %4933 = vmatprep.mubr.bf16.mxu0 0
      %4934 = vmatmul.mubr.bf16.gmra.mxu0 %v4858
      %v4935 = vpop.f32.mrf.mxu0
      %v4936 = vadd.f32 0.0, %v4935
      %v4937 = vpop.f32.mrf.mxu0
      %v4938 = vadd.f32 0.0, %v4937
      %v4939 = vpop.f32.mrf.mxu0
      %v4940 = vpop.f32.mrf.mxu0
      %4941 = vdwg.mxu0
      %v4942 = vadd.f32 %v4755, %v4895
      %v4943 = vadd.f32 %v4756, %v4897
      %v4944 = vadd.f32 %v4757, %v4936
      %v4945 = vadd.f32 %v4758, %v4938
      %s4946 = scalar_lea.vmem %s9, 1280
      %v4947 = vld [vmem:[%s4946] sm:$0xff]
      %v4948 = vld [vmem:[%s4946 + $0x8] sm:$0xff]
      %v4949 = vld [vmem:[%s4946 + $0x10] sm:$0xff]
      %v4950 = vld [vmem:[%s4946 + $0x18] sm:$0xff]
      %v4951 = vld [vmem:[%s4946 + $0x20] sm:$0xff]
      %v4952 = vld [vmem:[%s4946 + $0x28] sm:$0xff]
      %v4953 = vld [vmem:[%s4946 + $0x30] sm:$0xff]
      %v4954 = vld [vmem:[%s4946 + $0x38] sm:$0xff]
      %v4955 = vld [vmem:[%s4946 + $0x40] sm:$0xff]
      %v4956 = vld [vmem:[%s4946 + $0x48] sm:$0xff]
      %v4957 = vld [vmem:[%s4946 + $0x50] sm:$0xff]
      %v4958 = vld [vmem:[%s4946 + $0x58] sm:$0xff]
      %v4959 = vld [vmem:[%s4946 + $0x60] sm:$0xff]
      %v4960 = vld [vmem:[%s4946 + $0x68] sm:$0xff]
      %v4961 = vld [vmem:[%s4946 + $0x70] sm:$0xff]
      %v4962 = vld [vmem:[%s4946 + $0x78] sm:$0xff]
      %v4963 = vrot.slane %v3083, 5
      %v4980 = vunpack.c.l.b16 %v4947
      %v4981 = vunpack.c.h.b16 %v4947
      %v4982 = vunpack.c.l.b16 %v4948
      %v4983 = vunpack.c.h.b16 %v4948
      %v4984 = vunpack.c.l.b16 %v4949
      %v4985 = vunpack.c.h.b16 %v4949
      %v4986 = vunpack.c.l.b16 %v4950
      %v4987 = vunpack.c.h.b16 %v4950
      %v4988 = vunpack.c.l.b16 %v4951
      %v4989 = vunpack.c.h.b16 %v4951
      %v4990 = vunpack.c.l.b16 %v4952
      %v4991 = vunpack.c.h.b16 %v4952
      %v4992 = vunpack.c.l.b16 %v4953
      %v4993 = vunpack.c.h.b16 %v4953
      %v4994 = vunpack.c.l.b16 %v4954
      %v4995 = vunpack.c.h.b16 %v4954
      %v4996 = vunpack.c.l.b16 %v4955
      %v4997 = vunpack.c.h.b16 %v4955
      %v4998 = vunpack.c.l.b16 %v4956
      %v4999 = vunpack.c.h.b16 %v4956
      %v5000 = vunpack.c.l.b16 %v4957
      %v5001 = vunpack.c.h.b16 %v4957
      %v5002 = vunpack.c.l.b16 %v4958
      %v5003 = vunpack.c.h.b16 %v4958
      %v5004 = vunpack.c.l.b16 %v4959
      %v5005 = vunpack.c.h.b16 %v4959
      %v5006 = vunpack.c.l.b16 %v4960
      %v5007 = vunpack.c.h.b16 %v4960
      %v5008 = vunpack.c.l.b16 %v4961
      %v5009 = vunpack.c.h.b16 %v4961
      %v5010 = vunpack.c.l.b16 %v4962
      %v5011 = vunpack.c.h.b16 %v4962
      %v5012 = vpack.c.b16 %v4984, %v4980
      %v5013 = vpack.c.b16 %v4985, %v4981
      %v5014 = vpack.c.b16 %v4986, %v4982
      %v5015 = vpack.c.b16 %v4987, %v4983
      %v5016 = vpack.c.b16 %v4992, %v4988
      %v5017 = vpack.c.b16 %v4993, %v4989
      %v5018 = vpack.c.b16 %v4994, %v4990
      %v5019 = vpack.c.b16 %v4995, %v4991
      %v5020 = vpack.c.b16 %v5000, %v4996
      %v5021 = vpack.c.b16 %v5001, %v4997
      %v5022 = vpack.c.b16 %v5002, %v4998
      %v5023 = vpack.c.b16 %v5003, %v4999
      %v5024 = vpack.c.b16 %v5008, %v5004
      %v5025 = vpack.c.b16 %v5009, %v5005
      %v5026 = vpack.c.b16 %v5010, %v5006
      %v5027 = vpack.c.b16 %v5011, %v5007
      %v5045 = vsel %vm919, %v4963, 0
      %5047 = vmatprep.subr.bf16.mxu0 0
      %5048 = vmatpush1.bf16.msra.mxu0 0
      %5049 = vmatprep.subr.bf16.mxu0 0
      %5050 = vmatpush1.bf16.msra.mxu0 0
      %5051 = vmatprep.subr.bf16.mxu0 0
      %5052 = vmatpush1.bf16.msra.mxu0 0
      %5053 = vmatprep.subr.bf16.mxu0 0
      %5054 = vmatpush1.bf16.msra.mxu0 0
      %5055 = vmatprep.subr.bf16.mxu0 %v5025
      %5056 = vmatpush1.bf16.msra.mxu0 %v5024
      %5057 = vmatprep.subr.bf16.mxu0 %v5021
      %5058 = vmatpush1.bf16.msra.mxu0 %v5020
      %5059 = vmatprep.subr.bf16.mxu0 %v5017
      %5060 = vmatpush1.bf16.msra.mxu0 %v5016
      %5061 = vmatprep.subr.bf16.mxu0 %v5013
      %5062 = vmatpush1.bf16.msra.mxu0 %v5012
      %5063 = vmatprep.subr.bf16.mxu0 0
      %5064 = vmatpush2.bf16.msra.mxu0 0
      %5065 = vmatprep.subr.bf16.mxu0 0
      %5066 = vmatpush2.bf16.msra.mxu0 0
      %5067 = vmatprep.subr.bf16.mxu0 0
      %5068 = vmatpush2.bf16.msra.mxu0 0
      %5069 = vmatprep.subr.bf16.mxu0 0
      %5070 = vmatpush2.bf16.msra.mxu0 0
      %5071 = vmatprep.subr.bf16.mxu0 0
      %5072 = vmatpush2.bf16.msra.mxu0 0
      %5073 = vmatprep.subr.bf16.mxu0 0
      %5074 = vmatpush2.bf16.msra.mxu0 0
      %5075 = vmatprep.subr.bf16.mxu0 0
      %5076 = vmatpush2.bf16.msra.mxu0 0
      %5077 = vmatprep.subr.bf16.mxu0 0
      %5078 = vmatpush2.bf16.msra.mxu0 0
      %5079 = vmatprep.mubr.bf16.mxu0 0
      %5080 = vmatmul.mubr.bf16.gmra.mxu0 %v5045
      %v5081 = vpop.f32.mrf.mxu0
      %v5082 = vadd.f32 0.0, %v5081
      %v5083 = vpop.f32.mrf.mxu0
      %v5084 = vadd.f32 0.0, %v5083
      %v5085 = vpop.f32.mrf.mxu0
      %v5086 = vpop.f32.mrf.mxu0
      %5087 = vdwg.mxu0
      %5088 = vmatprep.subr.bf16.mxu0 0
      %5089 = vmatpush1.bf16.msra.mxu0 0
      %5090 = vmatprep.subr.bf16.mxu0 0
      %5091 = vmatpush1.bf16.msra.mxu0 0
      %5092 = vmatprep.subr.bf16.mxu0 0
      %5093 = vmatpush1.bf16.msra.mxu0 0
      %5094 = vmatprep.subr.bf16.mxu0 0
      %5095 = vmatpush1.bf16.msra.mxu0 0
      %5096 = vmatprep.subr.bf16.mxu0 %v5027
      %5097 = vmatpush1.bf16.msra.mxu0 %v5026
      %5098 = vmatprep.subr.bf16.mxu0 %v5023
      %5099 = vmatpush1.bf16.msra.mxu0 %v5022
      %5100 = vmatprep.subr.bf16.mxu0 %v5019
      %5101 = vmatpush1.bf16.msra.mxu0 %v5018
      %5102 = vmatprep.subr.bf16.mxu0 %v5015
      %5103 = vmatpush1.bf16.msra.mxu0 %v5014
      %5104 = vmatprep.subr.bf16.mxu0 0
      %5105 = vmatpush2.bf16.msra.mxu0 0
      %5106 = vmatprep.subr.bf16.mxu0 0
      %5107 = vmatpush2.bf16.msra.mxu0 0
      %5108 = vmatprep.subr.bf16.mxu0 0
      %5109 = vmatpush2.bf16.msra.mxu0 0
      %5110 = vmatprep.subr.bf16.mxu0 0
      %5111 = vmatpush2.bf16.msra.mxu0 0
      %5112 = vmatprep.subr.bf16.mxu0 0
      %5113 = vmatpush2.bf16.msra.mxu0 0
      %5114 = vmatprep.subr.bf16.mxu0 0
      %5115 = vmatpush2.bf16.msra.mxu0 0
      %5116 = vmatprep.subr.bf16.mxu0 0
      %5117 = vmatpush2.bf16.msra.mxu0 0
      %5118 = vmatprep.subr.bf16.mxu0 0
      %5119 = vmatpush2.bf16.msra.mxu0 0
      %5120 = vmatprep.mubr.bf16.mxu0 0
      %5121 = vmatmul.mubr.bf16.gmra.mxu0 %v5045
      %v5122 = vpop.f32.mrf.mxu0
      %v5123 = vadd.f32 0.0, %v5122
      %v5124 = vpop.f32.mrf.mxu0
      %v5125 = vadd.f32 0.0, %v5124
      %v5126 = vpop.f32.mrf.mxu0
      %v5127 = vpop.f32.mrf.mxu0
      %5128 = vdwg.mxu0
      %v5129 = vadd.f32 %v4942, %v5082
      %v5130 = vadd.f32 %v4943, %v5084
      %v5131 = vadd.f32 %v4944, %v5123
      %v5132 = vadd.f32 %v4945, %v5125
      %s5133 = scalar_lea.vmem %s9, 1408
      %v5134 = vld [vmem:[%s5133] sm:$0xff]
      %v5135 = vld [vmem:[%s5133 + $0x8] sm:$0xff]
      %v5136 = vld [vmem:[%s5133 + $0x10] sm:$0xff]
      %v5137 = vld [vmem:[%s5133 + $0x18] sm:$0xff]
      %v5138 = vld [vmem:[%s5133 + $0x20] sm:$0xff]
      %v5139 = vld [vmem:[%s5133 + $0x28] sm:$0xff]
      %v5140 = vld [vmem:[%s5133 + $0x30] sm:$0xff]
      %v5141 = vld [vmem:[%s5133 + $0x38] sm:$0xff]
      %v5142 = vld [vmem:[%s5133 + $0x40] sm:$0xff]
      %v5143 = vld [vmem:[%s5133 + $0x48] sm:$0xff]
      %v5144 = vld [vmem:[%s5133 + $0x50] sm:$0xff]
      %v5145 = vld [vmem:[%s5133 + $0x58] sm:$0xff]
      %v5146 = vld [vmem:[%s5133 + $0x60] sm:$0xff]
      %v5147 = vld [vmem:[%s5133 + $0x68] sm:$0xff]
      %v5148 = vld [vmem:[%s5133 + $0x70] sm:$0xff]
      %v5149 = vld [vmem:[%s5133 + $0x78] sm:$0xff]
      %v5150 = vrot.slane %v3118, 5
      %v5167 = vunpack.c.l.b16 %v5134
      %v5168 = vunpack.c.h.b16 %v5134
      %v5169 = vunpack.c.l.b16 %v5135
      %v5170 = vunpack.c.h.b16 %v5135
      %v5171 = vunpack.c.l.b16 %v5136
      %v5172 = vunpack.c.h.b16 %v5136
      %v5173 = vunpack.c.l.b16 %v5137
      %v5174 = vunpack.c.h.b16 %v5137
      %v5175 = vunpack.c.l.b16 %v5138
      %v5176 = vunpack.c.h.b16 %v5138
      %v5177 = vunpack.c.l.b16 %v5139
      %v5178 = vunpack.c.h.b16 %v5139
      %v5179 = vunpack.c.l.b16 %v5140
      %v5180 = vunpack.c.h.b16 %v5140
      %v5181 = vunpack.c.l.b16 %v5141
      %v5182 = vunpack.c.h.b16 %v5141
      %v5183 = vunpack.c.l.b16 %v5142
      %v5184 = vunpack.c.h.b16 %v5142
      %v5185 = vunpack.c.l.b16 %v5143
      %v5186 = vunpack.c.h.b16 %v5143
      %v5187 = vunpack.c.l.b16 %v5144
      %v5188 = vunpack.c.h.b16 %v5144
      %v5189 = vunpack.c.l.b16 %v5145
      %v5190 = vunpack.c.h.b16 %v5145
      %v5191 = vunpack.c.l.b16 %v5146
      %v5192 = vunpack.c.h.b16 %v5146
      %v5193 = vunpack.c.l.b16 %v5147
      %v5194 = vunpack.c.h.b16 %v5147
      %v5195 = vunpack.c.l.b16 %v5148
      %v5196 = vunpack.c.h.b16 %v5148
      %v5197 = vunpack.c.l.b16 %v5149
      %v5198 = vunpack.c.h.b16 %v5149
      %v5199 = vpack.c.b16 %v5171, %v5167
      %v5200 = vpack.c.b16 %v5172, %v5168
      %v5201 = vpack.c.b16 %v5173, %v5169
      %v5202 = vpack.c.b16 %v5174, %v5170
      %v5203 = vpack.c.b16 %v5179, %v5175
      %v5204 = vpack.c.b16 %v5180, %v5176
      %v5205 = vpack.c.b16 %v5181, %v5177
      %v5206 = vpack.c.b16 %v5182, %v5178
      %v5207 = vpack.c.b16 %v5187, %v5183
      %v5208 = vpack.c.b16 %v5188, %v5184
      %v5209 = vpack.c.b16 %v5189, %v5185
      %v5210 = vpack.c.b16 %v5190, %v5186
      %v5211 = vpack.c.b16 %v5195, %v5191
      %v5212 = vpack.c.b16 %v5196, %v5192
      %v5213 = vpack.c.b16 %v5197, %v5193
      %v5214 = vpack.c.b16 %v5198, %v5194
      %v5232 = vsel %vm919, %v5150, 0
      %5234 = vmatprep.subr.bf16.mxu0 0
      %5235 = vmatpush1.bf16.msra.mxu0 0
      %5236 = vmatprep.subr.bf16.mxu0 0
      %5237 = vmatpush1.bf16.msra.mxu0 0
      %5238 = vmatprep.subr.bf16.mxu0 0
      %5239 = vmatpush1.bf16.msra.mxu0 0
      %5240 = vmatprep.subr.bf16.mxu0 0
      %5241 = vmatpush1.bf16.msra.mxu0 0
      %5242 = vmatprep.subr.bf16.mxu0 %v5212
      %5243 = vmatpush1.bf16.msra.mxu0 %v5211
      %5244 = vmatprep.subr.bf16.mxu0 %v5208
      %5245 = vmatpush1.bf16.msra.mxu0 %v5207
      %5246 = vmatprep.subr.bf16.mxu0 %v5204
      %5247 = vmatpush1.bf16.msra.mxu0 %v5203
      %5248 = vmatprep.subr.bf16.mxu0 %v5200
      %5249 = vmatpush1.bf16.msra.mxu0 %v5199
      %5250 = vmatprep.subr.bf16.mxu0 0
      %5251 = vmatpush2.bf16.msra.mxu0 0
      %5252 = vmatprep.subr.bf16.mxu0 0
      %5253 = vmatpush2.bf16.msra.mxu0 0
      %5254 = vmatprep.subr.bf16.mxu0 0
      %5255 = vmatpush2.bf16.msra.mxu0 0
      %5256 = vmatprep.subr.bf16.mxu0 0
      %5257 = vmatpush2.bf16.msra.mxu0 0
      %5258 = vmatprep.subr.bf16.mxu0 0
      %5259 = vmatpush2.bf16.msra.mxu0 0
      %5260 = vmatprep.subr.bf16.mxu0 0
      %5261 = vmatpush2.bf16.msra.mxu0 0
      %5262 = vmatprep.subr.bf16.mxu0 0
      %5263 = vmatpush2.bf16.msra.mxu0 0
      %5264 = vmatprep.subr.bf16.mxu0 0
      %5265 = vmatpush2.bf16.msra.mxu0 0
      %5266 = vmatprep.mubr.bf16.mxu0 0
      %5267 = vmatmul.mubr.bf16.gmra.mxu0 %v5232
      %v5268 = vpop.f32.mrf.mxu0
      %v5269 = vadd.f32 0.0, %v5268
      %v5270 = vpop.f32.mrf.mxu0
      %v5271 = vadd.f32 0.0, %v5270
      %v5272 = vpop.f32.mrf.mxu0
      %v5273 = vpop.f32.mrf.mxu0
      %5274 = vdwg.mxu0
      %5275 = vmatprep.subr.bf16.mxu0 0
      %5276 = vmatpush1.bf16.msra.mxu0 0
      %5277 = vmatprep.subr.bf16.mxu0 0
      %5278 = vmatpush1.bf16.msra.mxu0 0
      %5279 = vmatprep.subr.bf16.mxu0 0
      %5280 = vmatpush1.bf16.msra.mxu0 0
      %5281 = vmatprep.subr.bf16.mxu0 0
      %5282 = vmatpush1.bf16.msra.mxu0 0
      %5283 = vmatprep.subr.bf16.mxu0 %v5214
      %5284 = vmatpush1.bf16.msra.mxu0 %v5213
      %5285 = vmatprep.subr.bf16.mxu0 %v5210
      %5286 = vmatpush1.bf16.msra.mxu0 %v5209
      %5287 = vmatprep.subr.bf16.mxu0 %v5206
      %5288 = vmatpush1.bf16.msra.mxu0 %v5205
      %5289 = vmatprep.subr.bf16.mxu0 %v5202
      %5290 = vmatpush1.bf16.msra.mxu0 %v5201
      %5291 = vmatprep.subr.bf16.mxu0 0
      %5292 = vmatpush2.bf16.msra.mxu0 0
      %5293 = vmatprep.subr.bf16.mxu0 0
      %5294 = vmatpush2.bf16.msra.mxu0 0
      %5295 = vmatprep.subr.bf16.mxu0 0
      %5296 = vmatpush2.bf16.msra.mxu0 0
      %5297 = vmatprep.subr.bf16.mxu0 0
      %5298 = vmatpush2.bf16.msra.mxu0 0
      %5299 = vmatprep.subr.bf16.mxu0 0
      %5300 = vmatpush2.bf16.msra.mxu0 0
      %5301 = vmatprep.subr.bf16.mxu0 0
      %5302 = vmatpush2.bf16.msra.mxu0 0
      %5303 = vmatprep.subr.bf16.mxu0 0
      %5304 = vmatpush2.bf16.msra.mxu0 0
      %5305 = vmatprep.subr.bf16.mxu0 0
      %5306 = vmatpush2.bf16.msra.mxu0 0
      %5307 = vmatprep.mubr.bf16.mxu0 0
      %5308 = vmatmul.mubr.bf16.gmra.mxu0 %v5232
      %v5309 = vpop.f32.mrf.mxu0
      %v5310 = vadd.f32 0.0, %v5309
      %v5311 = vpop.f32.mrf.mxu0
      %v5312 = vadd.f32 0.0, %v5311
      %v5313 = vpop.f32.mrf.mxu0
      %v5314 = vpop.f32.mrf.mxu0
      %5315 = vdwg.mxu0
      %v5316 = vadd.f32 %v5129, %v5269
      %v5317 = vadd.f32 %v5130, %v5271
      %v5318 = vadd.f32 %v5131, %v5310
      %v5319 = vadd.f32 %v5132, %v5312
      %s5320 = scalar_lea.vmem %s9, 1536
      %v5321 = vld [vmem:[%s5320] sm:$0xff]
      %v5322 = vld [vmem:[%s5320 + $0x8] sm:$0xff]
      %v5323 = vld [vmem:[%s5320 + $0x10] sm:$0xff]
      %v5324 = vld [vmem:[%s5320 + $0x18] sm:$0xff]
      %v5325 = vld [vmem:[%s5320 + $0x20] sm:$0xff]
      %v5326 = vld [vmem:[%s5320 + $0x28] sm:$0xff]
      %v5327 = vld [vmem:[%s5320 + $0x30] sm:$0xff]
      %v5328 = vld [vmem:[%s5320 + $0x38] sm:$0xff]
      %v5329 = vld [vmem:[%s5320 + $0x40] sm:$0xff]
      %v5330 = vld [vmem:[%s5320 + $0x48] sm:$0xff]
      %v5331 = vld [vmem:[%s5320 + $0x50] sm:$0xff]
      %v5332 = vld [vmem:[%s5320 + $0x58] sm:$0xff]
      %v5333 = vld [vmem:[%s5320 + $0x60] sm:$0xff]
      %v5334 = vld [vmem:[%s5320 + $0x68] sm:$0xff]
      %v5335 = vld [vmem:[%s5320 + $0x70] sm:$0xff]
      %v5336 = vld [vmem:[%s5320 + $0x78] sm:$0xff]
      %v5337 = vrot.slane %v3083, 6
      %v5354 = vunpack.c.l.b16 %v5321
      %v5355 = vunpack.c.h.b16 %v5321
      %v5356 = vunpack.c.l.b16 %v5322
      %v5357 = vunpack.c.h.b16 %v5322
      %v5358 = vunpack.c.l.b16 %v5323
      %v5359 = vunpack.c.h.b16 %v5323
      %v5360 = vunpack.c.l.b16 %v5324
      %v5361 = vunpack.c.h.b16 %v5324
      %v5362 = vunpack.c.l.b16 %v5325
      %v5363 = vunpack.c.h.b16 %v5325
      %v5364 = vunpack.c.l.b16 %v5326
      %v5365 = vunpack.c.h.b16 %v5326
      %v5366 = vunpack.c.l.b16 %v5327
      %v5367 = vunpack.c.h.b16 %v5327
      %v5368 = vunpack.c.l.b16 %v5328
      %v5369 = vunpack.c.h.b16 %v5328
      %v5370 = vunpack.c.l.b16 %v5329
      %v5371 = vunpack.c.h.b16 %v5329
      %v5372 = vunpack.c.l.b16 %v5330
      %v5373 = vunpack.c.h.b16 %v5330
      %v5374 = vunpack.c.l.b16 %v5331
      %v5375 = vunpack.c.h.b16 %v5331
      %v5376 = vunpack.c.l.b16 %v5332
      %v5377 = vunpack.c.h.b16 %v5332
      %v5378 = vunpack.c.l.b16 %v5333
      %v5379 = vunpack.c.h.b16 %v5333
      %v5380 = vunpack.c.l.b16 %v5334
      %v5381 = vunpack.c.h.b16 %v5334
      %v5382 = vunpack.c.l.b16 %v5335
      %v5383 = vunpack.c.h.b16 %v5335
      %v5384 = vunpack.c.l.b16 %v5336
      %v5385 = vunpack.c.h.b16 %v5336
      %v5386 = vpack.c.b16 %v5358, %v5354
      %v5387 = vpack.c.b16 %v5359, %v5355
      %v5388 = vpack.c.b16 %v5360, %v5356
      %v5389 = vpack.c.b16 %v5361, %v5357
      %v5390 = vpack.c.b16 %v5366, %v5362
      %v5391 = vpack.c.b16 %v5367, %v5363
      %v5392 = vpack.c.b16 %v5368, %v5364
      %v5393 = vpack.c.b16 %v5369, %v5365
      %v5394 = vpack.c.b16 %v5374, %v5370
      %v5395 = vpack.c.b16 %v5375, %v5371
      %v5396 = vpack.c.b16 %v5376, %v5372
      %v5397 = vpack.c.b16 %v5377, %v5373
      %v5398 = vpack.c.b16 %v5382, %v5378
      %v5399 = vpack.c.b16 %v5383, %v5379
      %v5400 = vpack.c.b16 %v5384, %v5380
      %v5401 = vpack.c.b16 %v5385, %v5381
      %v5419 = vsel %vm919, %v5337, 0
      %5421 = vmatprep.subr.bf16.mxu0 0
      %5422 = vmatpush1.bf16.msra.mxu0 0
      %5423 = vmatprep.subr.bf16.mxu0 0
      %5424 = vmatpush1.bf16.msra.mxu0 0
      %5425 = vmatprep.subr.bf16.mxu0 0
      %5426 = vmatpush1.bf16.msra.mxu0 0
      %5427 = vmatprep.subr.bf16.mxu0 0
      %5428 = vmatpush1.bf16.msra.mxu0 0
      %5429 = vmatprep.subr.bf16.mxu0 %v5399
      %5430 = vmatpush1.bf16.msra.mxu0 %v5398
      %5431 = vmatprep.subr.bf16.mxu0 %v5395
      %5432 = vmatpush1.bf16.msra.mxu0 %v5394
      %5433 = vmatprep.subr.bf16.mxu0 %v5391
      %5434 = vmatpush1.bf16.msra.mxu0 %v5390
      %5435 = vmatprep.subr.bf16.mxu0 %v5387
      %5436 = vmatpush1.bf16.msra.mxu0 %v5386
      %5437 = vmatprep.subr.bf16.mxu0 0
      %5438 = vmatpush2.bf16.msra.mxu0 0
      %5439 = vmatprep.subr.bf16.mxu0 0
      %5440 = vmatpush2.bf16.msra.mxu0 0
      %5441 = vmatprep.subr.bf16.mxu0 0
      %5442 = vmatpush2.bf16.msra.mxu0 0
      %5443 = vmatprep.subr.bf16.mxu0 0
      %5444 = vmatpush2.bf16.msra.mxu0 0
      %5445 = vmatprep.subr.bf16.mxu0 0
      %5446 = vmatpush2.bf16.msra.mxu0 0
      %5447 = vmatprep.subr.bf16.mxu0 0
      %5448 = vmatpush2.bf16.msra.mxu0 0
      %5449 = vmatprep.subr.bf16.mxu0 0
      %5450 = vmatpush2.bf16.msra.mxu0 0
      %5451 = vmatprep.subr.bf16.mxu0 0
      %5452 = vmatpush2.bf16.msra.mxu0 0
      %5453 = vmatprep.mubr.bf16.mxu0 0
      %5454 = vmatmul.mubr.bf16.gmra.mxu0 %v5419
      %v5455 = vpop.f32.mrf.mxu0
      %v5456 = vadd.f32 0.0, %v5455
      %v5457 = vpop.f32.mrf.mxu0
      %v5458 = vadd.f32 0.0, %v5457
      %v5459 = vpop.f32.mrf.mxu0
      %v5460 = vpop.f32.mrf.mxu0
      %5461 = vdwg.mxu0
      %5462 = vmatprep.subr.bf16.mxu0 0
      %5463 = vmatpush1.bf16.msra.mxu0 0
      %5464 = vmatprep.subr.bf16.mxu0 0
      %5465 = vmatpush1.bf16.msra.mxu0 0
      %5466 = vmatprep.subr.bf16.mxu0 0
      %5467 = vmatpush1.bf16.msra.mxu0 0
      %5468 = vmatprep.subr.bf16.mxu0 0
      %5469 = vmatpush1.bf16.msra.mxu0 0
      %5470 = vmatprep.subr.bf16.mxu0 %v5401
      %5471 = vmatpush1.bf16.msra.mxu0 %v5400
      %5472 = vmatprep.subr.bf16.mxu0 %v5397
      %5473 = vmatpush1.bf16.msra.mxu0 %v5396
      %5474 = vmatprep.subr.bf16.mxu0 %v5393
      %5475 = vmatpush1.bf16.msra.mxu0 %v5392
      %5476 = vmatprep.subr.bf16.mxu0 %v5389
      %5477 = vmatpush1.bf16.msra.mxu0 %v5388
      %5478 = vmatprep.subr.bf16.mxu0 0
      %5479 = vmatpush2.bf16.msra.mxu0 0
      %5480 = vmatprep.subr.bf16.mxu0 0
      %5481 = vmatpush2.bf16.msra.mxu0 0
      %5482 = vmatprep.subr.bf16.mxu0 0
      %5483 = vmatpush2.bf16.msra.mxu0 0
      %5484 = vmatprep.subr.bf16.mxu0 0
      %5485 = vmatpush2.bf16.msra.mxu0 0
      %5486 = vmatprep.subr.bf16.mxu0 0
      %5487 = vmatpush2.bf16.msra.mxu0 0
      %5488 = vmatprep.subr.bf16.mxu0 0
      %5489 = vmatpush2.bf16.msra.mxu0 0
      %5490 = vmatprep.subr.bf16.mxu0 0
      %5491 = vmatpush2.bf16.msra.mxu0 0
      %5492 = vmatprep.subr.bf16.mxu0 0
      %5493 = vmatpush2.bf16.msra.mxu0 0
      %5494 = vmatprep.mubr.bf16.mxu0 0
      %5495 = vmatmul.mubr.bf16.gmra.mxu0 %v5419
      %v5496 = vpop.f32.mrf.mxu0
      %v5497 = vadd.f32 0.0, %v5496
      %v5498 = vpop.f32.mrf.mxu0
      %v5499 = vadd.f32 0.0, %v5498
      %v5500 = vpop.f32.mrf.mxu0
      %v5501 = vpop.f32.mrf.mxu0
      %5502 = vdwg.mxu0
      %v5503 = vadd.f32 %v5316, %v5456
      %v5504 = vadd.f32 %v5317, %v5458
      %v5505 = vadd.f32 %v5318, %v5497
      %v5506 = vadd.f32 %v5319, %v5499
      %s5507 = scalar_lea.vmem %s9, 1664
      %v5508 = vld [vmem:[%s5507] sm:$0xff]
      %v5509 = vld [vmem:[%s5507 + $0x8] sm:$0xff]
      %v5510 = vld [vmem:[%s5507 + $0x10] sm:$0xff]
      %v5511 = vld [vmem:[%s5507 + $0x18] sm:$0xff]
      %v5512 = vld [vmem:[%s5507 + $0x20] sm:$0xff]
      %v5513 = vld [vmem:[%s5507 + $0x28] sm:$0xff]
      %v5514 = vld [vmem:[%s5507 + $0x30] sm:$0xff]
      %v5515 = vld [vmem:[%s5507 + $0x38] sm:$0xff]
      %v5516 = vld [vmem:[%s5507 + $0x40] sm:$0xff]
      %v5517 = vld [vmem:[%s5507 + $0x48] sm:$0xff]
      %v5518 = vld [vmem:[%s5507 + $0x50] sm:$0xff]
      %v5519 = vld [vmem:[%s5507 + $0x58] sm:$0xff]
      %v5520 = vld [vmem:[%s5507 + $0x60] sm:$0xff]
      %v5521 = vld [vmem:[%s5507 + $0x68] sm:$0xff]
      %v5522 = vld [vmem:[%s5507 + $0x70] sm:$0xff]
      %v5523 = vld [vmem:[%s5507 + $0x78] sm:$0xff]
      %v5524 = vrot.slane %v3118, 6
      %v5541 = vunpack.c.l.b16 %v5508
      %v5542 = vunpack.c.h.b16 %v5508
      %v5543 = vunpack.c.l.b16 %v5509
      %v5544 = vunpack.c.h.b16 %v5509
      %v5545 = vunpack.c.l.b16 %v5510
      %v5546 = vunpack.c.h.b16 %v5510
      %v5547 = vunpack.c.l.b16 %v5511
      %v5548 = vunpack.c.h.b16 %v5511
      %v5549 = vunpack.c.l.b16 %v5512
      %v5550 = vunpack.c.h.b16 %v5512
      %v5551 = vunpack.c.l.b16 %v5513
      %v5552 = vunpack.c.h.b16 %v5513
      %v5553 = vunpack.c.l.b16 %v5514
      %v5554 = vunpack.c.h.b16 %v5514
      %v5555 = vunpack.c.l.b16 %v5515
      %v5556 = vunpack.c.h.b16 %v5515
      %v5557 = vunpack.c.l.b16 %v5516
      %v5558 = vunpack.c.h.b16 %v5516
      %v5559 = vunpack.c.l.b16 %v5517
      %v5560 = vunpack.c.h.b16 %v5517
      %v5561 = vunpack.c.l.b16 %v5518
      %v5562 = vunpack.c.h.b16 %v5518
      %v5563 = vunpack.c.l.b16 %v5519
      %v5564 = vunpack.c.h.b16 %v5519
      %v5565 = vunpack.c.l.b16 %v5520
      %v5566 = vunpack.c.h.b16 %v5520
      %v5567 = vunpack.c.l.b16 %v5521
      %v5568 = vunpack.c.h.b16 %v5521
      %v5569 = vunpack.c.l.b16 %v5522
      %v5570 = vunpack.c.h.b16 %v5522
      %v5571 = vunpack.c.l.b16 %v5523
      %v5572 = vunpack.c.h.b16 %v5523
      %v5573 = vpack.c.b16 %v5545, %v5541
      %v5574 = vpack.c.b16 %v5546, %v5542
      %v5575 = vpack.c.b16 %v5547, %v5543
      %v5576 = vpack.c.b16 %v5548, %v5544
      %v5577 = vpack.c.b16 %v5553, %v5549
      %v5578 = vpack.c.b16 %v5554, %v5550
      %v5579 = vpack.c.b16 %v5555, %v5551
      %v5580 = vpack.c.b16 %v5556, %v5552
      %v5581 = vpack.c.b16 %v5561, %v5557
      %v5582 = vpack.c.b16 %v5562, %v5558
      %v5583 = vpack.c.b16 %v5563, %v5559
      %v5584 = vpack.c.b16 %v5564, %v5560
      %v5585 = vpack.c.b16 %v5569, %v5565
      %v5586 = vpack.c.b16 %v5570, %v5566
      %v5587 = vpack.c.b16 %v5571, %v5567
      %v5588 = vpack.c.b16 %v5572, %v5568
      %v5606 = vsel %vm919, %v5524, 0
      %5608 = vmatprep.subr.bf16.mxu0 0
      %5609 = vmatpush1.bf16.msra.mxu0 0
      %5610 = vmatprep.subr.bf16.mxu0 0
      %5611 = vmatpush1.bf16.msra.mxu0 0
      %5612 = vmatprep.subr.bf16.mxu0 0
      %5613 = vmatpush1.bf16.msra.mxu0 0
      %5614 = vmatprep.subr.bf16.mxu0 0
      %5615 = vmatpush1.bf16.msra.mxu0 0
      %5616 = vmatprep.subr.bf16.mxu0 %v5586
      %5617 = vmatpush1.bf16.msra.mxu0 %v5585
      %5618 = vmatprep.subr.bf16.mxu0 %v5582
      %5619 = vmatpush1.bf16.msra.mxu0 %v5581
      %5620 = vmatprep.subr.bf16.mxu0 %v5578
      %5621 = vmatpush1.bf16.msra.mxu0 %v5577
      %5622 = vmatprep.subr.bf16.mxu0 %v5574
      %5623 = vmatpush1.bf16.msra.mxu0 %v5573
      %5624 = vmatprep.subr.bf16.mxu0 0
      %5625 = vmatpush2.bf16.msra.mxu0 0
      %5626 = vmatprep.subr.bf16.mxu0 0
      %5627 = vmatpush2.bf16.msra.mxu0 0
      %5628 = vmatprep.subr.bf16.mxu0 0
      %5629 = vmatpush2.bf16.msra.mxu0 0
      %5630 = vmatprep.subr.bf16.mxu0 0
      %5631 = vmatpush2.bf16.msra.mxu0 0
      %5632 = vmatprep.subr.bf16.mxu0 0
      %5633 = vmatpush2.bf16.msra.mxu0 0
      %5634 = vmatprep.subr.bf16.mxu0 0
      %5635 = vmatpush2.bf16.msra.mxu0 0
      %5636 = vmatprep.subr.bf16.mxu0 0
      %5637 = vmatpush2.bf16.msra.mxu0 0
      %5638 = vmatprep.subr.bf16.mxu0 0
      %5639 = vmatpush2.bf16.msra.mxu0 0
      %5640 = vmatprep.mubr.bf16.mxu0 0
      %5641 = vmatmul.mubr.bf16.gmra.mxu0 %v5606
      %v5642 = vpop.f32.mrf.mxu0
      %v5643 = vadd.f32 0.0, %v5642
      %v5644 = vpop.f32.mrf.mxu0
      %v5645 = vadd.f32 0.0, %v5644
      %v5646 = vpop.f32.mrf.mxu0
      %v5647 = vpop.f32.mrf.mxu0
      %5648 = vdwg.mxu0
      %5649 = vmatprep.subr.bf16.mxu0 0
      %5650 = vmatpush1.bf16.msra.mxu0 0
      %5651 = vmatprep.subr.bf16.mxu0 0
      %5652 = vmatpush1.bf16.msra.mxu0 0
      %5653 = vmatprep.subr.bf16.mxu0 0
      %5654 = vmatpush1.bf16.msra.mxu0 0
      %5655 = vmatprep.subr.bf16.mxu0 0
      %5656 = vmatpush1.bf16.msra.mxu0 0
      %5657 = vmatprep.subr.bf16.mxu0 %v5588
      %5658 = vmatpush1.bf16.msra.mxu0 %v5587
      %5659 = vmatprep.subr.bf16.mxu0 %v5584
      %5660 = vmatpush1.bf16.msra.mxu0 %v5583
      %5661 = vmatprep.subr.bf16.mxu0 %v5580
      %5662 = vmatpush1.bf16.msra.mxu0 %v5579
      %5663 = vmatprep.subr.bf16.mxu0 %v5576
      %5664 = vmatpush1.bf16.msra.mxu0 %v5575
      %5665 = vmatprep.subr.bf16.mxu0 0
      %5666 = vmatpush2.bf16.msra.mxu0 0
      %5667 = vmatprep.subr.bf16.mxu0 0
      %5668 = vmatpush2.bf16.msra.mxu0 0
      %5669 = vmatprep.subr.bf16.mxu0 0
      %5670 = vmatpush2.bf16.msra.mxu0 0
      %5671 = vmatprep.subr.bf16.mxu0 0
      %5672 = vmatpush2.bf16.msra.mxu0 0
      %5673 = vmatprep.subr.bf16.mxu0 0
      %5674 = vmatpush2.bf16.msra.mxu0 0
      %5675 = vmatprep.subr.bf16.mxu0 0
      %5676 = vmatpush2.bf16.msra.mxu0 0
      %5677 = vmatprep.subr.bf16.mxu0 0
      %5678 = vmatpush2.bf16.msra.mxu0 0
      %5679 = vmatprep.subr.bf16.mxu0 0
      %5680 = vmatpush2.bf16.msra.mxu0 0
      %5681 = vmatprep.mubr.bf16.mxu0 0
      %5682 = vmatmul.mubr.bf16.gmra.mxu0 %v5606
      %v5683 = vpop.f32.mrf.mxu0
      %v5684 = vadd.f32 0.0, %v5683
      %v5685 = vpop.f32.mrf.mxu0
      %v5686 = vadd.f32 0.0, %v5685
      %v5687 = vpop.f32.mrf.mxu0
      %v5688 = vpop.f32.mrf.mxu0
      %5689 = vdwg.mxu0
      %v5690 = vadd.f32 %v5503, %v5643
      %v5691 = vadd.f32 %v5504, %v5645
      %v5692 = vadd.f32 %v5505, %v5684
      %v5693 = vadd.f32 %v5506, %v5686
      %s5694 = scalar_lea.vmem %s9, 1792
      %v5695 = vld [vmem:[%s5694] sm:$0xff]
      %v5696 = vld [vmem:[%s5694 + $0x8] sm:$0xff]
      %v5697 = vld [vmem:[%s5694 + $0x10] sm:$0xff]
      %v5698 = vld [vmem:[%s5694 + $0x18] sm:$0xff]
      %v5699 = vld [vmem:[%s5694 + $0x20] sm:$0xff]
      %v5700 = vld [vmem:[%s5694 + $0x28] sm:$0xff]
      %v5701 = vld [vmem:[%s5694 + $0x30] sm:$0xff]
      %v5702 = vld [vmem:[%s5694 + $0x38] sm:$0xff]
      %v5703 = vld [vmem:[%s5694 + $0x40] sm:$0xff]
      %v5704 = vld [vmem:[%s5694 + $0x48] sm:$0xff]
      %v5705 = vld [vmem:[%s5694 + $0x50] sm:$0xff]
      %v5706 = vld [vmem:[%s5694 + $0x58] sm:$0xff]
      %v5707 = vld [vmem:[%s5694 + $0x60] sm:$0xff]
      %v5708 = vld [vmem:[%s5694 + $0x68] sm:$0xff]
      %v5709 = vld [vmem:[%s5694 + $0x70] sm:$0xff]
      %v5710 = vld [vmem:[%s5694 + $0x78] sm:$0xff]
      %v5711 = vrot.slane %v3083, 7
      %v5728 = vunpack.c.l.b16 %v5695
      %v5729 = vunpack.c.h.b16 %v5695
      %v5730 = vunpack.c.l.b16 %v5696
      %v5731 = vunpack.c.h.b16 %v5696
      %v5732 = vunpack.c.l.b16 %v5697
      %v5733 = vunpack.c.h.b16 %v5697
      %v5734 = vunpack.c.l.b16 %v5698
      %v5735 = vunpack.c.h.b16 %v5698
      %v5736 = vunpack.c.l.b16 %v5699
      %v5737 = vunpack.c.h.b16 %v5699
      %v5738 = vunpack.c.l.b16 %v5700
      %v5739 = vunpack.c.h.b16 %v5700
      %v5740 = vunpack.c.l.b16 %v5701
      %v5741 = vunpack.c.h.b16 %v5701
      %v5742 = vunpack.c.l.b16 %v5702
      %v5743 = vunpack.c.h.b16 %v5702
      %v5744 = vunpack.c.l.b16 %v5703
      %v5745 = vunpack.c.h.b16 %v5703
      %v5746 = vunpack.c.l.b16 %v5704
      %v5747 = vunpack.c.h.b16 %v5704
      %v5748 = vunpack.c.l.b16 %v5705
      %v5749 = vunpack.c.h.b16 %v5705
      %v5750 = vunpack.c.l.b16 %v5706
      %v5751 = vunpack.c.h.b16 %v5706
      %v5752 = vunpack.c.l.b16 %v5707
      %v5753 = vunpack.c.h.b16 %v5707
      %v5754 = vunpack.c.l.b16 %v5708
      %v5755 = vunpack.c.h.b16 %v5708
      %v5756 = vunpack.c.l.b16 %v5709
      %v5757 = vunpack.c.h.b16 %v5709
      %v5758 = vunpack.c.l.b16 %v5710
      %v5759 = vunpack.c.h.b16 %v5710
      %v5760 = vpack.c.b16 %v5732, %v5728
      %v5761 = vpack.c.b16 %v5733, %v5729
      %v5762 = vpack.c.b16 %v5734, %v5730
      %v5763 = vpack.c.b16 %v5735, %v5731
      %v5764 = vpack.c.b16 %v5740, %v5736
      %v5765 = vpack.c.b16 %v5741, %v5737
      %v5766 = vpack.c.b16 %v5742, %v5738
      %v5767 = vpack.c.b16 %v5743, %v5739
      %v5768 = vpack.c.b16 %v5748, %v5744
      %v5769 = vpack.c.b16 %v5749, %v5745
      %v5770 = vpack.c.b16 %v5750, %v5746
      %v5771 = vpack.c.b16 %v5751, %v5747
      %v5772 = vpack.c.b16 %v5756, %v5752
      %v5773 = vpack.c.b16 %v5757, %v5753
      %v5774 = vpack.c.b16 %v5758, %v5754
      %v5775 = vpack.c.b16 %v5759, %v5755
      %v5793 = vsel %vm919, %v5711, 0
      %5795 = vmatprep.subr.bf16.mxu0 0
      %5796 = vmatpush1.bf16.msra.mxu0 0
      %5797 = vmatprep.subr.bf16.mxu0 0
      %5798 = vmatpush1.bf16.msra.mxu0 0
      %5799 = vmatprep.subr.bf16.mxu0 0
      %5800 = vmatpush1.bf16.msra.mxu0 0
      %5801 = vmatprep.subr.bf16.mxu0 0
      %5802 = vmatpush1.bf16.msra.mxu0 0
      %5803 = vmatprep.subr.bf16.mxu0 %v5773
      %5804 = vmatpush1.bf16.msra.mxu0 %v5772
      %5805 = vmatprep.subr.bf16.mxu0 %v5769
      %5806 = vmatpush1.bf16.msra.mxu0 %v5768
      %5807 = vmatprep.subr.bf16.mxu0 %v5765
      %5808 = vmatpush1.bf16.msra.mxu0 %v5764
      %5809 = vmatprep.subr.bf16.mxu0 %v5761
      %5810 = vmatpush1.bf16.msra.mxu0 %v5760
      %5811 = vmatprep.subr.bf16.mxu0 0
      %5812 = vmatpush2.bf16.msra.mxu0 0
      %5813 = vmatprep.subr.bf16.mxu0 0
      %5814 = vmatpush2.bf16.msra.mxu0 0
      %5815 = vmatprep.subr.bf16.mxu0 0
      %5816 = vmatpush2.bf16.msra.mxu0 0
      %5817 = vmatprep.subr.bf16.mxu0 0
      %5818 = vmatpush2.bf16.msra.mxu0 0
      %5819 = vmatprep.subr.bf16.mxu0 0
      %5820 = vmatpush2.bf16.msra.mxu0 0
      %5821 = vmatprep.subr.bf16.mxu0 0
      %5822 = vmatpush2.bf16.msra.mxu0 0
      %5823 = vmatprep.subr.bf16.mxu0 0
      %5824 = vmatpush2.bf16.msra.mxu0 0
      %5825 = vmatprep.subr.bf16.mxu0 0
      %5826 = vmatpush2.bf16.msra.mxu0 0
      %5827 = vmatprep.mubr.bf16.mxu0 0
      %5828 = vmatmul.mubr.bf16.gmra.mxu0 %v5793
      %v5829 = vpop.f32.mrf.mxu0
      %v5830 = vadd.f32 0.0, %v5829
      %v5831 = vpop.f32.mrf.mxu0
      %v5832 = vadd.f32 0.0, %v5831
      %v5833 = vpop.f32.mrf.mxu0
      %v5834 = vpop.f32.mrf.mxu0
      %5835 = vdwg.mxu0
      %5836 = vmatprep.subr.bf16.mxu0 0
      %5837 = vmatpush1.bf16.msra.mxu0 0
      %5838 = vmatprep.subr.bf16.mxu0 0
      %5839 = vmatpush1.bf16.msra.mxu0 0
      %5840 = vmatprep.subr.bf16.mxu0 0
      %5841 = vmatpush1.bf16.msra.mxu0 0
      %5842 = vmatprep.subr.bf16.mxu0 0
      %5843 = vmatpush1.bf16.msra.mxu0 0
      %5844 = vmatprep.subr.bf16.mxu0 %v5775
      %5845 = vmatpush1.bf16.msra.mxu0 %v5774
      %5846 = vmatprep.subr.bf16.mxu0 %v5771
      %5847 = vmatpush1.bf16.msra.mxu0 %v5770
      %5848 = vmatprep.subr.bf16.mxu0 %v5767
      %5849 = vmatpush1.bf16.msra.mxu0 %v5766
      %5850 = vmatprep.subr.bf16.mxu0 %v5763
      %5851 = vmatpush1.bf16.msra.mxu0 %v5762
      %5852 = vmatprep.subr.bf16.mxu0 0
      %5853 = vmatpush2.bf16.msra.mxu0 0
      %5854 = vmatprep.subr.bf16.mxu0 0
      %5855 = vmatpush2.bf16.msra.mxu0 0
      %5856 = vmatprep.subr.bf16.mxu0 0
      %5857 = vmatpush2.bf16.msra.mxu0 0
      %5858 = vmatprep.subr.bf16.mxu0 0
      %5859 = vmatpush2.bf16.msra.mxu0 0
      %5860 = vmatprep.subr.bf16.mxu0 0
      %5861 = vmatpush2.bf16.msra.mxu0 0
      %5862 = vmatprep.subr.bf16.mxu0 0
      %5863 = vmatpush2.bf16.msra.mxu0 0
      %5864 = vmatprep.subr.bf16.mxu0 0
      %5865 = vmatpush2.bf16.msra.mxu0 0
      %5866 = vmatprep.subr.bf16.mxu0 0
      %5867 = vmatpush2.bf16.msra.mxu0 0
      %5868 = vmatprep.mubr.bf16.mxu0 0
      %5869 = vmatmul.mubr.bf16.gmra.mxu0 %v5793
      %v5870 = vpop.f32.mrf.mxu0
      %v5871 = vadd.f32 0.0, %v5870
      %v5872 = vpop.f32.mrf.mxu0
      %v5873 = vadd.f32 0.0, %v5872
      %v5874 = vpop.f32.mrf.mxu0
      %v5875 = vpop.f32.mrf.mxu0
      %5876 = vdwg.mxu0
      %v5877 = vadd.f32 %v5690, %v5830
      %v5878 = vadd.f32 %v5691, %v5832
      %v5879 = vadd.f32 %v5692, %v5871
      %v5880 = vadd.f32 %v5693, %v5873
      %s5881 = scalar_lea.vmem %s9, 1920
      %v5882 = vld [vmem:[%s5881] sm:$0xff]
      %v5883 = vld [vmem:[%s5881 + $0x8] sm:$0xff]
      %v5884 = vld [vmem:[%s5881 + $0x10] sm:$0xff]
      %v5885 = vld [vmem:[%s5881 + $0x18] sm:$0xff]
      %v5886 = vld [vmem:[%s5881 + $0x20] sm:$0xff]
      %v5887 = vld [vmem:[%s5881 + $0x28] sm:$0xff]
      %v5888 = vld [vmem:[%s5881 + $0x30] sm:$0xff]
      %v5889 = vld [vmem:[%s5881 + $0x38] sm:$0xff]
      %v5890 = vld [vmem:[%s5881 + $0x40] sm:$0xff]
      %v5891 = vld [vmem:[%s5881 + $0x48] sm:$0xff]
      %v5892 = vld [vmem:[%s5881 + $0x50] sm:$0xff]
      %v5893 = vld [vmem:[%s5881 + $0x58] sm:$0xff]
      %v5894 = vld [vmem:[%s5881 + $0x60] sm:$0xff]
      %v5895 = vld [vmem:[%s5881 + $0x68] sm:$0xff]
      %v5896 = vld [vmem:[%s5881 + $0x70] sm:$0xff]
      %v5897 = vld [vmem:[%s5881 + $0x78] sm:$0xff]
      %v5898 = vrot.slane %v3118, 7
      %v5915 = vunpack.c.l.b16 %v5882
      %v5916 = vunpack.c.h.b16 %v5882
      %v5917 = vunpack.c.l.b16 %v5883
      %v5918 = vunpack.c.h.b16 %v5883
      %v5919 = vunpack.c.l.b16 %v5884
      %v5920 = vunpack.c.h.b16 %v5884
      %v5921 = vunpack.c.l.b16 %v5885
      %v5922 = vunpack.c.h.b16 %v5885
      %v5923 = vunpack.c.l.b16 %v5886
      %v5924 = vunpack.c.h.b16 %v5886
      %v5925 = vunpack.c.l.b16 %v5887
      %v5926 = vunpack.c.h.b16 %v5887
      %v5927 = vunpack.c.l.b16 %v5888
      %v5928 = vunpack.c.h.b16 %v5888
      %v5929 = vunpack.c.l.b16 %v5889
      %v5930 = vunpack.c.h.b16 %v5889
      %v5931 = vunpack.c.l.b16 %v5890
      %v5932 = vunpack.c.h.b16 %v5890
      %v5933 = vunpack.c.l.b16 %v5891
      %v5934 = vunpack.c.h.b16 %v5891
      %v5935 = vunpack.c.l.b16 %v5892
      %v5936 = vunpack.c.h.b16 %v5892
      %v5937 = vunpack.c.l.b16 %v5893
      %v5938 = vunpack.c.h.b16 %v5893
      %v5939 = vunpack.c.l.b16 %v5894
      %v5940 = vunpack.c.h.b16 %v5894
      %v5941 = vunpack.c.l.b16 %v5895
      %v5942 = vunpack.c.h.b16 %v5895
      %v5943 = vunpack.c.l.b16 %v5896
      %v5944 = vunpack.c.h.b16 %v5896
      %v5945 = vunpack.c.l.b16 %v5897
      %v5946 = vunpack.c.h.b16 %v5897
      %v5947 = vpack.c.b16 %v5919, %v5915
      %v5948 = vpack.c.b16 %v5920, %v5916
      %v5949 = vpack.c.b16 %v5921, %v5917
      %v5950 = vpack.c.b16 %v5922, %v5918
      %v5951 = vpack.c.b16 %v5927, %v5923
      %v5952 = vpack.c.b16 %v5928, %v5924
      %v5953 = vpack.c.b16 %v5929, %v5925
      %v5954 = vpack.c.b16 %v5930, %v5926
      %v5955 = vpack.c.b16 %v5935, %v5931
      %v5956 = vpack.c.b16 %v5936, %v5932
      %v5957 = vpack.c.b16 %v5937, %v5933
      %v5958 = vpack.c.b16 %v5938, %v5934
      %v5959 = vpack.c.b16 %v5943, %v5939
      %v5960 = vpack.c.b16 %v5944, %v5940
      %v5961 = vpack.c.b16 %v5945, %v5941
      %v5962 = vpack.c.b16 %v5946, %v5942
      %v5980 = vsel %vm919, %v5898, 0
      %5982 = vmatprep.subr.bf16.mxu0 0
      %5983 = vmatpush1.bf16.msra.mxu0 0
      %5984 = vmatprep.subr.bf16.mxu0 0
      %5985 = vmatpush1.bf16.msra.mxu0 0
      %5986 = vmatprep.subr.bf16.mxu0 0
      %5987 = vmatpush1.bf16.msra.mxu0 0
      %5988 = vmatprep.subr.bf16.mxu0 0
      %5989 = vmatpush1.bf16.msra.mxu0 0
      %5990 = vmatprep.subr.bf16.mxu0 %v5960
      %5991 = vmatpush1.bf16.msra.mxu0 %v5959
      %5992 = vmatprep.subr.bf16.mxu0 %v5956
      %5993 = vmatpush1.bf16.msra.mxu0 %v5955
      %5994 = vmatprep.subr.bf16.mxu0 %v5952
      %5995 = vmatpush1.bf16.msra.mxu0 %v5951
      %5996 = vmatprep.subr.bf16.mxu0 %v5948
      %5997 = vmatpush1.bf16.msra.mxu0 %v5947
      %5998 = vmatprep.subr.bf16.mxu0 0
      %5999 = vmatpush2.bf16.msra.mxu0 0
      %6000 = vmatprep.subr.bf16.mxu0 0
      %6001 = vmatpush2.bf16.msra.mxu0 0
      %6002 = vmatprep.subr.bf16.mxu0 0
      %6003 = vmatpush2.bf16.msra.mxu0 0
      %6004 = vmatprep.subr.bf16.mxu0 0
      %6005 = vmatpush2.bf16.msra.mxu0 0
      %6006 = vmatprep.subr.bf16.mxu0 0
      %6007 = vmatpush2.bf16.msra.mxu0 0
      %6008 = vmatprep.subr.bf16.mxu0 0
      %6009 = vmatpush2.bf16.msra.mxu0 0
      %6010 = vmatprep.subr.bf16.mxu0 0
      %6011 = vmatpush2.bf16.msra.mxu0 0
      %6012 = vmatprep.subr.bf16.mxu0 0
      %6013 = vmatpush2.bf16.msra.mxu0 0
      %6014 = vmatprep.mubr.bf16.mxu0 0
      %6015 = vmatmul.mubr.bf16.gmra.mxu0 %v5980
      %v6016 = vpop.f32.mrf.mxu0
      %v6017 = vadd.f32 0.0, %v6016
      %v6018 = vpop.f32.mrf.mxu0
      %v6019 = vadd.f32 0.0, %v6018
      %v6020 = vpop.f32.mrf.mxu0
      %v6021 = vpop.f32.mrf.mxu0
      %6022 = vdwg.mxu0
      %6023 = vmatprep.subr.bf16.mxu0 0
      %6024 = vmatpush1.bf16.msra.mxu0 0
      %6025 = vmatprep.subr.bf16.mxu0 0
      %6026 = vmatpush1.bf16.msra.mxu0 0
      %6027 = vmatprep.subr.bf16.mxu0 0
      %6028 = vmatpush1.bf16.msra.mxu0 0
      %6029 = vmatprep.subr.bf16.mxu0 0
      %6030 = vmatpush1.bf16.msra.mxu0 0
      %6031 = vmatprep.subr.bf16.mxu0 %v5962
      %6032 = vmatpush1.bf16.msra.mxu0 %v5961
      %6033 = vmatprep.subr.bf16.mxu0 %v5958
      %6034 = vmatpush1.bf16.msra.mxu0 %v5957
      %6035 = vmatprep.subr.bf16.mxu0 %v5954
      %6036 = vmatpush1.bf16.msra.mxu0 %v5953
      %6037 = vmatprep.subr.bf16.mxu0 %v5950
      %6038 = vmatpush1.bf16.msra.mxu0 %v5949
      %6039 = vmatprep.subr.bf16.mxu0 0
      %6040 = vmatpush2.bf16.msra.mxu0 0
      %6041 = vmatprep.subr.bf16.mxu0 0
      %6042 = vmatpush2.bf16.msra.mxu0 0
      %6043 = vmatprep.subr.bf16.mxu0 0
      %6044 = vmatpush2.bf16.msra.mxu0 0
      %6045 = vmatprep.subr.bf16.mxu0 0
      %6046 = vmatpush2.bf16.msra.mxu0 0
      %6047 = vmatprep.subr.bf16.mxu0 0
      %6048 = vmatpush2.bf16.msra.mxu0 0
      %6049 = vmatprep.subr.bf16.mxu0 0
      %6050 = vmatpush2.bf16.msra.mxu0 0
      %6051 = vmatprep.subr.bf16.mxu0 0
      %6052 = vmatpush2.bf16.msra.mxu0 0
      %6053 = vmatprep.subr.bf16.mxu0 0
      %6054 = vmatpush2.bf16.msra.mxu0 0
      %6055 = vmatprep.mubr.bf16.mxu0 0
      %6056 = vmatmul.mubr.bf16.gmra.mxu0 %v5980
      %v6057 = vpop.f32.mrf.mxu0
      %v6058 = vadd.f32 0.0, %v6057
      %v6059 = vpop.f32.mrf.mxu0
      %v6060 = vadd.f32 0.0, %v6059
      %v6061 = vpop.f32.mrf.mxu0
      %v6062 = vpop.f32.mrf.mxu0
      %6063 = vdwg.mxu0
      %v6064 = vadd.f32 %v5877, %v6017
      %v6065 = vadd.f32 %v5878, %v6019
      %v6066 = vadd.f32 %v5879, %v6058
      %v6067 = vadd.f32 %v5880, %v6060
      %v6068 = vld [vmem:[%s10] sm:$0xf]
      %v6070 = vlaneseq
      %v6071 = vshrl.u32 %v6070, 7
      %v6072 = vsub.s32 0, %v6071
      %v6073 = vrot.slane %v6068, %v6072
      %v6074 = vlaneseq
      %v6075 = vshrl.u32 %v6074, 7
      %v6076 = vsub.s32 1, %v6075
      %v6077 = vrot.slane %v6068, %v6076
      %v6078 = vlaneseq
      %v6079 = vshrl.u32 %v6078, 7
      %v6080 = vsub.s32 2, %v6079
      %v6081 = vrot.slane %v6068, %v6080
      %v6082 = vlaneseq
      %v6083 = vshrl.u32 %v6082, 7
      %v6084 = vsub.s32 3, %v6083
      %v6085 = vrot.slane %v6068, %v6084
      %v6090 = vadd.f32 %v6064, %v6073
      %v6091 = vadd.f32 %v6065, %v6077
      %v6092 = vadd.f32 %v6066, %v6081
      %v6093 = vadd.f32 %v6067, %v6085
      %v6094 = vmax.f32 %v6090, 0.0
      %v6095 = vmax.f32 %v6091, 0.0
      %v6096 = vmax.f32 %v6092, 0.0
      %v6097 = vmax.f32 %v6093, 0.0
      %v6102 = vcombine.low %v6094, %v6095
      %v6103 = vcombine.low %v6096, %v6097
      %v6105 = vunpack.c.l.s4 1966171168
      %v6106 = vunpack.c.0.s8 %v6105
      %v6107 = vlaneseq
      %v6108 = vshrl.u32 %v6107, 7
      %v6109 = vsub.s32 %v6106, %v6108
      %v6110 = vrot.slane %v6102, %v6109
      %v6112 = vunpack.c.l.s4 1966171168
      %v6113 = vunpack.c.0.s8 %v6112
      %v6114 = vlaneseq
      %v6115 = vshrl.u32 %v6114, 7
      %v6116 = vsub.s32 %v6113, %v6115
      %v6117 = vrot.slane %v6103, %v6116
      %v6118 = vcombine.low %v6110, %v6117
      %v6120 = vunpack.c.l.s4 1966171168
      %v6121 = vunpack.c.0.s8 %v6120
      %v6122 = vlaneseq
      %v6123 = vshrl.u32 %v6122, 7
      %v6124 = vsub.s32 %v6121, %v6123
      %v6125 = vrot.slane %v6118, %v6124
      %v6127 = vlaneseq
      %vm6128 = vcmp.ge.s32.totalorder %v6127, 0
      %vm6129 = vcmp.lt.s32.totalorder %v6127, 512
      %vm6130 = vmand %vm6128, %vm6129
      %6131 = vst.msk [vmem:[%s384] sm:$0xf] %vm6130, %v6125
      %p6132 = scmp.lt.s32.totalorder %s22, 1
      %s6133 = scalar_select %p6132, %s22, 1
      %s6134 = smul.addr %s6133, 4
      %s6135 = scalar_lea.vmem %s11, %s6134
      // Predicated region
      $region65: #{cnn_feature_extractor_forward.1} parent=63 // pred_check
        %p6136 = pneg %p276
      $region66: #{cnn_feature_extractor_forward.1} parent=63 // pred_check_branch
        %6138 = sbr.rel (%p6136) target = $region68
      $region67: #{cnn_feature_extractor_forward.1} parent=63 // pred_region
        _
      $region68: #{cnn_feature_extractor_forward.1} parent=63 // pred_fallthru
        _
    $region64: #{cnn_feature_extractor_forward.1} parent=5 // pred_fallthru
      _
    %p6139 = scmp.le.s32.totalorder 2, %s17
    // Predicated region
    $region69: #{cnn_feature_extractor_forward.1} parent=5 // pred_check
      %p6140 = pneg %p6139
    $region70: #{cnn_feature_extractor_forward.1} parent=5 // pred_check_branch
      %6142 = sbr.rel (%p6140) target = $region72
    $region71: #{cnn_feature_extractor_forward.1} parent=5 // pred_region
      %s6143 = ssub.s32 %s17, 2
      // Predicated region
      $region73: #{cnn_feature_extractor_forward.1} parent=71 // pred_check
        %p6144 = pneg %p282
      $region74: #{cnn_feature_extractor_forward.1} parent=71 // pred_check_branch
        %6146 = sbr.rel (%p6144) target = $region76
      $region75: #{cnn_feature_extractor_forward.1} parent=71 // pred_region
        %p6147 = scmp.lt.s32.totalorder %s23, 1
        %s6148 = scalar_select %p6147, %s23, 1
        %s6149 = smul.addr %s6148, 4
        %s6150 = scalar_lea.vmem %s11, %s6149
      $region76: #{cnn_feature_extractor_forward.1} parent=71 // pred_fallthru
        _
    $region72: #{cnn_feature_extractor_forward.1} parent=5 // pred_fallthru
      _
  $region6: #{cnn_feature_extractor_forward.1} parent=0 // loop_footer
    %s21 = sadd.s32 1, %s17
  $region7: #{cnn_feature_extractor_forward.1} parent=0 // loop_footer_branch
    %16 = sbr.rel target = $region3
  $region8: #{cnn_feature_extractor_forward.1} parent=0 // loop_exit
    _

</llo_original>
